<compile_context>
chip_gen: v6e
topology: v6e:2x2x1
jax: 0.10.0
libtpu: 0.0.40
codegen_flags: <defaults>
</compile_context>

<pallas_src>
import functools

import jax
import jax.numpy as jnp
from jax import lax
from jax.experimental import pallas as pl
from jax.experimental.pallas import tpu as pltpu

_LANES = 128
_SUBLANES = 8
# Halo rows per window: residual row shift <= 7, +1 for the lane-carry row,
# +1 for the derived odd tap; rounded to a sublane multiple.
_WIN_EXTRA = 2 * _SUBLANES


def _round_up(x, m):
    return (x + m - 1) // m * m


def _lane_masks(even_shifts, rows):
    """Precompute `lane < 128 - c` masks once per kernel (no per-tap iota)."""
    lane_idx = lax.broadcasted_iota(jnp.int32, (rows, _LANES), 1)
    cs = {1} | {s % _LANES for s in even_shifts}
    return {c: lane_idx < (_LANES - c) for c in sorted(cs) if c != 0}


def _win_shift(a, s, masks):
    """b[r, l] = a.flat[r*128 + l + s] for a (rows, 128) window; s static.

    Only rows [0, rows - s//128 - 2) are valid (later rows wrap); callers
    consume rows [0, T) with rows = T + _WIN_EXTRA and s < 8*128, so all
    consumed rows are clean.  Uses XLU rolls only (no misaligned VMEM slices).
    """
    rows = a.shape[0]
    r_off, c = divmod(s, _LANES)
    if c == 0:
        return a if r_off == 0 else pltpu.roll(a, shift=rows - r_off, axis=0)
    rolled = pltpu.roll(a, shift=_LANES - c, axis=1)         # [r,l] -> a[r,(l+c)%128]
    lo = rolled if r_off == 0 else pltpu.roll(rolled, shift=rows - r_off, axis=0)
    hi = pltpu.roll(rolled, shift=rows - r_off - 1, axis=0)  # [r]   -> rolled[r+r_off+1]
    return jnp.where(masks[c], lo, hi)


def _conv1_stats_kernel(x_ref, mask_ref, w1_ref, b1_ref, conv1_ref, stats_ref, *,
                        num_in_chans, even_shifts, tile_rows, n_tiles):
    """Pass 1: conv1 (2 out chans) + fused masked sum / sum-of-squares."""
    # x_ref:    (1, C, R, 128) VMEM    mask_ref: (R, 128) VMEM
    # w1_ref:   (2, C*8) SMEM          b1_ref:   (2,) SMEM
    # conv1_ref:(1, 2, R, 128) VMEM    stats_ref:(1, 8, 128) VMEM
    T = tile_rows
    Tw = T + _WIN_EXTRA
    R = conv1_ref.shape[2]
    covered = n_tiles * T
    masks = _lane_masks(even_shifts, Tw)

    stats_ref[0] = jnp.zeros((_SUBLANES, _LANES), jnp.float32)
    # Trailing halo rows are never produced by the tile loop; zero them so
    # pass 2's shifted window reads stay well defined.
    for co in range(2):
        conv1_ref[0, co, pl.ds(covered, R - covered), :] = jnp.zeros(
            (R - covered, _LANES), jnp.float32)

    @pl.loop(0, n_tiles)
    def _(t):
        row0 = pl.multiple_of(t * T, _SUBLANES)
        acc0 = jnp.zeros((T, _LANES), jnp.float32)
        acc1 = jnp.zeros((T, _LANES), jnp.float32)
        for ci in range(num_in_chans):
            for si, s in enumerate(even_shifts):
                blk, s_res = divmod(s, _LANES * _SUBLANES)
                win = x_ref[0, ci, pl.ds(row0 + blk * _SUBLANES, Tw), :]
                xe = _win_shift(win, s_res, masks)            # even tap (kw = 0)
                xo = _win_shift(xe, 1, masks)                 # odd tap, reuses xe
                xe_t, xo_t = xe[:T], xo[:T]
                k = ci * 8 + 2 * si
                acc0 = acc0 + xe_t * w1_ref[0, k] + xo_t * w1_ref[0, k + 1]
                acc1 = acc1 + xe_t * w1_ref[1, k] + xo_t * w1_ref[1, k + 1]
        m = mask_ref[pl.ds(row0, T), :]
        c0 = (acc0 + b1_ref[0]) * m                           # zero at invalid positions
        c1 = (acc1 + b1_ref[1]) * m
        conv1_ref[0, 0, pl.ds(row0, T), :] = c0
        conv1_ref[0, 1, pl.ds(row0, T), :] = c1
        tile_stats = jnp.concatenate(
            [jnp.sum(c0, axis=0, keepdims=True),
             jnp.sum(c0 * c0, axis=0, keepdims=True),
             jnp.sum(c1, axis=0, keepdims=True),
             jnp.sum(c1 * c1, axis=0, keepdims=True),
             jnp.zeros((4, _LANES), jnp.float32)], axis=0)
        stats_ref[0] = stats_ref[0] + tile_stats


def _bn_elu_conv2_kernel(conv1_ref, scale_ref, shift_ref, w2_ref, b2_ref, o_ref,
                         act_ref, *, even_shifts, tile_rows, n_tiles):
    """Pass 2: BN apply + ELU(1) (VMEM scratch) + conv2 + sigmoid."""
    # conv1_ref: (1, 2, R, 128) VMEM; scale/shift: (2,) SMEM; w2: (16,) SMEM;
    # b2: (1,) SMEM; o_ref: (1, R, 128) VMEM; act_ref: (2, R, 128) VMEM scratch.
    T = tile_rows
    Tw = T + _WIN_EXTRA
    R = o_ref.shape[1]
    covered = n_tiles * T
    masks = _lane_masks(even_shifts, Tw)

    for c in range(2):
        act_ref[c, pl.ds(covered, R - covered), :] = jnp.zeros(
            (R - covered, _LANES), jnp.float32)
    o_ref[0, pl.ds(covered, R - covered), :] = jnp.zeros(
        (R - covered, _LANES), jnp.float32)

    # Stage 1: BN apply + ELU(alpha=1) into VMEM scratch (never leaves VMEM).
    @pl.loop(0, n_tiles)
    def _(t):
        row0 = pl.multiple_of(t * T, _SUBLANES)
        for c in range(2):
            y = conv1_ref[0, c, pl.ds(row0, T), :] * scale_ref[c] + shift_ref[c]
            act_ref[c, pl.ds(row0, T), :] = jnp.where(y > 0.0, y, jnp.exp(y) - 1.0)

    # Stage 2: conv2 tap accumulation + sigmoid (tile accumulator in vregs).
    @pl.loop(0, n_tiles)
    def _(t):
        row0 = pl.multiple_of(t * T, _SUBLANES)
        acc = jnp.zeros((T, _LANES), jnp.float32) + b2_ref[0]
        for c in range(2):
            for si, s in enumerate(even_shifts):
                blk, s_res = divmod(s, _LANES * _SUBLANES)
                win = act_ref[c, pl.ds(row0 + blk * _SUBLANES, Tw), :]
                ae = _win_shift(win, s_res, masks)
                ao = _win_shift(ae, 1, masks)
                k = c * 8 + 2 * si
                acc = acc + ae[:T] * w2_ref[k] + ao[:T] * w2_ref[k + 1]
        # sigmoid(x) = 0.5*(tanh(x/2)+1): single EUP tanh, no VALU divide.
        o_ref[0, pl.ds(row0, T), :] = 0.5 * jnp.tanh(0.5 * acc) + 0.5


def _vmem_limit_bytes(per_step_bytes):
    """Clamp the requested scoped-VMEM limit to the actual chip capacity."""
    try:
        cap = int(pltpu.get_tpu_info().vmem_capacity_bytes)
    except Exception:                    # no TPU / emulator: assume smallest (v7x)
        cap = 64 << 20
    cap = max(cap - (12 << 20), 16 << 20)          # headroom for internal scratch
    want = 2 * per_step_bytes + (4 << 20)
    return int(min(max(want, 32 << 20), cap))


def pgen_forward(x, params, *, eps=1e-5, tile_rows=32):
    """x: (N, C, D, H, W) float32 (NCDHW, like PyTorch). Returns (N, 1, D, H, W)."""
    w1, b1, gamma, beta, w2, b2 = params
    N, C, D, H, W = x.shape
    Dp, Hp, Wp = D + 2, H + 2, W + 2          # conv1 zero-padded input dims
    D1, H1, W1 = D + 1, H + 1, W + 1          # conv1 output dims
    L = Dp * Hp * Wp
    f32 = jnp.float32

    # conv1 and conv2 share one set of flat tap offsets (same layout strides);
    # the kw=1 taps are "even tap + 1" and are derived in-kernel (tap pairing).
    even_shifts = tuple(kd * Hp * Wp + kh * Wp for kd in range(2) for kh in range(2))

    r_data = _round_up(pl.cdiv(L, _LANES), _SUBLANES)
    T = min(_round_up(tile_rows, _SUBLANES), r_data)
    n_tiles = pl.cdiv(r_data, T)
    max_blk = even_shifts[-1] // (_LANES * _SUBLANES)
    R = n_tiles * T + max_blk * _SUBLANES + _WIN_EXTRA      # rows incl. read halo
    Lp = R * _LANES
    vol = Lp * 4                                            # bytes of one slab

    x = x.astype(f32)
    xpad = jnp.pad(x, ((0, 0), (0, 0), (1, 1), (1, 1), (1, 1)))
    x_flat = jnp.pad(xpad.reshape(N, C, L), ((0, 0), (0, 0), (0, Lp - L)))
    x_flat = x_flat.reshape(N, C, R, _LANES)

    # Validity mask of conv1 output positions in flat padded coordinates.
    p = jnp.arange(Lp, dtype=jnp.int32)
    d = p // (Hp * Wp)
    h = (p % (Hp * Wp)) // Wp
    w = p % Wp
    mask = ((p < L) & (d < D1) & (h < H1) & (w < W1)).astype(f32).reshape(R, _LANES)

    w1f = w1.reshape(2, C * 8).astype(f32)
    w2f = w2.reshape(16).astype(f32)
    b1f = b1.astype(f32)
    b2f = b2.astype(f32)

    smem = pl.BlockSpec(memory_space=pltpu.MemorySpace.SMEM)

    # ---------------- pass 1: conv1 + fused BN statistics ----------------
    conv1_flat, partial = pl.pallas_call(
        functools.partial(_conv1_stats_kernel, num_in_chans=C,
                          even_shifts=even_shifts, tile_rows=T, n_tiles=n_tiles),
        grid=(N,),
        in_specs=[
            pl.BlockSpec((1, C, R, _LANES), lambda n: (n, 0, 0, 0)),
            pl.BlockSpec((R, _LANES), lambda n: (0, 0)),
            smem,   # w1
            smem,   # b1
        ],
        out_specs=(
            pl.BlockSpec((1, 2, R, _LANES), lambda n: (n, 0, 0, 0)),
            pl.BlockSpec((1, _SUBLANES, _LANES), lambda n: (n, 0, 0)),
        ),
        out_shape=(
            jax.ShapeDtypeStruct((N, 2, R, _LANES), f32),
            jax.ShapeDtypeStruct((N, _SUBLANES, _LANES), f32),
        ),
        compiler_params=pltpu.CompilerParams(
            dimension_semantics=("parallel",),
            vmem_limit_bytes=_vmem_limit_bytes((C + 3) * vol),
        ),
        cost_estimate=pl.CostEstimate(
            flops=N * Lp * (32 * C + 24),
            transcendentals=0,
            bytes_accessed=(N * (C + 2) + 1) * vol,
        ),
    )(x_flat, mask, w1f, b1f)

    # Tiny (2-channel) global reduction + BN scalar math on the host graph.
    totals = jnp.sum(partial, axis=(0, 2))                  # (8,): sum/sumsq per chan
    cnt = jnp.asarray(N * D1 * H1 * W1, f32)
    mean = jnp.stack([totals[0], totals[2]]) / cnt
    # One-pass (E[x^2] - E[x]^2) biased variance; clamp guards f32 cancellation.
    # TODO(synk): switch to Welford / two-pass for very large batch*volume counts.
    var = jnp.maximum(jnp.stack([totals[1], totals[3]]) / cnt - mean * mean, 0.0)
    inv = lax.rsqrt(var + eps)
    scale = gamma.astype(f32) * inv
    shift = beta.astype(f32) - mean * scale

    # ------------- pass 2: BN apply + ELU + conv2 + sigmoid -------------
    out_flat = pl.pallas_call(
        functools.partial(_bn_elu_conv2_kernel, even_shifts=even_shifts,
                          tile_rows=T, n_tiles=n_tiles),
        grid=(N,),
        in_specs=[
            pl.BlockSpec((1, 2, R, _LANES), lambda n: (n, 0, 0, 0)),
            smem,   # scale
            smem,   # shift
            smem,   # w2
            smem,   # b2
        ],
        out_specs=pl.BlockSpec((1, R, _LANES), lambda n: (n, 0, 0)),
        out_shape=jax.ShapeDtypeStruct((N, R, _LANES), f32),
        scratch_shapes=[pltpu.VMEM((2, R, _LANES), f32)],
        compiler_params=pltpu.CompilerParams(
            dimension_semantics=("parallel",),
            vmem_limit_bytes=_vmem_limit_bytes(5 * vol),
        ),
        cost_estimate=pl.CostEstimate(
            flops=N * Lp * 56,
            transcendentals=3 * N * Lp,
            bytes_accessed=3 * N * vol,
        ),
    )(conv1_flat, scale, shift, w2f, b2f)

    # Wrapper-side extraction of the valid region (kernel stores stay lane
    # dense / unmasked; positions >= L in out_flat are padding by design and
    # must never be consumed directly).
    out = out_flat.reshape(N, Lp)[:, :L].reshape(N, Dp, Hp, Wp)[:, :D, :H, :W]
    return out.reshape(N, 1, D, H, W)


def pgen_reference(x, params, *, eps=1e-5):
    """Pure-JAX reference matching the PyTorch forward semantics."""
    w1, b1, gamma, beta, w2, b2 = params
    dn = lax.conv_dimension_numbers(x.shape, w1.shape, ("NCDHW", "OIDHW", "NCDHW"))
    c1 = lax.conv_general_dilated(x, w1, (1, 1, 1), [(1, 1)] * 3,
                                  dimension_numbers=dn,
                                  precision=lax.Precision.HIGHEST)
    c1 = c1 + b1.reshape(1, 2, 1, 1, 1)
    mean = jnp.mean(c1, axis=(0, 2, 3, 4), keepdims=True)
    var = jnp.mean((c1 - mean) ** 2, axis=(0, 2, 3, 4), keepdims=True)
    y = (c1 - mean) * (1.0 / jnp.sqrt(var + eps))
    y = y * gamma.reshape(1, 2, 1, 1, 1) + beta.reshape(1, 2, 1, 1, 1)
    y = jnp.where(y > 0.0, y, jnp.exp(y) - 1.0)
    c2 = lax.conv_general_dilated(y, w2, (1, 1, 1), "VALID",
                                  dimension_numbers=dn,
                                  precision=lax.Precision.HIGHEST)
    c2 = c2 + b2.reshape(1, 1, 1, 1, 1)
    return 1.0 / (1.0 + jnp.exp(-c2))


if __name__ == "__main__":
    key = jax.random.PRNGKey(0)
    k = jax.random.split(key, 7)

    N, C, D, H, W = 2, 4, 8, 8, 8
    x = jax.random.normal(k[0], (N, C, D, H, W), jnp.float32)

    # Deterministic (kaiming-uniform-style) parameter init, PyTorch shapes.
    bound1 = (1.0 / (C * 2 * 2 * 2)) ** 0.5
    w1 = jax.random.uniform(k[1], (2, C, 2, 2, 2), jnp.float32, -bound1, bound1)
    b1 = jax.random.uniform(k[2], (2,), jnp.float32, -bound1, bound1)
    bound2 = (1.0 / (2 * 2 * 2 * 2)) ** 0.5
    w2 = jax.random.uniform(k[3], (1, 2, 2, 2, 2), jnp.float32, -bound2, bound2)
    b2 = jax.random.uniform(k[4], (1,), jnp.float32, -bound2, bound2)
    gamma = 1.0 + 0.1 * jax.random.normal(k[5], (2,), jnp.float32)
    beta = 0.1 * jax.random.normal(k[6], (2,), jnp.float32)
    params = (w1, b1, gamma, beta, w2, b2)

    out = jax.block_until_ready(jax.jit(pgen_forward)(x, params))
    ref = jax.block_until_ready(pgen_reference(x, params))

    assert out.shape == (N, 1, D, H, W), out.shape
    if not bool(jnp.allclose(out, ref, rtol=2e-4, atol=2e-4)):
        err = float(jnp.max(jnp.abs(out - ref)))
        raise AssertionError(f"Pallas kernel mismatch vs reference, max abs err = {err}")
    print("KERNEL_OK")
</pallas_src>

<mosaic_0001>
module attributes {stable_mosaic.version = 11 : i64} {
  func.func @_conv1_stats_kernel(%arg0: i32, %arg1: memref<1x4x24x128xf32, #tpu.memory_space<vmem>>, %arg2: memref<24x128xf32, #tpu.memory_space<vmem>>, %arg3: memref<2x32xf32, #tpu.memory_space<smem>>, %arg4: memref<2xf32, #tpu.memory_space<smem>>, %arg5: memref<1x2x24x128xf32, #tpu.memory_space<vmem>>, %arg6: memref<1x8x128xf32, #tpu.memory_space<vmem>>) attributes {dimension_semantics = [#tpu.dimension_semantics<parallel>], iteration_bounds = array<i64: 2>, scalar_prefetch = 0 : i64, scratch_operands = 0 : i64, tpu.core_type = #tpu.core_type<tc>, window_params = [{transform_indices = @transform_0, window_bounds = array<i64: 1, 4, 24, 128>}, {pipeline_mode = #tpu.pipeline_mode<synchronous>, transform_indices = @transform_1, window_bounds = array<i64: 24, 128>}, {transform_indices = @transform_2, window_bounds = array<i64: 2, 32>}, {transform_indices = @transform_3, window_bounds = array<i64: 2>}, {transform_indices = @transform_4, window_bounds = array<i64: 1, 2, 24, 128>}, {transform_indices = @transform_5, window_bounds = array<i64: 1, 8, 128>}]} {
    %0 = tpu.iota {dimensions = array<i32: 1>} : vector<24x128xi32>
    %c127_i32 = arith.constant 127 : i32
    %1 = vector.broadcast %c127_i32 : i32 to vector<24x128xi32>
    %2 = arith.cmpi slt, %0, %1 : vector<24x128xi32>
    %c118_i32 = arith.constant 118 : i32
    %3 = vector.broadcast %c118_i32 : i32 to vector<24x128xi32>
    %4 = arith.cmpi slt, %0, %3 : vector<24x128xi32>
    %c28_i32 = arith.constant 28 : i32
    %5 = vector.broadcast %c28_i32 : i32 to vector<24x128xi32>
    %6 = arith.cmpi slt, %0, %5 : vector<24x128xi32>
    %c18_i32 = arith.constant 18 : i32
    %7 = vector.broadcast %c18_i32 : i32 to vector<24x128xi32>
    %8 = arith.cmpi slt, %0, %7 : vector<24x128xi32>
    %cst = arith.constant 0.000000e+00 : f32
    %9 = vector.broadcast %cst : f32 to vector<8x128xf32>
    %c0 = arith.constant 0 : index
    %c0_0 = arith.constant 0 : index
    %c0_1 = arith.constant 0 : index
    %10 = vector.load %arg6[%c0, %c0_0, %c0_1] : memref<1x8x128xf32, #tpu.memory_space<vmem>>, vector<1x8x128xf32>
    %11 = vector.shape_cast %10 : vector<1x8x128xf32> to vector<8x128xf32>
    %12 = vector.shape_cast %9 : vector<8x128xf32> to vector<1x8x128xf32>
    tpu.vector_store %arg6[%c0, %c0_0, %c0_1], %12 {strides = array<i32>} : memref<1x8x128xf32, #tpu.memory_space<vmem>>, vector<1x8x128xf32>,
    %cst_2 = arith.constant 0.000000e+00 : f32
    %13 = vector.broadcast %cst_2 : f32 to vector<16x128xf32>
    %c0_3 = arith.constant 0 : index
    %c0_4 = arith.constant 0 : index
    %c8 = arith.constant 8 : index
    %c0_5 = arith.constant 0 : index
    %14 = vector.load %arg5[%c0_3, %c0_4, %c8, %c0_5] : memref<1x2x24x128xf32, #tpu.memory_space<vmem>>, vector<1x1x16x128xf32>
    %15 = vector.shape_cast %14 : vector<1x1x16x128xf32> to vector<16x128xf32>
    %16 = vector.shape_cast %13 : vector<16x128xf32> to vector<1x1x16x128xf32>
    tpu.vector_store %arg5[%c0_3, %c0_4, %c8, %c0_5], %16 {strides = array<i32>} : memref<1x2x24x128xf32, #tpu.memory_space<vmem>>, vector<1x1x16x128xf32>,
    %cst_6 = arith.constant 0.000000e+00 : f32
    %17 = vector.broadcast %cst_6 : f32 to vector<16x128xf32>
    %c0_7 = arith.constant 0 : index
    %c1 = arith.constant 1 : index
    %c8_8 = arith.constant 8 : index
    %c0_9 = arith.constant 0 : index
    %18 = vector.load %arg5[%c0_7, %c1, %c8_8, %c0_9] : memref<1x2x24x128xf32, #tpu.memory_space<vmem>>, vector<1x1x16x128xf32>
    %19 = vector.shape_cast %18 : vector<1x1x16x128xf32> to vector<16x128xf32>
    %20 = vector.shape_cast %17 : vector<16x128xf32> to vector<1x1x16x128xf32>
    tpu.vector_store %arg5[%c0_7, %c1, %c8_8, %c0_9], %20 {strides = array<i32>} : memref<1x2x24x128xf32, #tpu.memory_space<vmem>>, vector<1x1x16x128xf32>,
    %c0_i32 = arith.constant 0 : i32
    %c1_i32 = arith.constant 1 : i32
    %21 = arith.muli %c0_i32, %c1_i32 : i32
    %c0_i32_10 = arith.constant 0 : i32
    %22 = arith.addi %c0_i32_10, %21 : i32
    %c8_i32 = arith.constant 8 : i32
    %23 = arith.muli %22, %c8_i32 : i32
    %24 = tpu.assume_multiple %23, 8 : i32
    %cst_11 = arith.constant 0.000000e+00 : f32
    %25 = vector.broadcast %cst_11 : f32 to vector<8x128xf32>
    %cst_12 = arith.constant 0.000000e+00 : f32
    %26 = vector.broadcast %cst_12 : f32 to vector<8x128xf32>
    %c0_i32_13 = arith.constant 0 : i32
    %27 = arith.addi %24, %c0_i32_13 : i32
    %c0_14 = arith.constant 0 : index
    %c0_15 = arith.constant 0 : index
    %28 = arith.index_cast %27 : i32 to index
    %c0_16 = arith.constant 0 : index
    %29 = vector.load %arg1[%c0_14, %c0_15, %28, %c0_16] : memref<1x4x24x128xf32, #tpu.memory_space<vmem>>, vector<1x1x24x128xf32>
    %30 = vector.shape_cast %29 : vector<1x1x24x128xf32> to vector<24x128xf32>
    %c127_i32_17 = arith.constant 127 : i32
    %31 = tpu.dynamic_rotate %30 by %c127_i32_17 dim 1 : vector<24x128xf32>, i32 -> vector<24x128xf32>
    %c23_i32 = arith.constant 23 : i32
    %32 = tpu.dynamic_rotate %31 by %c23_i32 dim 0 : vector<24x128xf32>, i32 -> vector<24x128xf32>
    %33 = arith.select %2, %31, %32 : vector<24x128xi1>, vector<24x128xf32>
    %34 = vector.extract_strided_slice %30 {offsets = [0, 0], sizes = [8, 128], strides = [1, 1]} : vector<24x128xf32> to vector<8x128xf32>
    %35 = vector.extract_strided_slice %33 {offsets = [0, 0], sizes = [8, 128], strides = [1, 1]} : vector<24x128xf32> to vector<8x128xf32>
    %c0_18 = arith.constant 0 : index
    %c0_19 = arith.constant 0 : index
    %36 = memref.load %arg3[%c0_18, %c0_19] : memref<2x32xf32, #tpu.memory_space<smem>>
    %37 = vector.broadcast %36 : f32 to vector<8x128xf32>
    %38 = arith.mulf %34, %37 : vector<8x128xf32>
    %39 = arith.addf %25, %38 : vector<8x128xf32>
    %c0_20 = arith.constant 0 : index
    %c1_21 = arith.constant 1 : index
    %40 = memref.load %arg3[%c0_20, %c1_21] : memref<2x32xf32, #tpu.memory_space<smem>>
    %41 = vector.broadcast %40 : f32 to vector<8x128xf32>
    %42 = arith.mulf %35, %41 : vector<8x128xf32>
    %43 = arith.addf %39, %42 : vector<8x128xf32>
    %c1_22 = arith.constant 1 : index
    %c0_23 = arith.constant 0 : index
    %44 = memref.load %arg3[%c1_22, %c0_23] : memref<2x32xf32, #tpu.memory_space<smem>>
    %45 = vector.broadcast %44 : f32 to vector<8x128xf32>
    %46 = arith.mulf %34, %45 : vector<8x128xf32>
    %47 = arith.addf %26, %46 : vector<8x128xf32>
    %c1_24 = arith.constant 1 : index
    %c1_25 = arith.constant 1 : index
    %48 = memref.load %arg3[%c1_24, %c1_25] : memref<2x32xf32, #tpu.memory_space<smem>>
    %49 = vector.broadcast %48 : f32 to vector<8x128xf32>
    %50 = arith.mulf %35, %49 : vector<8x128xf32>
    %51 = arith.addf %47, %50 : vector<8x128xf32>
    %c0_i32_26 = arith.constant 0 : i32
    %52 = arith.addi %24, %c0_i32_26 : i32
    %c0_27 = arith.constant 0 : index
    %c0_28 = arith.constant 0 : index
    %53 = arith.index_cast %52 : i32 to index
    %c0_29 = arith.constant 0 : index
    %54 = vector.load %arg1[%c0_27, %c0_28, %53, %c0_29] : memref<1x4x24x128xf32, #tpu.memory_space<vmem>>, vector<1x1x24x128xf32>
    %55 = vector.shape_cast %54 : vector<1x1x24x128xf32> to vector<24x128xf32>
    %c118_i32_30 = arith.constant 118 : i32
    %56 = tpu.dynamic_rotate %55 by %c118_i32_30 dim 1 : vector<24x128xf32>, i32 -> vector<24x128xf32>
    %c23_i32_31 = arith.constant 23 : i32
    %57 = tpu.dynamic_rotate %56 by %c23_i32_31 dim 0 : vector<24x128xf32>, i32 -> vector<24x128xf32>
    %58 = arith.select %4, %56, %57 : vector<24x128xi1>, vector<24x128xf32>
    %c127_i32_32 = arith.constant 127 : i32
    %59 = tpu.dynamic_rotate %58 by %c127_i32_32 dim 1 : vector<24x128xf32>, i32 -> vector<24x128xf32>
    %c23_i32_33 = arith.constant 23 : i32
    %60 = tpu.dynamic_rotate %59 by %c23_i32_33 dim 0 : vector<24x128xf32>, i32 -> vector<24x128xf32>
    %61 = arith.select %2, %59, %60 : vector<24x128xi1>, vector<24x128xf32>
    %62 = vector.extract_strided_slice %58 {offsets = [0, 0], sizes = [8, 128], strides = [1, 1]} : vector<24x128xf32> to vector<8x128xf32>
    %63 = vector.extract_strided_slice %61 {offsets = [0, 0], sizes = [8, 128], strides = [1, 1]} : vector<24x128xf32> to vector<8x128xf32>
    %c0_34 = arith.constant 0 : index
    %c2 = arith.constant 2 : index
    %64 = memref.load %arg3[%c0_34, %c2] : memref<2x32xf32, #tpu.memory_space<smem>>
    %65 = vector.broadcast %64 : f32 to vector<8x128xf32>
    %66 = arith.mulf %62, %65 : vector<8x128xf32>
    %67 = arith.addf %43, %66 : vector<8x128xf32>
    %c0_35 = arith.constant 0 : index
    %c3 = arith.constant 3 : index
    %68 = memref.load %arg3[%c0_35, %c3] : memref<2x32xf32, #tpu.memory_space<smem>>
    %69 = vector.broadcast %68 : f32 to vector<8x128xf32>
    %70 = arith.mulf %63, %69 : vector<8x128xf32>
    %71 = arith.addf %67, %70 : vector<8x128xf32>
    %c1_36 = arith.constant 1 : index
    %c2_37 = arith.constant 2 : index
    %72 = memref.load %arg3[%c1_36, %c2_37] : memref<2x32xf32, #tpu.memory_space<smem>>
    %73 = vector.broadcast %72 : f32 to vector<8x128xf32>
    %74 = arith.mulf %62, %73 : vector<8x128xf32>
    %75 = arith.addf %51, %74 : vector<8x128xf32>
    %c1_38 = arith.constant 1 : index
    %c3_39 = arith.constant 3 : index
    %76 = memref.load %arg3[%c1_38, %c3_39] : memref<2x32xf32, #tpu.memory_space<smem>>
    %77 = vector.broadcast %76 : f32 to vector<8x128xf32>
    %78 = arith.mulf %63, %77 : vector<8x128xf32>
    %79 = arith.addf %75, %78 : vector<8x128xf32>
    %c0_i32_40 = arith.constant 0 : i32
    %80 = arith.addi %24, %c0_i32_40 : i32
    %c0_41 = arith.constant 0 : index
    %c0_42 = arith.constant 0 : index
    %81 = arith.index_cast %80 : i32 to index
    %c0_43 = arith.constant 0 : index
    %82 = vector.load %arg1[%c0_41, %c0_42, %81, %c0_43] : memref<1x4x24x128xf32, #tpu.memory_space<vmem>>, vector<1x1x24x128xf32>
    %83 = vector.shape_cast %82 : vector<1x1x24x128xf32> to vector<24x128xf32>
    %c28_i32_44 = arith.constant 28 : i32
    %84 = tpu.dynamic_rotate %83 by %c28_i32_44 dim 1 : vector<24x128xf32>, i32 -> vector<24x128xf32>
    %c23_i32_45 = arith.constant 23 : i32
    %85 = tpu.dynamic_rotate %84 by %c23_i32_45 dim 0 : vector<24x128xf32>, i32 -> vector<24x128xf32>
    %86 = arith.select %6, %84, %85 : vector<24x128xi1>, vector<24x128xf32>
    %c127_i32_46 = arith.constant 127 : i32
    %87 = tpu.dynamic_rotate %86 by %c127_i32_46 dim 1 : vector<24x128xf32>, i32 -> vector<24x128xf32>
    %c23_i32_47 = arith.constant 23 : i32
    %88 = tpu.dynamic_rotate %87 by %c23_i32_47 dim 0 : vector<24x128xf32>, i32 -> vector<24x128xf32>
    %89 = arith.select %2, %87, %88 : vector<24x128xi1>, vector<24x128xf32>
    %90 = vector.extract_strided_slice %86 {offsets = [0, 0], sizes = [8, 128], strides = [1, 1]} : vector<24x128xf32> to vector<8x128xf32>
    %91 = vector.extract_strided_slice %89 {offsets = [0, 0], sizes = [8, 128], strides = [1, 1]} : vector<24x128xf32> to vector<8x128xf32>
    %c0_48 = arith.constant 0 : index
    %c4 = arith.constant 4 : index
    %92 = memref.load %arg3[%c0_48, %c4] : memref<2x32xf32, #tpu.memory_space<smem>>
    %93 = vector.broadcast %92 : f32 to vector<8x128xf32>
    %94 = arith.mulf %90, %93 : vector<8x128xf32>
    %95 = arith.addf %71, %94 : vector<8x128xf32>
    %c0_49 = arith.constant 0 : index
    %c5 = arith.constant 5 : index
    %96 = memref.load %arg3[%c0_49, %c5] : memref<2x32xf32, #tpu.memory_space<smem>>
    %97 = vector.broadcast %96 : f32 to vector<8x128xf32>
    %98 = arith.mulf %91, %97 : vector<8x128xf32>
    %99 = arith.addf %95, %98 : vector<8x128xf32>
    %c1_50 = arith.constant 1 : index
    %c4_51 = arith.constant 4 : index
    %100 = memref.load %arg3[%c1_50, %c4_51] : memref<2x32xf32, #tpu.memory_space<smem>>
    %101 = vector.broadcast %100 : f32 to vector<8x128xf32>
    %102 = arith.mulf %90, %101 : vector<8x128xf32>
    %103 = arith.addf %79, %102 : vector<8x128xf32>
    %c1_52 = arith.constant 1 : index
    %c5_53 = arith.constant 5 : index
    %104 = memref.load %arg3[%c1_52, %c5_53] : memref<2x32xf32, #tpu.memory_space<smem>>
    %105 = vector.broadcast %104 : f32 to vector<8x128xf32>
    %106 = arith.mulf %91, %105 : vector<8x128xf32>
    %107 = arith.addf %103, %106 : vector<8x128xf32>
    %c0_i32_54 = arith.constant 0 : i32
    %108 = arith.addi %24, %c0_i32_54 : i32
    %c0_55 = arith.constant 0 : index
    %c0_56 = arith.constant 0 : index
    %109 = arith.index_cast %108 : i32 to index
    %c0_57 = arith.constant 0 : index
    %110 = vector.load %arg1[%c0_55, %c0_56, %109, %c0_57] : memref<1x4x24x128xf32, #tpu.memory_space<vmem>>, vector<1x1x24x128xf32>
    %111 = vector.shape_cast %110 : vector<1x1x24x128xf32> to vector<24x128xf32>
    %c18_i32_58 = arith.constant 18 : i32
    %112 = tpu.dynamic_rotate %111 by %c18_i32_58 dim 1 : vector<24x128xf32>, i32 -> vector<24x128xf32>
    %c23_i32_59 = arith.constant 23 : i32
    %113 = tpu.dynamic_rotate %112 by %c23_i32_59 dim 0 : vector<24x128xf32>, i32 -> vector<24x128xf32>
    %114 = arith.select %8, %112, %113 : vector<24x128xi1>, vector<24x128xf32>
    %c127_i32_60 = arith.constant 127 : i32
    %115 = tpu.dynamic_rotate %114 by %c127_i32_60 dim 1 : vector<24x128xf32>, i32 -> vector<24x128xf32>
    %c23_i32_61 = arith.constant 23 : i32
    %116 = tpu.dynamic_rotate %115 by %c23_i32_61 dim 0 : vector<24x128xf32>, i32 -> vector<24x128xf32>
    %117 = arith.select %2, %115, %116 : vector<24x128xi1>, vector<24x128xf32>
    %118 = vector.extract_strided_slice %114 {offsets = [0, 0], sizes = [8, 128], strides = [1, 1]} : vector<24x128xf32> to vector<8x128xf32>
    %119 = vector.extract_strided_slice %117 {offsets = [0, 0], sizes = [8, 128], strides = [1, 1]} : vector<24x128xf32> to vector<8x128xf32>
    %c0_62 = arith.constant 0 : index
    %c6 = arith.constant 6 : index
    %120 = memref.load %arg3[%c0_62, %c6] : memref<2x32xf32, #tpu.memory_space<smem>>
    %121 = vector.broadcast %120 : f32 to vector<8x128xf32>
    %122 = arith.mulf %118, %121 : vector<8x128xf32>
    %123 = arith.addf %99, %122 : vector<8x128xf32>
    %c0_63 = arith.constant 0 : index
    %c7 = arith.constant 7 : index
    %124 = memref.load %arg3[%c0_63, %c7] : memref<2x32xf32, #tpu.memory_space<smem>>
    %125 = vector.broadcast %124 : f32 to vector<8x128xf32>
    %126 = arith.mulf %119, %125 : vector<8x128xf32>
    %127 = arith.addf %123, %126 : vector<8x128xf32>
    %c1_64 = arith.constant 1 : index
    %c6_65 = arith.constant 6 : index
    %128 = memref.load %arg3[%c1_64, %c6_65] : memref<2x32xf32, #tpu.memory_space<smem>>
    %129 = vector.broadcast %128 : f32 to vector<8x128xf32>
    %130 = arith.mulf %118, %129 : vector<8x128xf32>
    %131 = arith.addf %107, %130 : vector<8x128xf32>
    %c1_66 = arith.constant 1 : index
    %c7_67 = arith.constant 7 : index
    %132 = memref.load %arg3[%c1_66, %c7_67] : memref<2x32xf32, #tpu.memory_space<smem>>
    %133 = vector.broadcast %132 : f32 to vector<8x128xf32>
    %134 = arith.mulf %119, %133 : vector<8x128xf32>
    %135 = arith.addf %131, %134 : vector<8x128xf32>
    %c0_i32_68 = arith.constant 0 : i32
    %136 = arith.addi %24, %c0_i32_68 : i32
    %c0_69 = arith.constant 0 : index
    %c1_70 = arith.constant 1 : index
    %137 = arith.index_cast %136 : i32 to index
    %c0_71 = arith.constant 0 : index
    %138 = vector.load %arg1[%c0_69, %c1_70, %137, %c0_71] : memref<1x4x24x128xf32, #tpu.memory_space<vmem>>, vector<1x1x24x128xf32>
    %139 = vector.shape_cast %138 : vector<1x1x24x128xf32> to vector<24x128xf32>
    %c127_i32_72 = arith.constant 127 : i32
    %140 = tpu.dynamic_rotate %139 by %c127_i32_72 dim 1 : vector<24x128xf32>, i32 -> vector<24x128xf32>
    %c23_i32_73 = arith.constant 23 : i32
    %141 = tpu.dynamic_rotate %140 by %c23_i32_73 dim 0 : vector<24x128xf32>, i32 -> vector<24x128xf32>
    %142 = arith.select %2, %140, %141 : vector<24x128xi1>, vector<24x128xf32>
    %143 = vector.extract_strided_slice %139 {offsets = [0, 0], sizes = [8, 128], strides = [1, 1]} : vector<24x128xf32> to vector<8x128xf32>
    %144 = vector.extract_strided_slice %142 {offsets = [0, 0], sizes = [8, 128], strides = [1, 1]} : vector<24x128xf32> to vector<8x128xf32>
    %c0_74 = arith.constant 0 : index
    %c8_75 = arith.constant 8 : index
    %145 = memref.load %arg3[%c0_74, %c8_75] : memref<2x32xf32, #tpu.memory_space<smem>>
    %146 = vector.broadcast %145 : f32 to vector<8x128xf32>
    %147 = arith.mulf %143, %146 : vector<8x128xf32>
    %148 = arith.addf %127, %147 : vector<8x128xf32>
    %c0_76 = arith.constant 0 : index
    %c9 = arith.constant 9 : index
    %149 = memref.load %arg3[%c0_76, %c9] : memref<2x32xf32, #tpu.memory_space<smem>>
    %150 = vector.broadcast %149 : f32 to vector<8x128xf32>
    %151 = arith.mulf %144, %150 : vector<8x128xf32>
    %152 = arith.addf %148, %151 : vector<8x128xf32>
    %c1_77 = arith.constant 1 : index
    %c8_78 = arith.constant 8 : index
    %153 = memref.load %arg3[%c1_77, %c8_78] : memref<2x32xf32, #tpu.memory_space<smem>>
    %154 = vector.broadcast %153 : f32 to vector<8x128xf32>
    %155 = arith.mulf %143, %154 : vector<8x128xf32>
    %156 = arith.addf %135, %155 : vector<8x128xf32>
    %c1_79 = arith.constant 1 : index
    %c9_80 = arith.constant 9 : index
    %157 = memref.load %arg3[%c1_79, %c9_80] : memref<2x32xf32, #tpu.memory_space<smem>>
    %158 = vector.broadcast %157 : f32 to vector<8x128xf32>
    %159 = arith.mulf %144, %158 : vector<8x128xf32>
    %160 = arith.addf %156, %159 : vector<8x128xf32>
    %c0_i32_81 = arith.constant 0 : i32
    %161 = arith.addi %24, %c0_i32_81 : i32
    %c0_82 = arith.constant 0 : index
    %c1_83 = arith.constant 1 : index
    %162 = arith.index_cast %161 : i32 to index
    %c0_84 = arith.constant 0 : index
    %163 = vector.load %arg1[%c0_82, %c1_83, %162, %c0_84] : memref<1x4x24x128xf32, #tpu.memory_space<vmem>>, vector<1x1x24x128xf32>
    %164 = vector.shape_cast %163 : vector<1x1x24x128xf32> to vector<24x128xf32>
    %c118_i32_85 = arith.constant 118 : i32
    %165 = tpu.dynamic_rotate %164 by %c118_i32_85 dim 1 : vector<24x128xf32>, i32 -> vector<24x128xf32>
    %c23_i32_86 = arith.constant 23 : i32
    %166 = tpu.dynamic_rotate %165 by %c23_i32_86 dim 0 : vector<24x128xf32>, i32 -> vector<24x128xf32>
    %167 = arith.select %4, %165, %166 : vector<24x128xi1>, vector<24x128xf32>
    %c127_i32_87 = arith.constant 127 : i32
    %168 = tpu.dynamic_rotate %167 by %c127_i32_87 dim 1 : vector<24x128xf32>, i32 -> vector<24x128xf32>
    %c23_i32_88 = arith.constant 23 : i32
    %169 = tpu.dynamic_rotate %168 by %c23_i32_88 dim 0 : vector<24x128xf32>, i32 -> vector<24x128xf32>
    %170 = arith.select %2, %168, %169 : vector<24x128xi1>, vector<24x128xf32>
    %171 = vector.extract_strided_slice %167 {offsets = [0, 0], sizes = [8, 128], strides = [1, 1]} : vector<24x128xf32> to vector<8x128xf32>
    %172 = vector.extract_strided_slice %170 {offsets = [0, 0], sizes = [8, 128], strides = [1, 1]} : vector<24x128xf32> to vector<8x128xf32>
    %c0_89 = arith.constant 0 : index
    %c10 = arith.constant 10 : index
    %173 = memref.load %arg3[%c0_89, %c10] : memref<2x32xf32, #tpu.memory_space<smem>>
    %174 = vector.broadcast %173 : f32 to vector<8x128xf32>
    %175 = arith.mulf %171, %174 : vector<8x128xf32>
    %176 = arith.addf %152, %175 : vector<8x128xf32>
    %c0_90 = arith.constant 0 : index
    %c11 = arith.constant 11 : index
    %177 = memref.load %arg3[%c0_90, %c11] : memref<2x32xf32, #tpu.memory_space<smem>>
    %178 = vector.broadcast %177 : f32 to vector<8x128xf32>
    %179 = arith.mulf %172, %178 : vector<8x128xf32>
    %180 = arith.addf %176, %179 : vector<8x128xf32>
    %c1_91 = arith.constant 1 : index
    %c10_92 = arith.constant 10 : index
    %181 = memref.load %arg3[%c1_91, %c10_92] : memref<2x32xf32, #tpu.memory_space<smem>>
    %182 = vector.broadcast %181 : f32 to vector<8x128xf32>
    %183 = arith.mulf %171, %182 : vector<8x128xf32>
    %184 = arith.addf %160, %183 : vector<8x128xf32>
    %c1_93 = arith.constant 1 : index
    %c11_94 = arith.constant 11 : index
    %185 = memref.load %arg3[%c1_93, %c11_94] : memref<2x32xf32, #tpu.memory_space<smem>>
    %186 = vector.broadcast %185 : f32 to vector<8x128xf32>
    %187 = arith.mulf %172, %186 : vector<8x128xf32>
    %188 = arith.addf %184, %187 : vector<8x128xf32>
    %c0_i32_95 = arith.constant 0 : i32
    %189 = arith.addi %24, %c0_i32_95 : i32
    %c0_96 = arith.constant 0 : index
    %c1_97 = arith.constant 1 : index
    %190 = arith.index_cast %189 : i32 to index
    %c0_98 = arith.constant 0 : index
    %191 = vector.load %arg1[%c0_96, %c1_97, %190, %c0_98] : memref<1x4x24x128xf32, #tpu.memory_space<vmem>>, vector<1x1x24x128xf32>
    %192 = vector.shape_cast %191 : vector<1x1x24x128xf32> to vector<24x128xf32>
    %c28_i32_99 = arith.constant 28 : i32
    %193 = tpu.dynamic_rotate %192 by %c28_i32_99 dim 1 : vector<24x128xf32>, i32 -> vector<24x128xf32>
    %c23_i32_100 = arith.constant 23 : i32
    %194 = tpu.dynamic_rotate %193 by %c23_i32_100 dim 0 : vector<24x128xf32>, i32 -> vector<24x128xf32>
    %195 = arith.select %6, %193, %194 : vector<24x128xi1>, vector<24x128xf32>
    %c127_i32_101 = arith.constant 127 : i32
    %196 = tpu.dynamic_rotate %195 by %c127_i32_101 dim 1 : vector<24x128xf32>, i32 -> vector<24x128xf32>
    %c23_i32_102 = arith.constant 23 : i32
    %197 = tpu.dynamic_rotate %196 by %c23_i32_102 dim 0 : vector<24x128xf32>, i32 -> vector<24x128xf32>
    %198 = arith.select %2, %196, %197 : vector<24x128xi1>, vector<24x128xf32>
    %199 = vector.extract_strided_slice %195 {offsets = [0, 0], sizes = [8, 128], strides = [1, 1]} : vector<24x128xf32> to vector<8x128xf32>
    %200 = vector.extract_strided_slice %198 {offsets = [0, 0], sizes = [8, 128], strides = [1, 1]} : vector<24x128xf32> to vector<8x128xf32>
    %c0_103 = arith.constant 0 : index
    %c12 = arith.constant 12 : index
    %201 = memref.load %arg3[%c0_103, %c12] : memref<2x32xf32, #tpu.memory_space<smem>>
    %202 = vector.broadcast %201 : f32 to vector<8x128xf32>
    %203 = arith.mulf %199, %202 : vector<8x128xf32>
    %204 = arith.addf %180, %203 : vector<8x128xf32>
    %c0_104 = arith.constant 0 : index
    %c13 = arith.constant 13 : index
    %205 = memref.load %arg3[%c0_104, %c13] : memref<2x32xf32, #tpu.memory_space<smem>>
    %206 = vector.broadcast %205 : f32 to vector<8x128xf32>
    %207 = arith.mulf %200, %206 : vector<8x128xf32>
    %208 = arith.addf %204, %207 : vector<8x128xf32>
    %c1_105 = arith.constant 1 : index
    %c12_106 = arith.constant 12 : index
    %209 = memref.load %arg3[%c1_105, %c12_106] : memref<2x32xf32, #tpu.memory_space<smem>>
    %210 = vector.broadcast %209 : f32 to vector<8x128xf32>
    %211 = arith.mulf %199, %210 : vector<8x128xf32>
    %212 = arith.addf %188, %211 : vector<8x128xf32>
    %c1_107 = arith.constant 1 : index
    %c13_108 = arith.constant 13 : index
    %213 = memref.load %arg3[%c1_107, %c13_108] : memref<2x32xf32, #tpu.memory_space<smem>>
    %214 = vector.broadcast %213 : f32 to vector<8x128xf32>
    %215 = arith.mulf %200, %214 : vector<8x128xf32>
    %216 = arith.addf %212, %215 : vector<8x128xf32>
    %c0_i32_109 = arith.constant 0 : i32
    %217 = arith.addi %24, %c0_i32_109 : i32
    %c0_110 = arith.constant 0 : index
    %c1_111 = arith.constant 1 : index
    %218 = arith.index_cast %217 : i32 to index
    %c0_112 = arith.constant 0 : index
    %219 = vector.load %arg1[%c0_110, %c1_111, %218, %c0_112] : memref<1x4x24x128xf32, #tpu.memory_space<vmem>>, vector<1x1x24x128xf32>
    %220 = vector.shape_cast %219 : vector<1x1x24x128xf32> to vector<24x128xf32>
    %c18_i32_113 = arith.constant 18 : i32
    %221 = tpu.dynamic_rotate %220 by %c18_i32_113 dim 1 : vector<24x128xf32>, i32 -> vector<24x128xf32>
    %c23_i32_114 = arith.constant 23 : i32
    %222 = tpu.dynamic_rotate %221 by %c23_i32_114 dim 0 : vector<24x128xf32>, i32 -> vector<24x128xf32>
    %223 = arith.select %8, %221, %222 : vector<24x128xi1>, vector<24x128xf32>
    %c127_i32_115 = arith.constant 127 : i32
    %224 = tpu.dynamic_rotate %223 by %c127_i32_115 dim 1 : vector<24x128xf32>, i32 -> vector<24x128xf32>
    %c23_i32_116 = arith.constant 23 : i32
    %225 = tpu.dynamic_rotate %224 by %c23_i32_116 dim 0 : vector<24x128xf32>, i32 -> vector<24x128xf32>
    %226 = arith.select %2, %224, %225 : vector<24x128xi1>, vector<24x128xf32>
    %227 = vector.extract_strided_slice %223 {offsets = [0, 0], sizes = [8, 128], strides = [1, 1]} : vector<24x128xf32> to vector<8x128xf32>
    %228 = vector.extract_strided_slice %226 {offsets = [0, 0], sizes = [8, 128], strides = [1, 1]} : vector<24x128xf32> to vector<8x128xf32>
    %c0_117 = arith.constant 0 : index
    %c14 = arith.constant 14 : index
    %229 = memref.load %arg3[%c0_117, %c14] : memref<2x32xf32, #tpu.memory_space<smem>>
    %230 = vector.broadcast %229 : f32 to vector<8x128xf32>
    %231 = arith.mulf %227, %230 : vector<8x128xf32>
    %232 = arith.addf %208, %231 : vector<8x128xf32>
    %c0_118 = arith.constant 0 : index
    %c15 = arith.constant 15 : index
    %233 = memref.load %arg3[%c0_118, %c15] : memref<2x32xf32, #tpu.memory_space<smem>>
    %234 = vector.broadcast %233 : f32 to vector<8x128xf32>
    %235 = arith.mulf %228, %234 : vector<8x128xf32>
    %236 = arith.addf %232, %235 : vector<8x128xf32>
    %c1_119 = arith.constant 1 : index
    %c14_120 = arith.constant 14 : index
    %237 = memref.load %arg3[%c1_119, %c14_120] : memref<2x32xf32, #tpu.memory_space<smem>>
    %238 = vector.broadcast %237 : f32 to vector<8x128xf32>
    %239 = arith.mulf %227, %238 : vector<8x128xf32>
    %240 = arith.addf %216, %239 : vector<8x128xf32>
    %c1_121 = arith.constant 1 : index
    %c15_122 = arith.constant 15 : index
    %241 = memref.load %arg3[%c1_121, %c15_122] : memref<2x32xf32, #tpu.memory_space<smem>>
    %242 = vector.broadcast %241 : f32 to vector<8x128xf32>
    %243 = arith.mulf %228, %242 : vector<8x128xf32>
    %244 = arith.addf %240, %243 : vector<8x128xf32>
    %c0_i32_123 = arith.constant 0 : i32
    %245 = arith.addi %24, %c0_i32_123 : i32
    %c0_124 = arith.constant 0 : index
    %c2_125 = arith.constant 2 : index
    %246 = arith.index_cast %245 : i32 to index
    %c0_126 = arith.constant 0 : index
    %247 = vector.load %arg1[%c0_124, %c2_125, %246, %c0_126] : memref<1x4x24x128xf32, #tpu.memory_space<vmem>>, vector<1x1x24x128xf32>
    %248 = vector.shape_cast %247 : vector<1x1x24x128xf32> to vector<24x128xf32>
    %c127_i32_127 = arith.constant 127 : i32
    %249 = tpu.dynamic_rotate %248 by %c127_i32_127 dim 1 : vector<24x128xf32>, i32 -> vector<24x128xf32>
    %c23_i32_128 = arith.constant 23 : i32
    %250 = tpu.dynamic_rotate %249 by %c23_i32_128 dim 0 : vector<24x128xf32>, i32 -> vector<24x128xf32>
    %251 = arith.select %2, %249, %250 : vector<24x128xi1>, vector<24x128xf32>
    %252 = vector.extract_strided_slice %248 {offsets = [0, 0], sizes = [8, 128], strides = [1, 1]} : vector<24x128xf32> to vector<8x128xf32>
    %253 = vector.extract_strided_slice %251 {offsets = [0, 0], sizes = [8, 128], strides = [1, 1]} : vector<24x128xf32> to vector<8x128xf32>
    %c0_129 = arith.constant 0 : index
    %c16 = arith.constant 16 : index
    %254 = memref.load %arg3[%c0_129, %c16] : memref<2x32xf32, #tpu.memory_space<smem>>
    %255 = vector.broadcast %254 : f32 to vector<8x128xf32>
    %256 = arith.mulf %252, %255 : vector<8x128xf32>
    %257 = arith.addf %236, %256 : vector<8x128xf32>
    %c0_130 = arith.constant 0 : index
    %c17 = arith.constant 17 : index
    %258 = memref.load %arg3[%c0_130, %c17] : memref<2x32xf32, #tpu.memory_space<smem>>
    %259 = vector.broadcast %258 : f32 to vector<8x128xf32>
    %260 = arith.mulf %253, %259 : vector<8x128xf32>
    %261 = arith.addf %257, %260 : vector<8x128xf32>
    %c1_131 = arith.constant 1 : index
    %c16_132 = arith.constant 16 : index
    %262 = memref.load %arg3[%c1_131, %c16_132] : memref<2x32xf32, #tpu.memory_space<smem>>
    %263 = vector.broadcast %262 : f32 to vector<8x128xf32>
    %264 = arith.mulf %252, %263 : vector<8x128xf32>
    %265 = arith.addf %244, %264 : vector<8x128xf32>
    %c1_133 = arith.constant 1 : index
    %c17_134 = arith.constant 17 : index
    %266 = memref.load %arg3[%c1_133, %c17_134] : memref<2x32xf32, #tpu.memory_space<smem>>
    %267 = vector.broadcast %266 : f32 to vector<8x128xf32>
    %268 = arith.mulf %253, %267 : vector<8x128xf32>
    %269 = arith.addf %265, %268 : vector<8x128xf32>
    %c0_i32_135 = arith.constant 0 : i32
    %270 = arith.addi %24, %c0_i32_135 : i32
    %c0_136 = arith.constant 0 : index
    %c2_137 = arith.constant 2 : index
    %271 = arith.index_cast %270 : i32 to index
    %c0_138 = arith.constant 0 : index
    %272 = vector.load %arg1[%c0_136, %c2_137, %271, %c0_138] : memref<1x4x24x128xf32, #tpu.memory_space<vmem>>, vector<1x1x24x128xf32>
    %273 = vector.shape_cast %272 : vector<1x1x24x128xf32> to vector<24x128xf32>
    %c118_i32_139 = arith.constant 118 : i32
    %274 = tpu.dynamic_rotate %273 by %c118_i32_139 dim 1 : vector<24x128xf32>, i32 -> vector<24x128xf32>
    %c23_i32_140 = arith.constant 23 : i32
    %275 = tpu.dynamic_rotate %274 by %c23_i32_140 dim 0 : vector<24x128xf32>, i32 -> vector<24x128xf32>
    %276 = arith.select %4, %274, %275 : vector<24x128xi1>, vector<24x128xf32>
    %c127_i32_141 = arith.constant 127 : i32
    %277 = tpu.dynamic_rotate %276 by %c127_i32_141 dim 1 : vector<24x128xf32>, i32 -> vector<24x128xf32>
    %c23_i32_142 = arith.constant 23 : i32
    %278 = tpu.dynamic_rotate %277 by %c23_i32_142 dim 0 : vector<24x128xf32>, i32 -> vector<24x128xf32>
    %279 = arith.select %2, %277, %278 : vector<24x128xi1>, vector<24x128xf32>
    %280 = vector.extract_strided_slice %276 {offsets = [0, 0], sizes = [8, 128], strides = [1, 1]} : vector<24x128xf32> to vector<8x128xf32>
    %281 = vector.extract_strided_slice %279 {offsets = [0, 0], sizes = [8, 128], strides = [1, 1]} : vector<24x128xf32> to vector<8x128xf32>
    %c0_143 = arith.constant 0 : index
    %c18 = arith.constant 18 : index
    %282 = memref.load %arg3[%c0_143, %c18] : memref<2x32xf32, #tpu.memory_space<smem>>
    %283 = vector.broadcast %282 : f32 to vector<8x128xf32>
    %284 = arith.mulf %280, %283 : vector<8x128xf32>
    %285 = arith.addf %261, %284 : vector<8x128xf32>
    %c0_144 = arith.constant 0 : index
    %c19 = arith.constant 19 : index
    %286 = memref.load %arg3[%c0_144, %c19] : memref<2x32xf32, #tpu.memory_space<smem>>
    %287 = vector.broadcast %286 : f32 to vector<8x128xf32>
    %288 = arith.mulf %281, %287 : vector<8x128xf32>
    %289 = arith.addf %285, %288 : vector<8x128xf32>
    %c1_145 = arith.constant 1 : index
    %c18_146 = arith.constant 18 : index
    %290 = memref.load %arg3[%c1_145, %c18_146] : memref<2x32xf32, #tpu.memory_space<smem>>
    %291 = vector.broadcast %290 : f32 to vector<8x128xf32>
    %292 = arith.mulf %280, %291 : vector<8x128xf32>
    %293 = arith.addf %269, %292 : vector<8x128xf32>
    %c1_147 = arith.constant 1 : index
    %c19_148 = arith.constant 19 : index
    %294 = memref.load %arg3[%c1_147, %c19_148] : memref<2x32xf32, #tpu.memory_space<smem>>
    %295 = vector.broadcast %294 : f32 to vector<8x128xf32>
    %296 = arith.mulf %281, %295 : vector<8x128xf32>
    %297 = arith.addf %293, %296 : vector<8x128xf32>
    %c0_i32_149 = arith.constant 0 : i32
    %298 = arith.addi %24, %c0_i32_149 : i32
    %c0_150 = arith.constant 0 : index
    %c2_151 = arith.constant 2 : index
    %299 = arith.index_cast %298 : i32 to index
    %c0_152 = arith.constant 0 : index
    %300 = vector.load %arg1[%c0_150, %c2_151, %299, %c0_152] : memref<1x4x24x128xf32, #tpu.memory_space<vmem>>, vector<1x1x24x128xf32>
    %301 = vector.shape_cast %300 : vector<1x1x24x128xf32> to vector<24x128xf32>
    %c28_i32_153 = arith.constant 28 : i32
    %302 = tpu.dynamic_rotate %301 by %c28_i32_153 dim 1 : vector<24x128xf32>, i32 -> vector<24x128xf32>
    %c23_i32_154 = arith.constant 23 : i32
    %303 = tpu.dynamic_rotate %302 by %c23_i32_154 dim 0 : vector<24x128xf32>, i32 -> vector<24x128xf32>
    %304 = arith.select %6, %302, %303 : vector<24x128xi1>, vector<24x128xf32>
    %c127_i32_155 = arith.constant 127 : i32
    %305 = tpu.dynamic_rotate %304 by %c127_i32_155 dim 1 : vector<24x128xf32>, i32 -> vector<24x128xf32>
    %c23_i32_156 = arith.constant 23 : i32
    %306 = tpu.dynamic_rotate %305 by %c23_i32_156 dim 0 : vector<24x128xf32>, i32 -> vector<24x128xf32>
    %307 = arith.select %2, %305, %306 : vector<24x128xi1>, vector<24x128xf32>
    %308 = vector.extract_strided_slice %304 {offsets = [0, 0], sizes = [8, 128], strides = [1, 1]} : vector<24x128xf32> to vector<8x128xf32>
    %309 = vector.extract_strided_slice %307 {offsets = [0, 0], sizes = [8, 128], strides = [1, 1]} : vector<24x128xf32> to vector<8x128xf32>
    %c0_157 = arith.constant 0 : index
    %c20 = arith.constant 20 : index
    %310 = memref.load %arg3[%c0_157, %c20] : memref<2x32xf32, #tpu.memory_space<smem>>
    %311 = vector.broadcast %310 : f32 to vector<8x128xf32>
    %312 = arith.mulf %308, %311 : vector<8x128xf32>
    %313 = arith.addf %289, %312 : vector<8x128xf32>
    %c0_158 = arith.constant 0 : index
    %c21 = arith.constant 21 : index
    %314 = memref.load %arg3[%c0_158, %c21] : memref<2x32xf32, #tpu.memory_space<smem>>
    %315 = vector.broadcast %314 : f32 to vector<8x128xf32>
    %316 = arith.mulf %309, %315 : vector<8x128xf32>
    %317 = arith.addf %313, %316 : vector<8x128xf32>
    %c1_159 = arith.constant 1 : index
    %c20_160 = arith.constant 20 : index
    %318 = memref.load %arg3[%c1_159, %c20_160] : memref<2x32xf32, #tpu.memory_space<smem>>
    %319 = vector.broadcast %318 : f32 to vector<8x128xf32>
    %320 = arith.mulf %308, %319 : vector<8x128xf32>
    %321 = arith.addf %297, %320 : vector<8x128xf32>
    %c1_161 = arith.constant 1 : index
    %c21_162 = arith.constant 21 : index
    %322 = memref.load %arg3[%c1_161, %c21_162] : memref<2x32xf32, #tpu.memory_space<smem>>
    %323 = vector.broadcast %322 : f32 to vector<8x128xf32>
    %324 = arith.mulf %309, %323 : vector<8x128xf32>
    %325 = arith.addf %321, %324 : vector<8x128xf32>
    %c0_i32_163 = arith.constant 0 : i32
    %326 = arith.addi %24, %c0_i32_163 : i32
    %c0_164 = arith.constant 0 : index
    %c2_165 = arith.constant 2 : index
    %327 = arith.index_cast %326 : i32 to index
    %c0_166 = arith.constant 0 : index
    %328 = vector.load %arg1[%c0_164, %c2_165, %327, %c0_166] : memref<1x4x24x128xf32, #tpu.memory_space<vmem>>, vector<1x1x24x128xf32>
    %329 = vector.shape_cast %328 : vector<1x1x24x128xf32> to vector<24x128xf32>
    %c18_i32_167 = arith.constant 18 : i32
    %330 = tpu.dynamic_rotate %329 by %c18_i32_167 dim 1 : vector<24x128xf32>, i32 -> vector<24x128xf32>
    %c23_i32_168 = arith.constant 23 : i32
    %331 = tpu.dynamic_rotate %330 by %c23_i32_168 dim 0 : vector<24x128xf32>, i32 -> vector<24x128xf32>
    %332 = arith.select %8, %330, %331 : vector<24x128xi1>, vector<24x128xf32>
    %c127_i32_169 = arith.constant 127 : i32
    %333 = tpu.dynamic_rotate %332 by %c127_i32_169 dim 1 : vector<24x128xf32>, i32 -> vector<24x128xf32>
    %c23_i32_170 = arith.constant 23 : i32
    %334 = tpu.dynamic_rotate %333 by %c23_i32_170 dim 0 : vector<24x128xf32>, i32 -> vector<24x128xf32>
    %335 = arith.select %2, %333, %334 : vector<24x128xi1>, vector<24x128xf32>
    %336 = vector.extract_strided_slice %332 {offsets = [0, 0], sizes = [8, 128], strides = [1, 1]} : vector<24x128xf32> to vector<8x128xf32>
    %337 = vector.extract_strided_slice %335 {offsets = [0, 0], sizes = [8, 128], strides = [1, 1]} : vector<24x128xf32> to vector<8x128xf32>
    %c0_171 = arith.constant 0 : index
    %c22 = arith.constant 22 : index
    %338 = memref.load %arg3[%c0_171, %c22] : memref<2x32xf32, #tpu.memory_space<smem>>
    %339 = vector.broadcast %338 : f32 to vector<8x128xf32>
    %340 = arith.mulf %336, %339 : vector<8x128xf32>
    %341 = arith.addf %317, %340 : vector<8x128xf32>
    %c0_172 = arith.constant 0 : index
    %c23 = arith.constant 23 : index
    %342 = memref.load %arg3[%c0_172, %c23] : memref<2x32xf32, #tpu.memory_space<smem>>
    %343 = vector.broadcast %342 : f32 to vector<8x128xf32>
    %344 = arith.mulf %337, %343 : vector<8x128xf32>
    %345 = arith.addf %341, %344 : vector<8x128xf32>
    %c1_173 = arith.constant 1 : index
    %c22_174 = arith.constant 22 : index
    %346 = memref.load %arg3[%c1_173, %c22_174] : memref<2x32xf32, #tpu.memory_space<smem>>
    %347 = vector.broadcast %346 : f32 to vector<8x128xf32>
    %348 = arith.mulf %336, %347 : vector<8x128xf32>
    %349 = arith.addf %325, %348 : vector<8x128xf32>
    %c1_175 = arith.constant 1 : index
    %c23_176 = arith.constant 23 : index
    %350 = memref.load %arg3[%c1_175, %c23_176] : memref<2x32xf32, #tpu.memory_space<smem>>
    %351 = vector.broadcast %350 : f32 to vector<8x128xf32>
    %352 = arith.mulf %337, %351 : vector<8x128xf32>
    %353 = arith.addf %349, %352 : vector<8x128xf32>
    %c0_i32_177 = arith.constant 0 : i32
    %354 = arith.addi %24, %c0_i32_177 : i32
    %c0_178 = arith.constant 0 : index
    %c3_179 = arith.constant 3 : index
    %355 = arith.index_cast %354 : i32 to index
    %c0_180 = arith.constant 0 : index
    %356 = vector.load %arg1[%c0_178, %c3_179, %355, %c0_180] : memref<1x4x24x128xf32, #tpu.memory_space<vmem>>, vector<1x1x24x128xf32>
    %357 = vector.shape_cast %356 : vector<1x1x24x128xf32> to vector<24x128xf32>
    %c127_i32_181 = arith.constant 127 : i32
    %358 = tpu.dynamic_rotate %357 by %c127_i32_181 dim 1 : vector<24x128xf32>, i32 -> vector<24x128xf32>
    %c23_i32_182 = arith.constant 23 : i32
    %359 = tpu.dynamic_rotate %358 by %c23_i32_182 dim 0 : vector<24x128xf32>, i32 -> vector<24x128xf32>
    %360 = arith.select %2, %358, %359 : vector<24x128xi1>, vector<24x128xf32>
    %361 = vector.extract_strided_slice %357 {offsets = [0, 0], sizes = [8, 128], strides = [1, 1]} : vector<24x128xf32> to vector<8x128xf32>
    %362 = vector.extract_strided_slice %360 {offsets = [0, 0], sizes = [8, 128], strides = [1, 1]} : vector<24x128xf32> to vector<8x128xf32>
    %c0_183 = arith.constant 0 : index
    %c24 = arith.constant 24 : index
    %363 = memref.load %arg3[%c0_183, %c24] : memref<2x32xf32, #tpu.memory_space<smem>>
    %364 = vector.broadcast %363 : f32 to vector<8x128xf32>
    %365 = arith.mulf %361, %364 : vector<8x128xf32>
    %366 = arith.addf %345, %365 : vector<8x128xf32>
    %c0_184 = arith.constant 0 : index
    %c25 = arith.constant 25 : index
    %367 = memref.load %arg3[%c0_184, %c25] : memref<2x32xf32, #tpu.memory_space<smem>>
    %368 = vector.broadcast %367 : f32 to vector<8x128xf32>
    %369 = arith.mulf %362, %368 : vector<8x128xf32>
    %370 = arith.addf %366, %369 : vector<8x128xf32>
    %c1_185 = arith.constant 1 : index
    %c24_186 = arith.constant 24 : index
    %371 = memref.load %arg3[%c1_185, %c24_186] : memref<2x32xf32, #tpu.memory_space<smem>>
    %372 = vector.broadcast %371 : f32 to vector<8x128xf32>
    %373 = arith.mulf %361, %372 : vector<8x128xf32>
    %374 = arith.addf %353, %373 : vector<8x128xf32>
    %c1_187 = arith.constant 1 : index
    %c25_188 = arith.constant 25 : index
    %375 = memref.load %arg3[%c1_187, %c25_188] : memref<2x32xf32, #tpu.memory_space<smem>>
    %376 = vector.broadcast %375 : f32 to vector<8x128xf32>
    %377 = arith.mulf %362, %376 : vector<8x128xf32>
    %378 = arith.addf %374, %377 : vector<8x128xf32>
    %c0_i32_189 = arith.constant 0 : i32
    %379 = arith.addi %24, %c0_i32_189 : i32
    %c0_190 = arith.constant 0 : index
    %c3_191 = arith.constant 3 : index
    %380 = arith.index_cast %379 : i32 to index
    %c0_192 = arith.constant 0 : index
    %381 = vector.load %arg1[%c0_190, %c3_191, %380, %c0_192] : memref<1x4x24x128xf32, #tpu.memory_space<vmem>>, vector<1x1x24x128xf32>
    %382 = vector.shape_cast %381 : vector<1x1x24x128xf32> to vector<24x128xf32>
    %c118_i32_193 = arith.constant 118 : i32
    %383 = tpu.dynamic_rotate %382 by %c118_i32_193 dim 1 : vector<24x128xf32>, i32 -> vector<24x128xf32>
    %c23_i32_194 = arith.constant 23 : i32
    %384 = tpu.dynamic_rotate %383 by %c23_i32_194 dim 0 : vector<24x128xf32>, i32 -> vector<24x128xf32>
    %385 = arith.select %4, %383, %384 : vector<24x128xi1>, vector<24x128xf32>
    %c127_i32_195 = arith.constant 127 : i32
    %386 = tpu.dynamic_rotate %385 by %c127_i32_195 dim 1 : vector<24x128xf32>, i32 -> vector<24x128xf32>
    %c23_i32_196 = arith.constant 23 : i32
    %387 = tpu.dynamic_rotate %386 by %c23_i32_196 dim 0 : vector<24x128xf32>, i32 -> vector<24x128xf32>
    %388 = arith.select %2, %386, %387 : vector<24x128xi1>, vector<24x128xf32>
    %389 = vector.extract_strided_slice %385 {offsets = [0, 0], sizes = [8, 128], strides = [1, 1]} : vector<24x128xf32> to vector<8x128xf32>
    %390 = vector.extract_strided_slice %388 {offsets = [0, 0], sizes = [8, 128], strides = [1, 1]} : vector<24x128xf32> to vector<8x128xf32>
    %c0_197 = arith.constant 0 : index
    %c26 = arith.constant 26 : index
    %391 = memref.load %arg3[%c0_197, %c26] : memref<2x32xf32, #tpu.memory_space<smem>>
    %392 = vector.broadcast %391 : f32 to vector<8x128xf32>
    %393 = arith.mulf %389, %392 : vector<8x128xf32>
    %394 = arith.addf %370, %393 : vector<8x128xf32>
    %c0_198 = arith.constant 0 : index
    %c27 = arith.constant 27 : index
    %395 = memref.load %arg3[%c0_198, %c27] : memref<2x32xf32, #tpu.memory_space<smem>>
    %396 = vector.broadcast %395 : f32 to vector<8x128xf32>
    %397 = arith.mulf %390, %396 : vector<8x128xf32>
    %398 = arith.addf %394, %397 : vector<8x128xf32>
    %c1_199 = arith.constant 1 : index
    %c26_200 = arith.constant 26 : index
    %399 = memref.load %arg3[%c1_199, %c26_200] : memref<2x32xf32, #tpu.memory_space<smem>>
    %400 = vector.broadcast %399 : f32 to vector<8x128xf32>
    %401 = arith.mulf %389, %400 : vector<8x128xf32>
    %402 = arith.addf %378, %401 : vector<8x128xf32>
    %c1_201 = arith.constant 1 : index
    %c27_202 = arith.constant 27 : index
    %403 = memref.load %arg3[%c1_201, %c27_202] : memref<2x32xf32, #tpu.memory_space<smem>>
    %404 = vector.broadcast %403 : f32 to vector<8x128xf32>
    %405 = arith.mulf %390, %404 : vector<8x128xf32>
    %406 = arith.addf %402, %405 : vector<8x128xf32>
    %c0_i32_203 = arith.constant 0 : i32
    %407 = arith.addi %24, %c0_i32_203 : i32
    %c0_204 = arith.constant 0 : index
    %c3_205 = arith.constant 3 : index
    %408 = arith.index_cast %407 : i32 to index
    %c0_206 = arith.constant 0 : index
    %409 = vector.load %arg1[%c0_204, %c3_205, %408, %c0_206] : memref<1x4x24x128xf32, #tpu.memory_space<vmem>>, vector<1x1x24x128xf32>
    %410 = vector.shape_cast %409 : vector<1x1x24x128xf32> to vector<24x128xf32>
    %c28_i32_207 = arith.constant 28 : i32
    %411 = tpu.dynamic_rotate %410 by %c28_i32_207 dim 1 : vector<24x128xf32>, i32 -> vector<24x128xf32>
    %c23_i32_208 = arith.constant 23 : i32
    %412 = tpu.dynamic_rotate %411 by %c23_i32_208 dim 0 : vector<24x128xf32>, i32 -> vector<24x128xf32>
    %413 = arith.select %6, %411, %412 : vector<24x128xi1>, vector<24x128xf32>
    %c127_i32_209 = arith.constant 127 : i32
    %414 = tpu.dynamic_rotate %413 by %c127_i32_209 dim 1 : vector<24x128xf32>, i32 -> vector<24x128xf32>
    %c23_i32_210 = arith.constant 23 : i32
    %415 = tpu.dynamic_rotate %414 by %c23_i32_210 dim 0 : vector<24x128xf32>, i32 -> vector<24x128xf32>
    %416 = arith.select %2, %414, %415 : vector<24x128xi1>, vector<24x128xf32>
    %417 = vector.extract_strided_slice %413 {offsets = [0, 0], sizes = [8, 128], strides = [1, 1]} : vector<24x128xf32> to vector<8x128xf32>
    %418 = vector.extract_strided_slice %416 {offsets = [0, 0], sizes = [8, 128], strides = [1, 1]} : vector<24x128xf32> to vector<8x128xf32>
    %c0_211 = arith.constant 0 : index
    %c28 = arith.constant 28 : index
    %419 = memref.load %arg3[%c0_211, %c28] : memref<2x32xf32, #tpu.memory_space<smem>>
    %420 = vector.broadcast %419 : f32 to vector<8x128xf32>
    %421 = arith.mulf %417, %420 : vector<8x128xf32>
    %422 = arith.addf %398, %421 : vector<8x128xf32>
    %c0_212 = arith.constant 0 : index
    %c29 = arith.constant 29 : index
    %423 = memref.load %arg3[%c0_212, %c29] : memref<2x32xf32, #tpu.memory_space<smem>>
    %424 = vector.broadcast %423 : f32 to vector<8x128xf32>
    %425 = arith.mulf %418, %424 : vector<8x128xf32>
    %426 = arith.addf %422, %425 : vector<8x128xf32>
    %c1_213 = arith.constant 1 : index
    %c28_214 = arith.constant 28 : index
    %427 = memref.load %arg3[%c1_213, %c28_214] : memref<2x32xf32, #tpu.memory_space<smem>>
    %428 = vector.broadcast %427 : f32 to vector<8x128xf32>
    %429 = arith.mulf %417, %428 : vector<8x128xf32>
    %430 = arith.addf %406, %429 : vector<8x128xf32>
    %c1_215 = arith.constant 1 : index
    %c29_216 = arith.constant 29 : index
    %431 = memref.load %arg3[%c1_215, %c29_216] : memref<2x32xf32, #tpu.memory_space<smem>>
    %432 = vector.broadcast %431 : f32 to vector<8x128xf32>
    %433 = arith.mulf %418, %432 : vector<8x128xf32>
    %434 = arith.addf %430, %433 : vector<8x128xf32>
    %c0_i32_217 = arith.constant 0 : i32
    %435 = arith.addi %24, %c0_i32_217 : i32
    %c0_218 = arith.constant 0 : index
    %c3_219 = arith.constant 3 : index
    %436 = arith.index_cast %435 : i32 to index
    %c0_220 = arith.constant 0 : index
    %437 = vector.load %arg1[%c0_218, %c3_219, %436, %c0_220] : memref<1x4x24x128xf32, #tpu.memory_space<vmem>>, vector<1x1x24x128xf32>
    %438 = vector.shape_cast %437 : vector<1x1x24x128xf32> to vector<24x128xf32>
    %c18_i32_221 = arith.constant 18 : i32
    %439 = tpu.dynamic_rotate %438 by %c18_i32_221 dim 1 : vector<24x128xf32>, i32 -> vector<24x128xf32>
    %c23_i32_222 = arith.constant 23 : i32
    %440 = tpu.dynamic_rotate %439 by %c23_i32_222 dim 0 : vector<24x128xf32>, i32 -> vector<24x128xf32>
    %441 = arith.select %8, %439, %440 : vector<24x128xi1>, vector<24x128xf32>
    %c127_i32_223 = arith.constant 127 : i32
    %442 = tpu.dynamic_rotate %441 by %c127_i32_223 dim 1 : vector<24x128xf32>, i32 -> vector<24x128xf32>
    %c23_i32_224 = arith.constant 23 : i32
    %443 = tpu.dynamic_rotate %442 by %c23_i32_224 dim 0 : vector<24x128xf32>, i32 -> vector<24x128xf32>
    %444 = arith.select %2, %442, %443 : vector<24x128xi1>, vector<24x128xf32>
    %445 = vector.extract_strided_slice %441 {offsets = [0, 0], sizes = [8, 128], strides = [1, 1]} : vector<24x128xf32> to vector<8x128xf32>
    %446 = vector.extract_strided_slice %444 {offsets = [0, 0], sizes = [8, 128], strides = [1, 1]} : vector<24x128xf32> to vector<8x128xf32>
    %c0_225 = arith.constant 0 : index
    %c30 = arith.constant 30 : index
    %447 = memref.load %arg3[%c0_225, %c30] : memref<2x32xf32, #tpu.memory_space<smem>>
    %448 = vector.broadcast %447 : f32 to vector<8x128xf32>
    %449 = arith.mulf %445, %448 : vector<8x128xf32>
    %450 = arith.addf %426, %449 : vector<8x128xf32>
    %c0_226 = arith.constant 0 : index
    %c31 = arith.constant 31 : index
    %451 = memref.load %arg3[%c0_226, %c31] : memref<2x32xf32, #tpu.memory_space<smem>>
    %452 = vector.broadcast %451 : f32 to vector<8x128xf32>
    %453 = arith.mulf %446, %452 : vector<8x128xf32>
    %454 = arith.addf %450, %453 : vector<8x128xf32>
    %c1_227 = arith.constant 1 : index
    %c30_228 = arith.constant 30 : index
    %455 = memref.load %arg3[%c1_227, %c30_228] : memref<2x32xf32, #tpu.memory_space<smem>>
    %456 = vector.broadcast %455 : f32 to vector<8x128xf32>
    %457 = arith.mulf %445, %456 : vector<8x128xf32>
    %458 = arith.addf %434, %457 : vector<8x128xf32>
    %c1_229 = arith.constant 1 : index
    %c31_230 = arith.constant 31 : index
    %459 = memref.load %arg3[%c1_229, %c31_230] : memref<2x32xf32, #tpu.memory_space<smem>>
    %460 = vector.broadcast %459 : f32 to vector<8x128xf32>
    %461 = arith.mulf %446, %460 : vector<8x128xf32>
    %462 = arith.addf %458, %461 : vector<8x128xf32>
    %463 = arith.index_cast %24 : i32 to index
    %c0_231 = arith.constant 0 : index
    %464 = vector.load %arg2[%463, %c0_231] : memref<24x128xf32, #tpu.memory_space<vmem>>, vector<8x128xf32>
    %c0_232 = arith.constant 0 : index
    %465 = memref.load %arg4[%c0_232] : memref<2xf32, #tpu.memory_space<smem>>
    %466 = vector.broadcast %465 : f32 to vector<8x128xf32>
    %467 = arith.addf %454, %466 : vector<8x128xf32>
    %468 = arith.mulf %467, %464 : vector<8x128xf32>
    %c1_233 = arith.constant 1 : index
    %469 = memref.load %arg4[%c1_233] : memref<2xf32, #tpu.memory_space<smem>>
    %470 = vector.broadcast %469 : f32 to vector<8x128xf32>
    %471 = arith.addf %462, %470 : vector<8x128xf32>
    %472 = arith.mulf %471, %464 : vector<8x128xf32>
    %c0_234 = arith.constant 0 : index
    %c0_235 = arith.constant 0 : index
    %473 = arith.index_cast %24 : i32 to index
    %c0_236 = arith.constant 0 : index
    %474 = vector.load %arg5[%c0_234, %c0_235, %473, %c0_236] : memref<1x2x24x128xf32, #tpu.memory_space<vmem>>, vector<1x1x8x128xf32>
    %475 = vector.shape_cast %474 : vector<1x1x8x128xf32> to vector<8x128xf32>
    %476 = vector.shape_cast %468 : vector<8x128xf32> to vector<1x1x8x128xf32>
    tpu.vector_store %arg5[%c0_234, %c0_235, %473, %c0_236], %476 {strides = array<i32>} : memref<1x2x24x128xf32, #tpu.memory_space<vmem>>, vector<1x1x8x128xf32>,
    %c0_237 = arith.constant 0 : index
    %c1_238 = arith.constant 1 : index
    %477 = arith.index_cast %24 : i32 to index
    %c0_239 = arith.constant 0 : index
    %478 = vector.load %arg5[%c0_237, %c1_238, %477, %c0_239] : memref<1x2x24x128xf32, #tpu.memory_space<vmem>>, vector<1x1x8x128xf32>
    %479 = vector.shape_cast %478 : vector<1x1x8x128xf32> to vector<8x128xf32>
    %480 = vector.shape_cast %472 : vector<8x128xf32> to vector<1x1x8x128xf32>
    tpu.vector_store %arg5[%c0_237, %c1_238, %477, %c0_239], %480 {strides = array<i32>} : memref<1x2x24x128xf32, #tpu.memory_space<vmem>>, vector<1x1x8x128xf32>,
    %cst_240 = arith.constant dense<0.000000e+00> : vector<128xf32>
    %481 = vector.multi_reduction <add>, %468, %cst_240 [0] : vector<8x128xf32> to vector<128xf32>
    %482 = vector.shape_cast %481 : vector<128xf32> to vector<1x128xf32>
    %483 = arith.mulf %468, %468 : vector<8x128xf32>
    %cst_241 = arith.constant dense<0.000000e+00> : vector<128xf32>
    %484 = vector.multi_reduction <add>, %483, %cst_241 [0] : vector<8x128xf32> to vector<128xf32>
    %485 = vector.shape_cast %484 : vector<128xf32> to vector<1x128xf32>
    %cst_242 = arith.constant dense<0.000000e+00> : vector<128xf32>
    %486 = vector.multi_reduction <add>, %472, %cst_242 [0] : vector<8x128xf32> to vector<128xf32>
    %487 = vector.shape_cast %486 : vector<128xf32> to vector<1x128xf32>
    %488 = arith.mulf %472, %472 : vector<8x128xf32>
    %cst_243 = arith.constant dense<0.000000e+00> : vector<128xf32>
    %489 = vector.multi_reduction <add>, %488, %cst_243 [0] : vector<8x128xf32> to vector<128xf32>
    %490 = vector.shape_cast %489 : vector<128xf32> to vector<1x128xf32>
    %cst_244 = arith.constant 0.000000e+00 : f32
    %491 = vector.broadcast %cst_244 : f32 to vector<4x128xf32>
    %492 = tpu.concatenate %482, %485, %487, %490, %491 in 0 : vector<1x128xf32>, vector<1x128xf32>, vector<1x128xf32>, vector<1x128xf32>, vector<4x128xf32> -> vector<8x128xf32>
    %c0_245 = arith.constant 0 : index
    %c0_246 = arith.constant 0 : index
    %c0_247 = arith.constant 0 : index
    %493 = vector.load %arg6[%c0_245, %c0_246, %c0_247] : memref<1x8x128xf32, #tpu.memory_space<vmem>>, vector<1x8x128xf32>
    %494 = vector.shape_cast %493 : vector<1x8x128xf32> to vector<8x128xf32>
    %495 = arith.addf %494, %492 : vector<8x128xf32>
    %c0_248 = arith.constant 0 : index
    %c0_249 = arith.constant 0 : index
    %c0_250 = arith.constant 0 : index
    %496 = vector.load %arg6[%c0_248, %c0_249, %c0_250] : memref<1x8x128xf32, #tpu.memory_space<vmem>>, vector<1x8x128xf32>
    %497 = vector.shape_cast %496 : vector<1x8x128xf32> to vector<8x128xf32>
    %498 = vector.shape_cast %495 : vector<8x128xf32> to vector<1x8x128xf32>
    tpu.vector_store %arg6[%c0_248, %c0_249, %c0_250], %498 {strides = array<i32>} : memref<1x8x128xf32, #tpu.memory_space<vmem>>, vector<1x8x128xf32>,
    %c1_i32_251 = arith.constant 1 : i32
    return
  }
  func.func @transform_0(%arg0: i32) -> (i32, i32, i32, i32) {
    %c0_i32 = arith.constant 0 : i32
    %c0_i32_0 = arith.constant 0 : i32
    %c0_i32_1 = arith.constant 0 : i32
    %c0_i32_2 = arith.constant 0 : i32
    return %arg0, %c0_i32, %c0_i32_0, %c0_i32_1 : i32, i32, i32, i32
  }
  func.func @transform_1(%arg0: i32) -> (i32, i32) {
    %c0_i32 = arith.constant 0 : i32
    %c0_i32_0 = arith.constant 0 : i32
    %c0_i32_1 = arith.constant 0 : i32
    return %c0_i32, %c0_i32_0 : i32, i32
  }
  func.func @transform_2(%arg0: i32) -> (i32, i32) {
    %c0_i32 = arith.constant 0 : i32
    %c0_i32_0 = arith.constant 0 : i32
    %c0_i32_1 = arith.constant 0 : i32
    return %c0_i32, %c0_i32_0 : i32, i32
  }
  func.func @transform_3(%arg0: i32) -> i32 {
    %c0_i32 = arith.constant 0 : i32
    %c0_i32_0 = arith.constant 0 : i32
    return %c0_i32 : i32
  }
  func.func @transform_4(%arg0: i32) -> (i32, i32, i32, i32) {
    %c0_i32 = arith.constant 0 : i32
    %c0_i32_0 = arith.constant 0 : i32
    %c0_i32_1 = arith.constant 0 : i32
    %c0_i32_2 = arith.constant 0 : i32
    return %arg0, %c0_i32, %c0_i32_0, %c0_i32_1 : i32, i32, i32, i32
  }
  func.func @transform_5(%arg0: i32) -> (i32, i32, i32) {
    %c0_i32 = arith.constant 0 : i32
    %c0_i32_0 = arith.constant 0 : i32
    %c0_i32_1 = arith.constant 0 : i32
    return %arg0, %c0_i32, %c0_i32_0 : i32, i32, i32
  }
}

module attributes {stable_mosaic.version = 11 : i64} {
  func.func @_bn_elu_conv2_kernel(%arg0: i32, %arg1: memref<1x2x24x128xf32, #tpu.memory_space<vmem>>, %arg2: memref<2xf32, #tpu.memory_space<smem>>, %arg3: memref<2xf32, #tpu.memory_space<smem>>, %arg4: memref<16xf32, #tpu.memory_space<smem>>, %arg5: memref<1xf32, #tpu.memory_space<smem>>, %arg6: memref<1x24x128xf32, #tpu.memory_space<vmem>>, %arg7: memref<2x24x128xf32, #tpu.memory_space<vmem>>) attributes {dimension_semantics = [#tpu.dimension_semantics<parallel>], iteration_bounds = array<i64: 2>, scalar_prefetch = 0 : i64, scratch_operands = 1 : i64, tpu.core_type = #tpu.core_type<tc>, window_params = [{transform_indices = @transform_0, window_bounds = array<i64: 1, 2, 24, 128>}, {transform_indices = @transform_1, window_bounds = array<i64: 2>}, {transform_indices = @transform_2, window_bounds = array<i64: 2>}, {transform_indices = @transform_3, window_bounds = array<i64: 16>}, {transform_indices = @transform_4, window_bounds = array<i64: 1>}, {transform_indices = @transform_5, window_bounds = array<i64: 1, 24, 128>}]} {
    %0 = tpu.iota {dimensions = array<i32: 1>} : vector<24x128xi32>
    %c127_i32 = arith.constant 127 : i32
    %1 = vector.broadcast %c127_i32 : i32 to vector<24x128xi32>
    %2 = arith.cmpi slt, %0, %1 : vector<24x128xi32>
    %c118_i32 = arith.constant 118 : i32
    %3 = vector.broadcast %c118_i32 : i32 to vector<24x128xi32>
    %4 = arith.cmpi slt, %0, %3 : vector<24x128xi32>
    %c28_i32 = arith.constant 28 : i32
    %5 = vector.broadcast %c28_i32 : i32 to vector<24x128xi32>
    %6 = arith.cmpi slt, %0, %5 : vector<24x128xi32>
    %c18_i32 = arith.constant 18 : i32
    %7 = vector.broadcast %c18_i32 : i32 to vector<24x128xi32>
    %8 = arith.cmpi slt, %0, %7 : vector<24x128xi32>
    %cst = arith.constant 0.000000e+00 : f32
    %9 = vector.broadcast %cst : f32 to vector<16x128xf32>
    %c0 = arith.constant 0 : index
    %c8 = arith.constant 8 : index
    %c0_0 = arith.constant 0 : index
    %10 = vector.load %arg7[%c0, %c8, %c0_0] : memref<2x24x128xf32, #tpu.memory_space<vmem>>, vector<1x16x128xf32>
    %11 = vector.shape_cast %10 : vector<1x16x128xf32> to vector<16x128xf32>
    %12 = vector.shape_cast %9 : vector<16x128xf32> to vector<1x16x128xf32>
    tpu.vector_store %arg7[%c0, %c8, %c0_0], %12 {strides = array<i32>} : memref<2x24x128xf32, #tpu.memory_space<vmem>>, vector<1x16x128xf32>,
    %cst_1 = arith.constant 0.000000e+00 : f32
    %13 = vector.broadcast %cst_1 : f32 to vector<16x128xf32>
    %c1 = arith.constant 1 : index
    %c8_2 = arith.constant 8 : index
    %c0_3 = arith.constant 0 : index
    %14 = vector.load %arg7[%c1, %c8_2, %c0_3] : memref<2x24x128xf32, #tpu.memory_space<vmem>>, vector<1x16x128xf32>
    %15 = vector.shape_cast %14 : vector<1x16x128xf32> to vector<16x128xf32>
    %16 = vector.shape_cast %13 : vector<16x128xf32> to vector<1x16x128xf32>
    tpu.vector_store %arg7[%c1, %c8_2, %c0_3], %16 {strides = array<i32>} : memref<2x24x128xf32, #tpu.memory_space<vmem>>, vector<1x16x128xf32>,
    %cst_4 = arith.constant 0.000000e+00 : f32
    %17 = vector.broadcast %cst_4 : f32 to vector<16x128xf32>
    %c0_5 = arith.constant 0 : index
    %c8_6 = arith.constant 8 : index
    %c0_7 = arith.constant 0 : index
    %18 = vector.load %arg6[%c0_5, %c8_6, %c0_7] : memref<1x24x128xf32, #tpu.memory_space<vmem>>, vector<1x16x128xf32>
    %19 = vector.shape_cast %18 : vector<1x16x128xf32> to vector<16x128xf32>
    %20 = vector.shape_cast %17 : vector<16x128xf32> to vector<1x16x128xf32>
    tpu.vector_store %arg6[%c0_5, %c8_6, %c0_7], %20 {strides = array<i32>} : memref<1x24x128xf32, #tpu.memory_space<vmem>>, vector<1x16x128xf32>,
    %c0_i32 = arith.constant 0 : i32
    %c1_i32 = arith.constant 1 : i32
    %21 = arith.muli %c0_i32, %c1_i32 : i32
    %c0_i32_8 = arith.constant 0 : i32
    %22 = arith.addi %c0_i32_8, %21 : i32
    %c8_i32 = arith.constant 8 : i32
    %23 = arith.muli %22, %c8_i32 : i32
    %24 = tpu.assume_multiple %23, 8 : i32
    %c0_9 = arith.constant 0 : index
    %c0_10 = arith.constant 0 : index
    %25 = arith.index_cast %24 : i32 to index
    %c0_11 = arith.constant 0 : index
    %26 = vector.load %arg1[%c0_9, %c0_10, %25, %c0_11] : memref<1x2x24x128xf32, #tpu.memory_space<vmem>>, vector<1x1x8x128xf32>
    %27 = vector.shape_cast %26 : vector<1x1x8x128xf32> to vector<8x128xf32>
    %c0_12 = arith.constant 0 : index
    %28 = memref.load %arg2[%c0_12] : memref<2xf32, #tpu.memory_space<smem>>
    %29 = vector.broadcast %28 : f32 to vector<8x128xf32>
    %30 = arith.mulf %27, %29 : vector<8x128xf32>
    %c0_13 = arith.constant 0 : index
    %31 = memref.load %arg3[%c0_13] : memref<2xf32, #tpu.memory_space<smem>>
    %32 = vector.broadcast %31 : f32 to vector<8x128xf32>
    %33 = arith.addf %30, %32 : vector<8x128xf32>
    %cst_14 = arith.constant 0.000000e+00 : f32
    %34 = vector.broadcast %cst_14 : f32 to vector<8x128xf32>
    %35 = arith.cmpf ogt, %33, %34 : vector<8x128xf32>
    %36 = math.exp %33 : vector<8x128xf32>
    %cst_15 = arith.constant 1.000000e+00 : f32
    %37 = vector.broadcast %cst_15 : f32 to vector<8x128xf32>
    %38 = arith.subf %36, %37 : vector<8x128xf32>
    %39 = arith.select %35, %33, %38 : vector<8x128xi1>, vector<8x128xf32>
    %c0_16 = arith.constant 0 : index
    %40 = arith.index_cast %24 : i32 to index
    %c0_17 = arith.constant 0 : index
    %41 = vector.load %arg7[%c0_16, %40, %c0_17] : memref<2x24x128xf32, #tpu.memory_space<vmem>>, vector<1x8x128xf32>
    %42 = vector.shape_cast %41 : vector<1x8x128xf32> to vector<8x128xf32>
    %43 = vector.shape_cast %39 : vector<8x128xf32> to vector<1x8x128xf32>
    tpu.vector_store %arg7[%c0_16, %40, %c0_17], %43 {strides = array<i32>} : memref<2x24x128xf32, #tpu.memory_space<vmem>>, vector<1x8x128xf32>,
    %c0_18 = arith.constant 0 : index
    %c1_19 = arith.constant 1 : index
    %44 = arith.index_cast %24 : i32 to index
    %c0_20 = arith.constant 0 : index
    %45 = vector.load %arg1[%c0_18, %c1_19, %44, %c0_20] : memref<1x2x24x128xf32, #tpu.memory_space<vmem>>, vector<1x1x8x128xf32>
    %46 = vector.shape_cast %45 : vector<1x1x8x128xf32> to vector<8x128xf32>
    %c1_21 = arith.constant 1 : index
    %47 = memref.load %arg2[%c1_21] : memref<2xf32, #tpu.memory_space<smem>>
    %48 = vector.broadcast %47 : f32 to vector<8x128xf32>
    %49 = arith.mulf %46, %48 : vector<8x128xf32>
    %c1_22 = arith.constant 1 : index
    %50 = memref.load %arg3[%c1_22] : memref<2xf32, #tpu.memory_space<smem>>
    %51 = vector.broadcast %50 : f32 to vector<8x128xf32>
    %52 = arith.addf %49, %51 : vector<8x128xf32>
    %cst_23 = arith.constant 0.000000e+00 : f32
    %53 = vector.broadcast %cst_23 : f32 to vector<8x128xf32>
    %54 = arith.cmpf ogt, %52, %53 : vector<8x128xf32>
    %55 = math.exp %52 : vector<8x128xf32>
    %cst_24 = arith.constant 1.000000e+00 : f32
    %56 = vector.broadcast %cst_24 : f32 to vector<8x128xf32>
    %57 = arith.subf %55, %56 : vector<8x128xf32>
    %58 = arith.select %54, %52, %57 : vector<8x128xi1>, vector<8x128xf32>
    %c1_25 = arith.constant 1 : index
    %59 = arith.index_cast %24 : i32 to index
    %c0_26 = arith.constant 0 : index
    %60 = vector.load %arg7[%c1_25, %59, %c0_26] : memref<2x24x128xf32, #tpu.memory_space<vmem>>, vector<1x8x128xf32>
    %61 = vector.shape_cast %60 : vector<1x8x128xf32> to vector<8x128xf32>
    %62 = vector.shape_cast %58 : vector<8x128xf32> to vector<1x8x128xf32>
    tpu.vector_store %arg7[%c1_25, %59, %c0_26], %62 {strides = array<i32>} : memref<2x24x128xf32, #tpu.memory_space<vmem>>, vector<1x8x128xf32>,
    %c1_i32_27 = arith.constant 1 : i32
    %c0_i32_28 = arith.constant 0 : i32
    %c1_i32_29 = arith.constant 1 : i32
    %63 = arith.muli %c0_i32_28, %c1_i32_29 : i32
    %c0_i32_30 = arith.constant 0 : i32
    %64 = arith.addi %c0_i32_30, %63 : i32
    %c8_i32_31 = arith.constant 8 : i32
    %65 = arith.muli %64, %c8_i32_31 : i32
    %66 = tpu.assume_multiple %65, 8 : i32
    %cst_32 = arith.constant 0.000000e+00 : f32
    %67 = vector.broadcast %cst_32 : f32 to vector<8x128xf32>
    %c0_33 = arith.constant 0 : index
    %68 = memref.load %arg5[%c0_33] : memref<1xf32, #tpu.memory_space<smem>>
    %69 = vector.broadcast %68 : f32 to vector<8x128xf32>
    %70 = arith.addf %67, %69 : vector<8x128xf32>
    %c0_i32_34 = arith.constant 0 : i32
    %71 = arith.addi %66, %c0_i32_34 : i32
    %c0_35 = arith.constant 0 : index
    %72 = arith.index_cast %71 : i32 to index
    %c0_36 = arith.constant 0 : index
    %73 = vector.load %arg7[%c0_35, %72, %c0_36] : memref<2x24x128xf32, #tpu.memory_space<vmem>>, vector<1x24x128xf32>
    %74 = vector.shape_cast %73 : vector<1x24x128xf32> to vector<24x128xf32>
    %c127_i32_37 = arith.constant 127 : i32
    %75 = tpu.dynamic_rotate %74 by %c127_i32_37 dim 1 : vector<24x128xf32>, i32 -> vector<24x128xf32>
    %c23_i32 = arith.constant 23 : i32
    %76 = tpu.dynamic_rotate %75 by %c23_i32 dim 0 : vector<24x128xf32>, i32 -> vector<24x128xf32>
    %77 = arith.select %2, %75, %76 : vector<24x128xi1>, vector<24x128xf32>
    %78 = vector.extract_strided_slice %74 {offsets = [0, 0], sizes = [8, 128], strides = [1, 1]} : vector<24x128xf32> to vector<8x128xf32>
    %c0_38 = arith.constant 0 : index
    %79 = memref.load %arg4[%c0_38] : memref<16xf32, #tpu.memory_space<smem>>
    %80 = vector.broadcast %79 : f32 to vector<8x128xf32>
    %81 = arith.mulf %78, %80 : vector<8x128xf32>
    %82 = arith.addf %70, %81 : vector<8x128xf32>
    %83 = vector.extract_strided_slice %77 {offsets = [0, 0], sizes = [8, 128], strides = [1, 1]} : vector<24x128xf32> to vector<8x128xf32>
    %c1_39 = arith.constant 1 : index
    %84 = memref.load %arg4[%c1_39] : memref<16xf32, #tpu.memory_space<smem>>
    %85 = vector.broadcast %84 : f32 to vector<8x128xf32>
    %86 = arith.mulf %83, %85 : vector<8x128xf32>
    %87 = arith.addf %82, %86 : vector<8x128xf32>
    %c0_i32_40 = arith.constant 0 : i32
    %88 = arith.addi %66, %c0_i32_40 : i32
    %c0_41 = arith.constant 0 : index
    %89 = arith.index_cast %88 : i32 to index
    %c0_42 = arith.constant 0 : index
    %90 = vector.load %arg7[%c0_41, %89, %c0_42] : memref<2x24x128xf32, #tpu.memory_space<vmem>>, vector<1x24x128xf32>
    %91 = vector.shape_cast %90 : vector<1x24x128xf32> to vector<24x128xf32>
    %c118_i32_43 = arith.constant 118 : i32
    %92 = tpu.dynamic_rotate %91 by %c118_i32_43 dim 1 : vector<24x128xf32>, i32 -> vector<24x128xf32>
    %c23_i32_44 = arith.constant 23 : i32
    %93 = tpu.dynamic_rotate %92 by %c23_i32_44 dim 0 : vector<24x128xf32>, i32 -> vector<24x128xf32>
    %94 = arith.select %4, %92, %93 : vector<24x128xi1>, vector<24x128xf32>
    %c127_i32_45 = arith.constant 127 : i32
    %95 = tpu.dynamic_rotate %94 by %c127_i32_45 dim 1 : vector<24x128xf32>, i32 -> vector<24x128xf32>
    %c23_i32_46 = arith.constant 23 : i32
    %96 = tpu.dynamic_rotate %95 by %c23_i32_46 dim 0 : vector<24x128xf32>, i32 -> vector<24x128xf32>
    %97 = arith.select %2, %95, %96 : vector<24x128xi1>, vector<24x128xf32>
    %98 = vector.extract_strided_slice %94 {offsets = [0, 0], sizes = [8, 128], strides = [1, 1]} : vector<24x128xf32> to vector<8x128xf32>
    %c2 = arith.constant 2 : index
    %99 = memref.load %arg4[%c2] : memref<16xf32, #tpu.memory_space<smem>>
    %100 = vector.broadcast %99 : f32 to vector<8x128xf32>
    %101 = arith.mulf %98, %100 : vector<8x128xf32>
    %102 = arith.addf %87, %101 : vector<8x128xf32>
    %103 = vector.extract_strided_slice %97 {offsets = [0, 0], sizes = [8, 128], strides = [1, 1]} : vector<24x128xf32> to vector<8x128xf32>
    %c3 = arith.constant 3 : index
    %104 = memref.load %arg4[%c3] : memref<16xf32, #tpu.memory_space<smem>>
    %105 = vector.broadcast %104 : f32 to vector<8x128xf32>
    %106 = arith.mulf %103, %105 : vector<8x128xf32>
    %107 = arith.addf %102, %106 : vector<8x128xf32>
    %c0_i32_47 = arith.constant 0 : i32
    %108 = arith.addi %66, %c0_i32_47 : i32
    %c0_48 = arith.constant 0 : index
    %109 = arith.index_cast %108 : i32 to index
    %c0_49 = arith.constant 0 : index
    %110 = vector.load %arg7[%c0_48, %109, %c0_49] : memref<2x24x128xf32, #tpu.memory_space<vmem>>, vector<1x24x128xf32>
    %111 = vector.shape_cast %110 : vector<1x24x128xf32> to vector<24x128xf32>
    %c28_i32_50 = arith.constant 28 : i32
    %112 = tpu.dynamic_rotate %111 by %c28_i32_50 dim 1 : vector<24x128xf32>, i32 -> vector<24x128xf32>
    %c23_i32_51 = arith.constant 23 : i32
    %113 = tpu.dynamic_rotate %112 by %c23_i32_51 dim 0 : vector<24x128xf32>, i32 -> vector<24x128xf32>
    %114 = arith.select %6, %112, %113 : vector<24x128xi1>, vector<24x128xf32>
    %c127_i32_52 = arith.constant 127 : i32
    %115 = tpu.dynamic_rotate %114 by %c127_i32_52 dim 1 : vector<24x128xf32>, i32 -> vector<24x128xf32>
    %c23_i32_53 = arith.constant 23 : i32
    %116 = tpu.dynamic_rotate %115 by %c23_i32_53 dim 0 : vector<24x128xf32>, i32 -> vector<24x128xf32>
    %117 = arith.select %2, %115, %116 : vector<24x128xi1>, vector<24x128xf32>
    %118 = vector.extract_strided_slice %114 {offsets = [0, 0], sizes = [8, 128], strides = [1, 1]} : vector<24x128xf32> to vector<8x128xf32>
    %c4 = arith.constant 4 : index
    %119 = memref.load %arg4[%c4] : memref<16xf32, #tpu.memory_space<smem>>
    %120 = vector.broadcast %119 : f32 to vector<8x128xf32>
    %121 = arith.mulf %118, %120 : vector<8x128xf32>
    %122 = arith.addf %107, %121 : vector<8x128xf32>
    %123 = vector.extract_strided_slice %117 {offsets = [0, 0], sizes = [8, 128], strides = [1, 1]} : vector<24x128xf32> to vector<8x128xf32>
    %c5 = arith.constant 5 : index
    %124 = memref.load %arg4[%c5] : memref<16xf32, #tpu.memory_space<smem>>
    %125 = vector.broadcast %124 : f32 to vector<8x128xf32>
    %126 = arith.mulf %123, %125 : vector<8x128xf32>
    %127 = arith.addf %122, %126 : vector<8x128xf32>
    %c0_i32_54 = arith.constant 0 : i32
    %128 = arith.addi %66, %c0_i32_54 : i32
    %c0_55 = arith.constant 0 : index
    %129 = arith.index_cast %128 : i32 to index
    %c0_56 = arith.constant 0 : index
    %130 = vector.load %arg7[%c0_55, %129, %c0_56] : memref<2x24x128xf32, #tpu.memory_space<vmem>>, vector<1x24x128xf32>
    %131 = vector.shape_cast %130 : vector<1x24x128xf32> to vector<24x128xf32>
    %c18_i32_57 = arith.constant 18 : i32
    %132 = tpu.dynamic_rotate %131 by %c18_i32_57 dim 1 : vector<24x128xf32>, i32 -> vector<24x128xf32>
    %c23_i32_58 = arith.constant 23 : i32
    %133 = tpu.dynamic_rotate %132 by %c23_i32_58 dim 0 : vector<24x128xf32>, i32 -> vector<24x128xf32>
    %134 = arith.select %8, %132, %133 : vector<24x128xi1>, vector<24x128xf32>
    %c127_i32_59 = arith.constant 127 : i32
    %135 = tpu.dynamic_rotate %134 by %c127_i32_59 dim 1 : vector<24x128xf32>, i32 -> vector<24x128xf32>
    %c23_i32_60 = arith.constant 23 : i32
    %136 = tpu.dynamic_rotate %135 by %c23_i32_60 dim 0 : vector<24x128xf32>, i32 -> vector<24x128xf32>
    %137 = arith.select %2, %135, %136 : vector<24x128xi1>, vector<24x128xf32>
    %138 = vector.extract_strided_slice %134 {offsets = [0, 0], sizes = [8, 128], strides = [1, 1]} : vector<24x128xf32> to vector<8x128xf32>
    %c6 = arith.constant 6 : index
    %139 = memref.load %arg4[%c6] : memref<16xf32, #tpu.memory_space<smem>>
    %140 = vector.broadcast %139 : f32 to vector<8x128xf32>
    %141 = arith.mulf %138, %140 : vector<8x128xf32>
    %142 = arith.addf %127, %141 : vector<8x128xf32>
    %143 = vector.extract_strided_slice %137 {offsets = [0, 0], sizes = [8, 128], strides = [1, 1]} : vector<24x128xf32> to vector<8x128xf32>
    %c7 = arith.constant 7 : index
    %144 = memref.load %arg4[%c7] : memref<16xf32, #tpu.memory_space<smem>>
    %145 = vector.broadcast %144 : f32 to vector<8x128xf32>
    %146 = arith.mulf %143, %145 : vector<8x128xf32>
    %147 = arith.addf %142, %146 : vector<8x128xf32>
    %c0_i32_61 = arith.constant 0 : i32
    %148 = arith.addi %66, %c0_i32_61 : i32
    %c1_62 = arith.constant 1 : index
    %149 = arith.index_cast %148 : i32 to index
    %c0_63 = arith.constant 0 : index
    %150 = vector.load %arg7[%c1_62, %149, %c0_63] : memref<2x24x128xf32, #tpu.memory_space<vmem>>, vector<1x24x128xf32>
    %151 = vector.shape_cast %150 : vector<1x24x128xf32> to vector<24x128xf32>
    %c127_i32_64 = arith.constant 127 : i32
    %152 = tpu.dynamic_rotate %151 by %c127_i32_64 dim 1 : vector<24x128xf32>, i32 -> vector<24x128xf32>
    %c23_i32_65 = arith.constant 23 : i32
    %153 = tpu.dynamic_rotate %152 by %c23_i32_65 dim 0 : vector<24x128xf32>, i32 -> vector<24x128xf32>
    %154 = arith.select %2, %152, %153 : vector<24x128xi1>, vector<24x128xf32>
    %155 = vector.extract_strided_slice %151 {offsets = [0, 0], sizes = [8, 128], strides = [1, 1]} : vector<24x128xf32> to vector<8x128xf32>
    %c8_66 = arith.constant 8 : index
    %156 = memref.load %arg4[%c8_66] : memref<16xf32, #tpu.memory_space<smem>>
    %157 = vector.broadcast %156 : f32 to vector<8x128xf32>
    %158 = arith.mulf %155, %157 : vector<8x128xf32>
    %159 = arith.addf %147, %158 : vector<8x128xf32>
    %160 = vector.extract_strided_slice %154 {offsets = [0, 0], sizes = [8, 128], strides = [1, 1]} : vector<24x128xf32> to vector<8x128xf32>
    %c9 = arith.constant 9 : index
    %161 = memref.load %arg4[%c9] : memref<16xf32, #tpu.memory_space<smem>>
    %162 = vector.broadcast %161 : f32 to vector<8x128xf32>
    %163 = arith.mulf %160, %162 : vector<8x128xf32>
    %164 = arith.addf %159, %163 : vector<8x128xf32>
    %c0_i32_67 = arith.constant 0 : i32
    %165 = arith.addi %66, %c0_i32_67 : i32
    %c1_68 = arith.constant 1 : index
    %166 = arith.index_cast %165 : i32 to index
    %c0_69 = arith.constant 0 : index
    %167 = vector.load %arg7[%c1_68, %166, %c0_69] : memref<2x24x128xf32, #tpu.memory_space<vmem>>, vector<1x24x128xf32>
    %168 = vector.shape_cast %167 : vector<1x24x128xf32> to vector<24x128xf32>
    %c118_i32_70 = arith.constant 118 : i32
    %169 = tpu.dynamic_rotate %168 by %c118_i32_70 dim 1 : vector<24x128xf32>, i32 -> vector<24x128xf32>
    %c23_i32_71 = arith.constant 23 : i32
    %170 = tpu.dynamic_rotate %169 by %c23_i32_71 dim 0 : vector<24x128xf32>, i32 -> vector<24x128xf32>
    %171 = arith.select %4, %169, %170 : vector<24x128xi1>, vector<24x128xf32>
    %c127_i32_72 = arith.constant 127 : i32
    %172 = tpu.dynamic_rotate %171 by %c127_i32_72 dim 1 : vector<24x128xf32>, i32 -> vector<24x128xf32>
    %c23_i32_73 = arith.constant 23 : i32
    %173 = tpu.dynamic_rotate %172 by %c23_i32_73 dim 0 : vector<24x128xf32>, i32 -> vector<24x128xf32>
    %174 = arith.select %2, %172, %173 : vector<24x128xi1>, vector<24x128xf32>
    %175 = vector.extract_strided_slice %171 {offsets = [0, 0], sizes = [8, 128], strides = [1, 1]} : vector<24x128xf32> to vector<8x128xf32>
    %c10 = arith.constant 10 : index
    %176 = memref.load %arg4[%c10] : memref<16xf32, #tpu.memory_space<smem>>
    %177 = vector.broadcast %176 : f32 to vector<8x128xf32>
    %178 = arith.mulf %175, %177 : vector<8x128xf32>
    %179 = arith.addf %164, %178 : vector<8x128xf32>
    %180 = vector.extract_strided_slice %174 {offsets = [0, 0], sizes = [8, 128], strides = [1, 1]} : vector<24x128xf32> to vector<8x128xf32>
    %c11 = arith.constant 11 : index
    %181 = memref.load %arg4[%c11] : memref<16xf32, #tpu.memory_space<smem>>
    %182 = vector.broadcast %181 : f32 to vector<8x128xf32>
    %183 = arith.mulf %180, %182 : vector<8x128xf32>
    %184 = arith.addf %179, %183 : vector<8x128xf32>
    %c0_i32_74 = arith.constant 0 : i32
    %185 = arith.addi %66, %c0_i32_74 : i32
    %c1_75 = arith.constant 1 : index
    %186 = arith.index_cast %185 : i32 to index
    %c0_76 = arith.constant 0 : index
    %187 = vector.load %arg7[%c1_75, %186, %c0_76] : memref<2x24x128xf32, #tpu.memory_space<vmem>>, vector<1x24x128xf32>
    %188 = vector.shape_cast %187 : vector<1x24x128xf32> to vector<24x128xf32>
    %c28_i32_77 = arith.constant 28 : i32
    %189 = tpu.dynamic_rotate %188 by %c28_i32_77 dim 1 : vector<24x128xf32>, i32 -> vector<24x128xf32>
    %c23_i32_78 = arith.constant 23 : i32
    %190 = tpu.dynamic_rotate %189 by %c23_i32_78 dim 0 : vector<24x128xf32>, i32 -> vector<24x128xf32>
    %191 = arith.select %6, %189, %190 : vector<24x128xi1>, vector<24x128xf32>
    %c127_i32_79 = arith.constant 127 : i32
    %192 = tpu.dynamic_rotate %191 by %c127_i32_79 dim 1 : vector<24x128xf32>, i32 -> vector<24x128xf32>
    %c23_i32_80 = arith.constant 23 : i32
    %193 = tpu.dynamic_rotate %192 by %c23_i32_80 dim 0 : vector<24x128xf32>, i32 -> vector<24x128xf32>
    %194 = arith.select %2, %192, %193 : vector<24x128xi1>, vector<24x128xf32>
    %195 = vector.extract_strided_slice %191 {offsets = [0, 0], sizes = [8, 128], strides = [1, 1]} : vector<24x128xf32> to vector<8x128xf32>
    %c12 = arith.constant 12 : index
    %196 = memref.load %arg4[%c12] : memref<16xf32, #tpu.memory_space<smem>>
    %197 = vector.broadcast %196 : f32 to vector<8x128xf32>
    %198 = arith.mulf %195, %197 : vector<8x128xf32>
    %199 = arith.addf %184, %198 : vector<8x128xf32>
    %200 = vector.extract_strided_slice %194 {offsets = [0, 0], sizes = [8, 128], strides = [1, 1]} : vector<24x128xf32> to vector<8x128xf32>
    %c13 = arith.constant 13 : index
    %201 = memref.load %arg4[%c13] : memref<16xf32, #tpu.memory_space<smem>>
    %202 = vector.broadcast %201 : f32 to vector<8x128xf32>
    %203 = arith.mulf %200, %202 : vector<8x128xf32>
    %204 = arith.addf %199, %203 : vector<8x128xf32>
    %c0_i32_81 = arith.constant 0 : i32
    %205 = arith.addi %66, %c0_i32_81 : i32
    %c1_82 = arith.constant 1 : index
    %206 = arith.index_cast %205 : i32 to index
    %c0_83 = arith.constant 0 : index
    %207 = vector.load %arg7[%c1_82, %206, %c0_83] : memref<2x24x128xf32, #tpu.memory_space<vmem>>, vector<1x24x128xf32>
    %208 = vector.shape_cast %207 : vector<1x24x128xf32> to vector<24x128xf32>
    %c18_i32_84 = arith.constant 18 : i32
    %209 = tpu.dynamic_rotate %208 by %c18_i32_84 dim 1 : vector<24x128xf32>, i32 -> vector<24x128xf32>
    %c23_i32_85 = arith.constant 23 : i32
    %210 = tpu.dynamic_rotate %209 by %c23_i32_85 dim 0 : vector<24x128xf32>, i32 -> vector<24x128xf32>
    %211 = arith.select %8, %209, %210 : vector<24x128xi1>, vector<24x128xf32>
    %c127_i32_86 = arith.constant 127 : i32
    %212 = tpu.dynamic_rotate %211 by %c127_i32_86 dim 1 : vector<24x128xf32>, i32 -> vector<24x128xf32>
    %c23_i32_87 = arith.constant 23 : i32
    %213 = tpu.dynamic_rotate %212 by %c23_i32_87 dim 0 : vector<24x128xf32>, i32 -> vector<24x128xf32>
    %214 = arith.select %2, %212, %213 : vector<24x128xi1>, vector<24x128xf32>
    %215 = vector.extract_strided_slice %211 {offsets = [0, 0], sizes = [8, 128], strides = [1, 1]} : vector<24x128xf32> to vector<8x128xf32>
    %c14 = arith.constant 14 : index
    %216 = memref.load %arg4[%c14] : memref<16xf32, #tpu.memory_space<smem>>
    %217 = vector.broadcast %216 : f32 to vector<8x128xf32>
    %218 = arith.mulf %215, %217 : vector<8x128xf32>
    %219 = arith.addf %204, %218 : vector<8x128xf32>
    %220 = vector.extract_strided_slice %214 {offsets = [0, 0], sizes = [8, 128], strides = [1, 1]} : vector<24x128xf32> to vector<8x128xf32>
    %c15 = arith.constant 15 : index
    %221 = memref.load %arg4[%c15] : memref<16xf32, #tpu.memory_space<smem>>
    %222 = vector.broadcast %221 : f32 to vector<8x128xf32>
    %223 = arith.mulf %220, %222 : vector<8x128xf32>
    %224 = arith.addf %219, %223 : vector<8x128xf32>
    %cst_88 = arith.constant 5.000000e-01 : f32
    %225 = vector.broadcast %cst_88 : f32 to vector<8x128xf32>
    %226 = arith.mulf %225, %224 : vector<8x128xf32>
    %227 = math.tanh %226 : vector<8x128xf32>
    %cst_89 = arith.constant 5.000000e-01 : f32
    %228 = vector.broadcast %cst_89 : f32 to vector<8x128xf32>
    %229 = arith.mulf %228, %227 : vector<8x128xf32>
    %cst_90 = arith.constant 5.000000e-01 : f32
    %230 = vector.broadcast %cst_90 : f32 to vector<8x128xf32>
    %231 = arith.addf %229, %230 : vector<8x128xf32>
    %c0_91 = arith.constant 0 : index
    %232 = arith.index_cast %66 : i32 to index
    %c0_92 = arith.constant 0 : index
    %233 = vector.load %arg6[%c0_91, %232, %c0_92] : memref<1x24x128xf32, #tpu.memory_space<vmem>>, vector<1x8x128xf32>
    %234 = vector.shape_cast %233 : vector<1x8x128xf32> to vector<8x128xf32>
    %235 = vector.shape_cast %231 : vector<8x128xf32> to vector<1x8x128xf32>
    tpu.vector_store %arg6[%c0_91, %232, %c0_92], %235 {strides = array<i32>} : memref<1x24x128xf32, #tpu.memory_space<vmem>>, vector<1x8x128xf32>,
    %c1_i32_93 = arith.constant 1 : i32
    return
  }
  func.func @transform_0(%arg0: i32) -> (i32, i32, i32, i32) {
    %c0_i32 = arith.constant 0 : i32
    %c0_i32_0 = arith.constant 0 : i32
    %c0_i32_1 = arith.constant 0 : i32
    %c0_i32_2 = arith.constant 0 : i32
    return %arg0, %c0_i32, %c0_i32_0, %c0_i32_1 : i32, i32, i32, i32
  }
  func.func @transform_1(%arg0: i32) -> i32 {
    %c0_i32 = arith.constant 0 : i32
    %c0_i32_0 = arith.constant 0 : i32
    return %c0_i32 : i32
  }
  func.func @transform_2(%arg0: i32) -> i32 {
    %c0_i32 = arith.constant 0 : i32
    %c0_i32_0 = arith.constant 0 : i32
    return %c0_i32 : i32
  }
  func.func @transform_3(%arg0: i32) -> i32 {
    %c0_i32 = arith.constant 0 : i32
    %c0_i32_0 = arith.constant 0 : i32
    return %c0_i32 : i32
  }
  func.func @transform_4(%arg0: i32) -> i32 {
    %c0_i32 = arith.constant 0 : i32
    %c0_i32_0 = arith.constant 0 : i32
    return %c0_i32 : i32
  }
  func.func @transform_5(%arg0: i32) -> (i32, i32, i32) {
    %c0_i32 = arith.constant 0 : i32
    %c0_i32_0 = arith.constant 0 : i32
    %c0_i32_1 = arith.constant 0 : i32
    return %arg0, %c0_i32, %c0_i32_0 : i32, i32, i32
  }
}

</mosaic_0001>

<llo_original>
// kernel: pgen_forward.2
$region0: #{pgen_forward.2}
  #allocation0 [shape = 'u32[]', space=smem, size = 0x4, offset = 0x4, fixed_abs, tag = 'smem constant byte address 0x4 - core index']
  #allocation1 [shape = 'u32[144,128]{1,0:T(1,128)}', space=vmem, size = 0x12000, scoped, tag = 'internal scratch']
  %s0 = inlined_call_operand.vmem [shape: f32[2,4,24,128], index: 0, kind: input, shape index: {}]
  %s1 = inlined_call_operand.vmem [shape: f32[24,128], index: 1, kind: input, shape index: {}]
  %s2 = inlined_call_operand.vmem [shape: f32[2,32], index: 2, kind: input, shape index: {}]
  %s3 = inlined_call_operand.vmem [shape: f32[2], index: 3, kind: input, shape index: {}]
  %s4 = inlined_call_operand.vmem [shape: f32[2,2,24,128], index: 4, kind: output, shape index: {0}]
  %s5 = inlined_call_operand.vmem [shape: f32[2,8,128], index: 5, kind: output, shape index: {1}]
  %6 = xla_tuple %s4, %s5
  %s7 = sld [smem:[#allocation0]]
  $region65: #{pgen_forward.2} parent=0
    _
  %s9 = ssub.s32 1, %s7
  %s10 = scalar_select 0, %s9, %s7
  $region1: #{pgen_forward.2} parent=0
    #allocation2 [shape = 'u8[1024]{0}', space=smem, size = 0x400, scoped, tag = 'input window, operand 2, single buffered']
    #allocation3 [shape = 's32[2]{0}', space=sflag, size = 0x8, scoped, tag = 'scoped memory for pgen_forward.2']
    #allocation4 [shape = 'u8[512]{0}', space=smem, size = 0x200, scoped, tag = 'input window, operand 3, single buffered']
    #allocation5 [shape = 's32[1]{0}', space=sflag, size = 0x4, scoped, tag = 'scoped memory for pgen_forward.2']
    %11 = vsyncpa [#allocation3], 0
    %12 = vsyncpa [#allocation5], 0
    loop: start=0, step=1, limit=4
    $region2: #{pgen_forward.2} parent=1 // loop_pre_header
      _
    $region3: #{pgen_forward.2} parent=1 // loop_header
      %s14 = sphi 0, %s18
      %p15 = scmp.ge.s32.totalorder %s14, 4
      %s24 = sphi 0, %s26
      %s27 = sphi 0, %s24
      %s28 = sphi 0, %s27
      %s44 = sphi 0, %s28
      %s48 = sphi 0, %s48
      %s50 = sphi 0, %s48
      %s51 = sphi 0, %s50
      %s65 = sphi 0, %s51
      %s69 = sphi 0, %s69
      %s71 = sphi 0, %s69
      %s72 = sphi 0, %s71
      %s86 = sphi 0, %s72
      %s90 = sphi 0, %s90
      %s92 = sphi 0, %s90
      %s93 = sphi 0, %s92
      %s107 = sphi 0, %s93
      %s113 = sphi 0, %s115
      %s116 = sphi 0, %s113
      %s117 = sphi 0, %s116
      %s133 = sphi 0, %s117
      %s139 = sphi 0, %s141
      %s142 = sphi 0, %s139
      %s143 = sphi 0, %s142
      %s159 = sphi 0, %s143
    $region4: #{pgen_forward.2} parent=1 // loop_header_branch
      %17 = sbr.rel (%p15) target = $region8
    $region5: #{pgen_forward.2} parent=1 // loop_body
      %s19 = ssub.s32 %s14, 1
      %s20 = ssub.s32 %s14, 2
      %s21 = sadd.s32 %s14, 1
      %s22 = ssub.s32 %s14, %s21
      %p23 = scmp.eq.s32.totalorder %s22, 0
      %s25 = sadd.s32 %s24, 1
      %s26 = scalar_select %p23, %s24, %s25
      %p29 = pneg %p23
      %p30 = scmp.eq.s32.totalorder %s14, 1
      %p31 = por %p29, %p30
      %p32 = scmp.ne.s32.totalorder %s24, %s27
      %p33 = scmp.eq.s32.totalorder %s14, 0
      %p34 = por %p32, %p33
      %p35 = scmp.ne.s32.totalorder %s24, %s27
      %p36 = scmp.eq.s32.totalorder %s19, 1
      %p37 = por %p35, %p36
      %p38 = scmp.ne.s32.totalorder %s27, %s28
      %p39 = scmp.eq.s32.totalorder %s19, 0
      %p40 = por %p38, %p39
      %p41 = scmp.ne.s32.totalorder %s27, %s28
      %p42 = scmp.eq.s32.totalorder %s20, 1
      %p43 = por %p41, %p42
      %p45 = scmp.ne.s32.totalorder %s28, %s44
      %p46 = scmp.eq.s32.totalorder %s20, 0
      %p47 = por %p45, %p46
      %s49 = sadd.s32 %s48, 1
      %p52 = scmp.eq.s32.totalorder %s14, 1
      %p53 = scmp.ne.s32.totalorder %s48, %s50
      %p54 = scmp.eq.s32.totalorder %s14, 0
      %p55 = por %p53, %p54
      %p56 = scmp.ne.s32.totalorder %s48, %s50
      %p57 = scmp.eq.s32.totalorder %s19, 1
      %p58 = por %p56, %p57
      %p59 = scmp.ne.s32.totalorder %s50, %s51
      %p60 = scmp.eq.s32.totalorder %s19, 0
      %p61 = por %p59, %p60
      %p62 = scmp.ne.s32.totalorder %s50, %s51
      %p63 = scmp.eq.s32.totalorder %s20, 1
      %p64 = por %p62, %p63
      %p66 = scmp.ne.s32.totalorder %s51, %s65
      %p67 = scmp.eq.s32.totalorder %s20, 0
      %p68 = por %p66, %p67
      %s70 = sadd.s32 %s69, 1
      %p73 = scmp.eq.s32.totalorder %s14, 1
      %p74 = scmp.ne.s32.totalorder %s69, %s71
      %p75 = scmp.eq.s32.totalorder %s14, 0
      %p76 = por %p74, %p75
      %p77 = scmp.ne.s32.totalorder %s69, %s71
      %p78 = scmp.eq.s32.totalorder %s19, 1
      %p79 = por %p77, %p78
      %p80 = scmp.ne.s32.totalorder %s71, %s72
      %p81 = scmp.eq.s32.totalorder %s19, 0
      %p82 = por %p80, %p81
      %p83 = scmp.ne.s32.totalorder %s71, %s72
      %p84 = scmp.eq.s32.totalorder %s20, 1
      %p85 = por %p83, %p84
      %p87 = scmp.ne.s32.totalorder %s72, %s86
      %p88 = scmp.eq.s32.totalorder %s20, 0
      %p89 = por %p87, %p88
      %s91 = sadd.s32 %s90, 1
      %p94 = scmp.eq.s32.totalorder %s14, 1
      %p95 = scmp.ne.s32.totalorder %s90, %s92
      %p96 = scmp.eq.s32.totalorder %s14, 0
      %p97 = por %p95, %p96
      %p98 = scmp.ne.s32.totalorder %s90, %s92
      %p99 = scmp.eq.s32.totalorder %s19, 1
      %p100 = por %p98, %p99
      %p101 = scmp.ne.s32.totalorder %s92, %s93
      %p102 = scmp.eq.s32.totalorder %s19, 0
      %p103 = por %p101, %p102
      %p104 = scmp.ne.s32.totalorder %s92, %s93
      %p105 = scmp.eq.s32.totalorder %s20, 1
      %p106 = por %p104, %p105
      %p108 = scmp.ne.s32.totalorder %s93, %s107
      %p109 = scmp.eq.s32.totalorder %s20, 0
      %p110 = por %p108, %p109
      %s111 = ssub.s32 %s14, %s21
      %p112 = scmp.eq.s32.totalorder %s111, 0
      %s114 = sadd.s32 %s113, 1
      %s115 = scalar_select %p112, %s113, %s114
      %p118 = pneg %p112
      %p119 = scmp.eq.s32.totalorder %s14, 1
      %p120 = por %p118, %p119
      %p121 = scmp.ne.s32.totalorder %s113, %s116
      %p122 = scmp.eq.s32.totalorder %s14, 0
      %p123 = por %p121, %p122
      %p124 = scmp.ne.s32.totalorder %s113, %s116
      %p125 = scmp.eq.s32.totalorder %s19, 1
      %p126 = por %p124, %p125
      %p127 = scmp.ne.s32.totalorder %s116, %s117
      %p128 = scmp.eq.s32.totalorder %s19, 0
      %p129 = por %p127, %p128
      %p130 = scmp.ne.s32.totalorder %s116, %s117
      %p131 = scmp.eq.s32.totalorder %s20, 1
      %p132 = por %p130, %p131
      %p134 = scmp.ne.s32.totalorder %s117, %s133
      %p135 = scmp.eq.s32.totalorder %s20, 0
      %p136 = por %p134, %p135
      %s137 = ssub.s32 %s14, %s21
      %p138 = scmp.eq.s32.totalorder %s137, 0
      %s140 = sadd.s32 %s139, 1
      %s141 = scalar_select %p138, %s139, %s140
      %p144 = pneg %p138
      %p145 = scmp.eq.s32.totalorder %s14, 1
      %p146 = por %p144, %p145
      %p147 = scmp.ne.s32.totalorder %s139, %s142
      %p148 = scmp.eq.s32.totalorder %s14, 0
      %p149 = por %p147, %p148
      %p150 = scmp.ne.s32.totalorder %s139, %s142
      %p151 = scmp.eq.s32.totalorder %s19, 1
      %p152 = por %p150, %p151
      %p153 = scmp.ne.s32.totalorder %s142, %s143
      %p154 = scmp.eq.s32.totalorder %s19, 0
      %p155 = por %p153, %p154
      %p156 = scmp.ne.s32.totalorder %s142, %s143
      %p157 = scmp.eq.s32.totalorder %s20, 1
      %p158 = por %p156, %p157
      %p160 = scmp.ne.s32.totalorder %s143, %s159
      %p161 = scmp.eq.s32.totalorder %s20, 0
      %p162 = por %p160, %p161
      %p163 = scmp.le.s32.totalorder 1, %s14
      %p164 = scmp.lt.s32.totalorder %s14, 3
      %p165 = pnand %p163, %p164
      %p166 = pneg %p165
      // Predicated region
      $region9: #{pgen_forward.2} parent=5 // pred_check
        _
      $region10: #{pgen_forward.2} parent=5 // pred_check_branch
        %168 = sbr.rel (%p165) target = $region12
      $region11: #{pgen_forward.2} parent=5 // pred_region
        %s169 = ssub.s32 %s14, 1
        // Predicated region
        $region13: #{pgen_forward.2} parent=11 // pred_check
          %p170 = pneg %p61
        $region14: #{pgen_forward.2} parent=11 // pred_check_branch
          %172 = sbr.rel (%p170) target = $region16
        $region15: #{pgen_forward.2} parent=11 // pred_region
          _
        $region16: #{pgen_forward.2} parent=11 // pred_fallthru
          _
        // Predicated region
        $region17: #{pgen_forward.2} parent=11 // pred_check
          %p173 = pneg %p82
        $region18: #{pgen_forward.2} parent=11 // pred_check_branch
          %175 = sbr.rel (%p173) target = $region20
        $region19: #{pgen_forward.2} parent=11 // pred_region
          %s177 = ssub.s32 32, 32
          %178 = vsyncadd [#allocation3], %s177
          %s180 = sshll.u32 %s2, 4
          %s181 = int_to_ptr.vmem [resolvable:$true] %s180
          %183 = dma.vmem_to_smem %s181, 32, [#allocation2], [#allocation3]
        $region20: #{pgen_forward.2} parent=11 // pred_fallthru
          _
        // Predicated region
        $region21: #{pgen_forward.2} parent=11 // pred_check
          %p184 = pneg %p103
        $region22: #{pgen_forward.2} parent=11 // pred_check_branch
          %186 = sbr.rel (%p184) target = $region24
        $region23: #{pgen_forward.2} parent=11 // pred_region
          %s188 = ssub.s32 16, 16
          %189 = vsyncadd [#allocation5], %s188
          %s191 = sshll.u32 %s3, 4
          %s192 = int_to_ptr.vmem [resolvable:$true] %s191
          %194 = dma.vmem_to_smem %s192, 16, [#allocation4], [#allocation5]
        $region24: #{pgen_forward.2} parent=11 // pred_fallthru
          _
      $region12: #{pgen_forward.2} parent=5 // pred_fallthru
        _
      %p195 = scmp.lt.s32.totalorder %s14, 2
      // Predicated region
      $region25: #{pgen_forward.2} parent=5 // pred_check
        %p196 = pneg %p195
      $region26: #{pgen_forward.2} parent=5 // pred_check_branch
        %198 = sbr.rel (%p196) target = $region28
      $region27: #{pgen_forward.2} parent=5 // pred_region
        // Predicated region
        $region29: #{pgen_forward.2} parent=27 // pred_check
          %p199 = pneg %p34
        $region30: #{pgen_forward.2} parent=27 // pred_check_branch
          %201 = sbr.rel (%p199) target = $region32
        $region31: #{pgen_forward.2} parent=27 // pred_region
          %p202 = scmp.lt.s32.totalorder %s14, 1
          %s203 = scalar_select %p202, %s14, 1
          %s204 = smul.addr %s203, 12
          %s205 = smul.addr %s204, 8
          %s206 = scalar_lea.vmem %s0, %s205
        $region32: #{pgen_forward.2} parent=27 // pred_fallthru
          _
      $region28: #{pgen_forward.2} parent=5 // pred_fallthru
        _
      %p207 = scmp.le.s32.totalorder 1, %s14
      %p208 = scmp.lt.s32.totalorder %s14, 3
      %p209 = pnand %p207, %p208
      %p210 = pneg %p209
      // Predicated region
      $region33: #{pgen_forward.2} parent=5 // pred_check
        _
      $region34: #{pgen_forward.2} parent=5 // pred_check_branch
        %212 = sbr.rel (%p209) target = $region36
      $region35: #{pgen_forward.2} parent=5 // pred_region
        %s213 = ssub.s32 %s14, 1
        // Predicated region
        $region37: #{pgen_forward.2} parent=35 // pred_check
          %p214 = pneg %p82
        $region38: #{pgen_forward.2} parent=35 // pred_check_branch
          %216 = sbr.rel (%p214) target = $region40
        $region39: #{pgen_forward.2} parent=35 // pred_region
          %217 = dma.done [#allocation3], 32
        $region40: #{pgen_forward.2} parent=35 // pred_fallthru
          _
        // Predicated region
        $region41: #{pgen_forward.2} parent=35 // pred_check
          %p218 = pneg %p103
        $region42: #{pgen_forward.2} parent=35 // pred_check_branch
          %220 = sbr.rel (%p218) target = $region44
        $region43: #{pgen_forward.2} parent=35 // pred_region
          %221 = dma.done [#allocation5], 16
        $region44: #{pgen_forward.2} parent=35 // pred_fallthru
          _
        %222 = sfence
        %p223 = scmp.lt.s32.totalorder %s19, 1
        %s224 = scalar_select %p223, %s19, 1
        %s225 = smul.addr %s224, 12
        %s226 = smul.addr %s225, 8
        %s227 = scalar_lea.vmem %s0, %s226
        %p228 = pneg %p40
        %p229 = pneg %p37
        %p230 = pneg %p61
        %p231 = pneg %p58
        %p232 = pneg %p82
        %p233 = pneg %p79
        %p234 = pneg %p103
        %p235 = pneg %p100
        %p236 = pneg %p129
        %p237 = pneg %p126
        %p238 = scmp.lt.s32.totalorder %s19, 1
        %s239 = scalar_select %p238, %s19, 1
        %s240 = smul.addr %s239, 6
        %s241 = smul.addr %s240, 8
        %s242 = scalar_lea.vmem %s4, %s241
        %p243 = pneg %p155
        %p244 = pneg %p152
        %p245 = scmp.lt.s32.totalorder %s19, 1
        %s246 = scalar_select %p245, %s19, 1
        %s247 = smul.addr %s246, 8
        %s248 = scalar_lea.vmem %s5, %s247
        %p249 = scmp.lt.s32.totalorder %s19, 1
        %s250 = scalar_select %p249, %s19, 1
        %s251 = smul.addr %s250, 12
        %s252 = smul.addr %s251, 8
        %s253 = scalar_lea.vmem %s0, %s252
        %p254 = scmp.lt.s32.totalorder %s19, 1
        %s255 = scalar_select %p254, %s19, 1
        %s256 = smul.addr %s255, 6
        %s257 = smul.addr %s256, 8
        %s258 = scalar_lea.vmem %s4, %s257
        %p259 = scmp.lt.s32.totalorder %s19, 1
        %s260 = scalar_select %p259, %s19, 1
        %s261 = smul.addr %s260, 8
        %s262 = scalar_lea.vmem %s5, %s261
        %v263 = vlaneseq
        %v264 = vand.u32 %v263, 127
        %vm265 = vcmp.lt.s32.totalorder %v264, 127
        %vm266 = vcmp.lt.s32.totalorder %v264, 118
        %vm267 = vcmp.lt.s32.totalorder %v264, 28
        %vm268 = vcmp.lt.s32.totalorder %v264, 18
        %269 = vst [vmem:[%s262] sm:$0xff] 0.0
        %270 = vst [vmem:[%s258 + $0x8] sm:$0xff] 0.0
        %271 = vst [vmem:[%s258 + $0x10] sm:$0xff] 0.0
        %s272 = scalar_lea.vmem %s258, 24
        %273 = vst [vmem:[%s272 + $0x8] sm:$0xff] 0.0
        %274 = vst [vmem:[%s272 + $0x10] sm:$0xff] 0.0
        %v275 = vld [vmem:[%s253] sm:$0xff]
        %v276 = vld [vmem:[%s253 + $0x8] sm:$0xff]
        %v277 = vld [vmem:[%s253 + $0x10] sm:$0xff]
        %278 = vrot.lane.b32.xlu0 %v275, 127
        %v279 = vpop.permute.xlu0 %278
        %280 = vrot.lane.b32.xlu0 %v276, 127
        %v281 = vpop.permute.xlu0 %280
        %v282 = vrot.slane %v279, 1
        %v283 = vrot.slane %v281, 1
        %v284 = vlaneseq
        %v285 = vshrl.u32 %v284, 7
        %vm286 = vcmp.lt.s32.totalorder %v285, 7
        %v287 = vsel %vm286, %v282, %v283
        %v288 = vsel %vm265, %v279, %v287
        %s289 = sld [smem:[#allocation2]]
        %v290 = vstv %s289
        %v291 = vmul.f32 %v275, %v290
        %v292 = vadd.f32 %v291, 0.0
        %s293 = sld [smem:[#allocation2 + $0x1]]
        %v294 = vstv %s293
        %v295 = vmul.f32 %v288, %v294
        %v296 = vadd.f32 %v292, %v295
        %s297 = sld [smem:[#allocation2 + $0x80]]
        %v298 = vstv %s297
        %v299 = vmul.f32 %v275, %v298
        %v300 = vadd.f32 %v299, 0.0
        %s301 = sld [smem:[#allocation2 + $0x81]]
        %v302 = vstv %s301
        %v303 = vmul.f32 %v288, %v302
        %v304 = vadd.f32 %v300, %v303
        %305 = vrot.lane.b32.xlu0 %v275, 118
        %v306 = vpop.permute.xlu0 %305
        %307 = vrot.lane.b32.xlu0 %v276, 118
        %v308 = vpop.permute.xlu0 %307
        %309 = vrot.lane.b32.xlu0 %v277, 118
        %v310 = vpop.permute.xlu0 %309
        %v311 = vrot.slane %v306, 1
        %v312 = vrot.slane %v308, 1
        %v313 = vrot.slane %v310, 1
        %v314 = vsel %vm286, %v312, %v313
        %v315 = vsel %vm286, %v311, %v312
        %v316 = vsel %vm266, %v306, %v315
        %v317 = vsel %vm266, %v308, %v314
        %318 = vrot.lane.b32.xlu0 %v316, 127
        %v319 = vpop.permute.xlu0 %318
        %320 = vrot.lane.b32.xlu0 %v317, 127
        %v321 = vpop.permute.xlu0 %320
        %v322 = vrot.slane %v319, 1
        %v323 = vrot.slane %v321, 1
        %v324 = vsel %vm286, %v322, %v323
        %v325 = vsel %vm265, %v319, %v324
        %s326 = sld [smem:[#allocation2 + $0x2]]
        %v327 = vstv %s326
        %v328 = vmul.f32 %v316, %v327
        %v329 = vadd.f32 %v296, %v328
        %s330 = sld [smem:[#allocation2 + $0x3]]
        %v331 = vstv %s330
        %v332 = vmul.f32 %v325, %v331
        %v333 = vadd.f32 %v329, %v332
        %s334 = sld [smem:[#allocation2 + $0x82]]
        %v335 = vstv %s334
        %v336 = vmul.f32 %v316, %v335
        %v337 = vadd.f32 %v304, %v336
        %s338 = sld [smem:[#allocation2 + $0x83]]
        %v339 = vstv %s338
        %v340 = vmul.f32 %v325, %v339
        %v341 = vadd.f32 %v337, %v340
        %342 = vrot.lane.b32.xlu0 %v275, 28
        %v343 = vpop.permute.xlu0 %342
        %344 = vrot.lane.b32.xlu0 %v276, 28
        %v345 = vpop.permute.xlu0 %344
        %346 = vrot.lane.b32.xlu0 %v277, 28
        %v347 = vpop.permute.xlu0 %346
        %v348 = vrot.slane %v343, 1
        %v349 = vrot.slane %v345, 1
        %v350 = vrot.slane %v347, 1
        %v351 = vsel %vm286, %v349, %v350
        %v352 = vsel %vm286, %v348, %v349
        %v353 = vsel %vm267, %v343, %v352
        %v354 = vsel %vm267, %v345, %v351
        %355 = vrot.lane.b32.xlu0 %v353, 127
        %v356 = vpop.permute.xlu0 %355
        %357 = vrot.lane.b32.xlu0 %v354, 127
        %v358 = vpop.permute.xlu0 %357
        %v359 = vrot.slane %v356, 1
        %v360 = vrot.slane %v358, 1
        %v361 = vsel %vm286, %v359, %v360
        %v362 = vsel %vm265, %v356, %v361
        %s363 = sld [smem:[#allocation2 + $0x4]]
        %v364 = vstv %s363
        %v365 = vmul.f32 %v353, %v364
        %v366 = vadd.f32 %v333, %v365
        %s367 = sld [smem:[#allocation2 + $0x5]]
        %v368 = vstv %s367
        %v369 = vmul.f32 %v362, %v368
        %v370 = vadd.f32 %v366, %v369
        %s371 = sld [smem:[#allocation2 + $0x84]]
        %v372 = vstv %s371
        %v373 = vmul.f32 %v353, %v372
        %v374 = vadd.f32 %v341, %v373
        %s375 = sld [smem:[#allocation2 + $0x85]]
        %v376 = vstv %s375
        %v377 = vmul.f32 %v362, %v376
        %v378 = vadd.f32 %v374, %v377
        %379 = vrot.lane.b32.xlu0 %v275, 18
        %v380 = vpop.permute.xlu0 %379
        %381 = vrot.lane.b32.xlu0 %v276, 18
        %v382 = vpop.permute.xlu0 %381
        %383 = vrot.lane.b32.xlu0 %v277, 18
        %v384 = vpop.permute.xlu0 %383
        %v385 = vrot.slane %v380, 1
        %v386 = vrot.slane %v382, 1
        %v387 = vrot.slane %v384, 1
        %v388 = vsel %vm286, %v386, %v387
        %v389 = vsel %vm286, %v385, %v386
        %v390 = vsel %vm268, %v380, %v389
        %v391 = vsel %vm268, %v382, %v388
        %392 = vrot.lane.b32.xlu0 %v390, 127
        %v393 = vpop.permute.xlu0 %392
        %394 = vrot.lane.b32.xlu0 %v391, 127
        %v395 = vpop.permute.xlu0 %394
        %v396 = vrot.slane %v393, 1
        %v397 = vrot.slane %v395, 1
        %v398 = vsel %vm286, %v396, %v397
        %v399 = vsel %vm265, %v393, %v398
        %s400 = sld [smem:[#allocation2 + $0x6]]
        %v401 = vstv %s400
        %v402 = vmul.f32 %v390, %v401
        %v403 = vadd.f32 %v370, %v402
        %s404 = sld [smem:[#allocation2 + $0x7]]
        %v405 = vstv %s404
        %v406 = vmul.f32 %v399, %v405
        %v407 = vadd.f32 %v403, %v406
        %s408 = sld [smem:[#allocation2 + $0x86]]
        %v409 = vstv %s408
        %v410 = vmul.f32 %v390, %v409
        %v411 = vadd.f32 %v378, %v410
        %s412 = sld [smem:[#allocation2 + $0x87]]
        %v413 = vstv %s412
        %v414 = vmul.f32 %v399, %v413
        %v415 = vadd.f32 %v411, %v414
        %s416 = sadd.s32 0, 24
        %s417 = scalar_lea.vmem %s253, %s416
        %v418 = vld [vmem:[%s417] sm:$0xff]
        %v419 = vld [vmem:[%s417 + $0x8] sm:$0xff]
        %v420 = vld [vmem:[%s417 + $0x10] sm:$0xff]
        %421 = vrot.lane.b32.xlu0 %v418, 127
        %v422 = vpop.permute.xlu0 %421
        %423 = vrot.lane.b32.xlu0 %v419, 127
        %v424 = vpop.permute.xlu0 %423
        %v425 = vrot.slane %v422, 1
        %v426 = vrot.slane %v424, 1
        %v427 = vsel %vm286, %v425, %v426
        %v428 = vsel %vm265, %v422, %v427
        %s429 = sld [smem:[#allocation2 + $0x8]]
        %v430 = vstv %s429
        %v431 = vmul.f32 %v418, %v430
        %v432 = vadd.f32 %v407, %v431
        %s433 = sld [smem:[#allocation2 + $0x9]]
        %v434 = vstv %s433
        %v435 = vmul.f32 %v428, %v434
        %v436 = vadd.f32 %v432, %v435
        %s437 = sld [smem:[#allocation2 + $0x88]]
        %v438 = vstv %s437
        %v439 = vmul.f32 %v418, %v438
        %v440 = vadd.f32 %v415, %v439
        %s441 = sld [smem:[#allocation2 + $0x89]]
        %v442 = vstv %s441
        %v443 = vmul.f32 %v428, %v442
        %v444 = vadd.f32 %v440, %v443
        %445 = vrot.lane.b32.xlu0 %v418, 118
        %v446 = vpop.permute.xlu0 %445
        %447 = vrot.lane.b32.xlu0 %v419, 118
        %v448 = vpop.permute.xlu0 %447
        %449 = vrot.lane.b32.xlu0 %v420, 118
        %v450 = vpop.permute.xlu0 %449
        %v451 = vrot.slane %v446, 1
        %v452 = vrot.slane %v448, 1
        %v453 = vrot.slane %v450, 1
        %v454 = vsel %vm286, %v452, %v453
        %v455 = vsel %vm286, %v451, %v452
        %v456 = vsel %vm266, %v446, %v455
        %v457 = vsel %vm266, %v448, %v454
        %458 = vrot.lane.b32.xlu0 %v456, 127
        %v459 = vpop.permute.xlu0 %458
        %460 = vrot.lane.b32.xlu0 %v457, 127
        %v461 = vpop.permute.xlu0 %460
        %v462 = vrot.slane %v459, 1
        %v463 = vrot.slane %v461, 1
        %v464 = vsel %vm286, %v462, %v463
        %v465 = vsel %vm265, %v459, %v464
        %s466 = sld [smem:[#allocation2 + $0xa]]
        %v467 = vstv %s466
        %v468 = vmul.f32 %v456, %v467
        %v469 = vadd.f32 %v436, %v468
        %s470 = sld [smem:[#allocation2 + $0xb]]
        %v471 = vstv %s470
        %v472 = vmul.f32 %v465, %v471
        %v473 = vadd.f32 %v469, %v472
        %s474 = sld [smem:[#allocation2 + $0x8a]]
        %v475 = vstv %s474
        %v476 = vmul.f32 %v456, %v475
        %v477 = vadd.f32 %v444, %v476
        %s478 = sld [smem:[#allocation2 + $0x8b]]
        %v479 = vstv %s478
        %v480 = vmul.f32 %v465, %v479
        %v481 = vadd.f32 %v477, %v480
        %482 = vrot.lane.b32.xlu0 %v418, 28
        %v483 = vpop.permute.xlu0 %482
        %484 = vrot.lane.b32.xlu0 %v419, 28
        %v485 = vpop.permute.xlu0 %484
        %486 = vrot.lane.b32.xlu0 %v420, 28
        %v487 = vpop.permute.xlu0 %486
        %v488 = vrot.slane %v483, 1
        %v489 = vrot.slane %v485, 1
        %v490 = vrot.slane %v487, 1
        %v491 = vsel %vm286, %v489, %v490
        %v492 = vsel %vm286, %v488, %v489
        %v493 = vsel %vm267, %v483, %v492
        %v494 = vsel %vm267, %v485, %v491
        %495 = vrot.lane.b32.xlu0 %v493, 127
        %v496 = vpop.permute.xlu0 %495
        %497 = vrot.lane.b32.xlu0 %v494, 127
        %v498 = vpop.permute.xlu0 %497
        %v499 = vrot.slane %v496, 1
        %v500 = vrot.slane %v498, 1
        %v501 = vsel %vm286, %v499, %v500
        %v502 = vsel %vm265, %v496, %v501
        %s503 = sld [smem:[#allocation2 + $0xc]]
        %v504 = vstv %s503
        %v505 = vmul.f32 %v493, %v504
        %v506 = vadd.f32 %v473, %v505
        %s507 = sld [smem:[#allocation2 + $0xd]]
        %v508 = vstv %s507
        %v509 = vmul.f32 %v502, %v508
        %v510 = vadd.f32 %v506, %v509
        %s511 = sld [smem:[#allocation2 + $0x8c]]
        %v512 = vstv %s511
        %v513 = vmul.f32 %v493, %v512
        %v514 = vadd.f32 %v481, %v513
        %s515 = sld [smem:[#allocation2 + $0x8d]]
        %v516 = vstv %s515
        %v517 = vmul.f32 %v502, %v516
        %v518 = vadd.f32 %v514, %v517
        %519 = vrot.lane.b32.xlu0 %v418, 18
        %v520 = vpop.permute.xlu0 %519
        %521 = vrot.lane.b32.xlu0 %v419, 18
        %v522 = vpop.permute.xlu0 %521
        %523 = vrot.lane.b32.xlu0 %v420, 18
        %v524 = vpop.permute.xlu0 %523
        %v525 = vrot.slane %v520, 1
        %v526 = vrot.slane %v522, 1
        %v527 = vrot.slane %v524, 1
        %v528 = vsel %vm286, %v526, %v527
        %v529 = vsel %vm286, %v525, %v526
        %v530 = vsel %vm268, %v520, %v529
        %v531 = vsel %vm268, %v522, %v528
        %532 = vrot.lane.b32.xlu0 %v530, 127
        %v533 = vpop.permute.xlu0 %532
        %534 = vrot.lane.b32.xlu0 %v531, 127
        %v535 = vpop.permute.xlu0 %534
        %v536 = vrot.slane %v533, 1
        %v537 = vrot.slane %v535, 1
        %v538 = vsel %vm286, %v536, %v537
        %v539 = vsel %vm265, %v533, %v538
        %s540 = sld [smem:[#allocation2 + $0xe]]
        %v541 = vstv %s540
        %v542 = vmul.f32 %v530, %v541
        %v543 = vadd.f32 %v510, %v542
        %s544 = sld [smem:[#allocation2 + $0xf]]
        %v545 = vstv %s544
        %v546 = vmul.f32 %v539, %v545
        %v547 = vadd.f32 %v543, %v546
        %s548 = sld [smem:[#allocation2 + $0x8e]]
        %v549 = vstv %s548
        %v550 = vmul.f32 %v530, %v549
        %v551 = vadd.f32 %v518, %v550
        %s552 = sld [smem:[#allocation2 + $0x8f]]
        %v553 = vstv %s552
        %v554 = vmul.f32 %v539, %v553
        %v555 = vadd.f32 %v551, %v554
        %s556 = sadd.s32 0, 48
        %s557 = scalar_lea.vmem %s253, %s556
        %v558 = vld [vmem:[%s557] sm:$0xff]
        %v559 = vld [vmem:[%s557 + $0x8] sm:$0xff]
        %v560 = vld [vmem:[%s557 + $0x10] sm:$0xff]
        %561 = vrot.lane.b32.xlu0 %v558, 127
        %v562 = vpop.permute.xlu0 %561
        %563 = vrot.lane.b32.xlu0 %v559, 127
        %v564 = vpop.permute.xlu0 %563
        %v565 = vrot.slane %v562, 1
        %v566 = vrot.slane %v564, 1
        %v567 = vsel %vm286, %v565, %v566
        %v568 = vsel %vm265, %v562, %v567
        %s569 = sld [smem:[#allocation2 + $0x10]]
        %v570 = vstv %s569
        %v571 = vmul.f32 %v558, %v570
        %v572 = vadd.f32 %v547, %v571
        %s573 = sld [smem:[#allocation2 + $0x11]]
        %v574 = vstv %s573
        %v575 = vmul.f32 %v568, %v574
        %v576 = vadd.f32 %v572, %v575
        %s577 = sld [smem:[#allocation2 + $0x90]]
        %v578 = vstv %s577
        %v579 = vmul.f32 %v558, %v578
        %v580 = vadd.f32 %v555, %v579
        %s581 = sld [smem:[#allocation2 + $0x91]]
        %v582 = vstv %s581
        %v583 = vmul.f32 %v568, %v582
        %v584 = vadd.f32 %v580, %v583
        %585 = vrot.lane.b32.xlu0 %v558, 118
        %v586 = vpop.permute.xlu0 %585
        %587 = vrot.lane.b32.xlu0 %v559, 118
        %v588 = vpop.permute.xlu0 %587
        %589 = vrot.lane.b32.xlu0 %v560, 118
        %v590 = vpop.permute.xlu0 %589
        %v591 = vrot.slane %v586, 1
        %v592 = vrot.slane %v588, 1
        %v593 = vrot.slane %v590, 1
        %v594 = vsel %vm286, %v592, %v593
        %v595 = vsel %vm286, %v591, %v592
        %v596 = vsel %vm266, %v586, %v595
        %v597 = vsel %vm266, %v588, %v594
        %598 = vrot.lane.b32.xlu0 %v596, 127
        %v599 = vpop.permute.xlu0 %598
        %600 = vrot.lane.b32.xlu0 %v597, 127
        %v601 = vpop.permute.xlu0 %600
        %v602 = vrot.slane %v599, 1
        %v603 = vrot.slane %v601, 1
        %v604 = vsel %vm286, %v602, %v603
        %v605 = vsel %vm265, %v599, %v604
        %s606 = sld [smem:[#allocation2 + $0x12]]
        %v607 = vstv %s606
        %v608 = vmul.f32 %v596, %v607
        %v609 = vadd.f32 %v576, %v608
        %s610 = sld [smem:[#allocation2 + $0x13]]
        %v611 = vstv %s610
        %v612 = vmul.f32 %v605, %v611
        %v613 = vadd.f32 %v609, %v612
        %s614 = sld [smem:[#allocation2 + $0x92]]
        %v615 = vstv %s614
        %v616 = vmul.f32 %v596, %v615
        %v617 = vadd.f32 %v584, %v616
        %s618 = sld [smem:[#allocation2 + $0x93]]
        %v619 = vstv %s618
        %v620 = vmul.f32 %v605, %v619
        %v621 = vadd.f32 %v617, %v620
        %622 = vrot.lane.b32.xlu0 %v558, 28
        %v623 = vpop.permute.xlu0 %622
        %624 = vrot.lane.b32.xlu0 %v559, 28
        %v625 = vpop.permute.xlu0 %624
        %626 = vrot.lane.b32.xlu0 %v560, 28
        %v627 = vpop.permute.xlu0 %626
        %v628 = vrot.slane %v623, 1
        %v629 = vrot.slane %v625, 1
        %v630 = vrot.slane %v627, 1
        %v631 = vsel %vm286, %v629, %v630
        %v632 = vsel %vm286, %v628, %v629
        %v633 = vsel %vm267, %v623, %v632
        %v634 = vsel %vm267, %v625, %v631
        %635 = vrot.lane.b32.xlu0 %v633, 127
        %v636 = vpop.permute.xlu0 %635
        %637 = vrot.lane.b32.xlu0 %v634, 127
        %v638 = vpop.permute.xlu0 %637
        %v639 = vrot.slane %v636, 1
        %v640 = vrot.slane %v638, 1
        %v641 = vsel %vm286, %v639, %v640
        %v642 = vsel %vm265, %v636, %v641
        %s643 = sld [smem:[#allocation2 + $0x14]]
        %v644 = vstv %s643
        %v645 = vmul.f32 %v633, %v644
        %v646 = vadd.f32 %v613, %v645
        %s647 = sld [smem:[#allocation2 + $0x15]]
        %v648 = vstv %s647
        %v649 = vmul.f32 %v642, %v648
        %v650 = vadd.f32 %v646, %v649
        %s651 = sld [smem:[#allocation2 + $0x94]]
        %v652 = vstv %s651
        %v653 = vmul.f32 %v633, %v652
        %v654 = vadd.f32 %v621, %v653
        %s655 = sld [smem:[#allocation2 + $0x95]]
        %v656 = vstv %s655
        %v657 = vmul.f32 %v642, %v656
        %v658 = vadd.f32 %v654, %v657
        %659 = vrot.lane.b32.xlu0 %v558, 18
        %v660 = vpop.permute.xlu0 %659
        %661 = vrot.lane.b32.xlu0 %v559, 18
        %v662 = vpop.permute.xlu0 %661
        %663 = vrot.lane.b32.xlu0 %v560, 18
        %v664 = vpop.permute.xlu0 %663
        %v665 = vrot.slane %v660, 1
        %v666 = vrot.slane %v662, 1
        %v667 = vrot.slane %v664, 1
        %v668 = vsel %vm286, %v666, %v667
        %v669 = vsel %vm286, %v665, %v666
        %v670 = vsel %vm268, %v660, %v669
        %v671 = vsel %vm268, %v662, %v668
        %672 = vrot.lane.b32.xlu0 %v670, 127
        %v673 = vpop.permute.xlu0 %672
        %674 = vrot.lane.b32.xlu0 %v671, 127
        %v675 = vpop.permute.xlu0 %674
        %v676 = vrot.slane %v673, 1
        %v677 = vrot.slane %v675, 1
        %v678 = vsel %vm286, %v676, %v677
        %v679 = vsel %vm265, %v673, %v678
        %s680 = sld [smem:[#allocation2 + $0x16]]
        %v681 = vstv %s680
        %v682 = vmul.f32 %v670, %v681
        %v683 = vadd.f32 %v650, %v682
        %s684 = sld [smem:[#allocation2 + $0x17]]
        %v685 = vstv %s684
        %v686 = vmul.f32 %v679, %v685
        %v687 = vadd.f32 %v683, %v686
        %s688 = sld [smem:[#allocation2 + $0x96]]
        %v689 = vstv %s688
        %v690 = vmul.f32 %v670, %v689
        %v691 = vadd.f32 %v658, %v690
        %s692 = sld [smem:[#allocation2 + $0x97]]
        %v693 = vstv %s692
        %v694 = vmul.f32 %v679, %v693
        %v695 = vadd.f32 %v691, %v694
        %s696 = sadd.s32 0, 72
        %s697 = scalar_lea.vmem %s253, %s696
        %v698 = vld [vmem:[%s697] sm:$0xff]
        %v699 = vld [vmem:[%s697 + $0x8] sm:$0xff]
        %v700 = vld [vmem:[%s697 + $0x10] sm:$0xff]
        %701 = vrot.lane.b32.xlu0 %v698, 127
        %v702 = vpop.permute.xlu0 %701
        %703 = vrot.lane.b32.xlu0 %v699, 127
        %v704 = vpop.permute.xlu0 %703
        %v705 = vrot.slane %v702, 1
        %v706 = vrot.slane %v704, 1
        %v707 = vsel %vm286, %v705, %v706
        %v708 = vsel %vm265, %v702, %v707
        %s709 = sld [smem:[#allocation2 + $0x18]]
        %v710 = vstv %s709
        %v711 = vmul.f32 %v698, %v710
        %v712 = vadd.f32 %v687, %v711
        %s713 = sld [smem:[#allocation2 + $0x19]]
        %v714 = vstv %s713
        %v715 = vmul.f32 %v708, %v714
        %v716 = vadd.f32 %v712, %v715
        %s717 = sld [smem:[#allocation2 + $0x98]]
        %v718 = vstv %s717
        %v719 = vmul.f32 %v698, %v718
        %v720 = vadd.f32 %v695, %v719
        %s721 = sld [smem:[#allocation2 + $0x99]]
        %v722 = vstv %s721
        %v723 = vmul.f32 %v708, %v722
        %v724 = vadd.f32 %v720, %v723
        %725 = vrot.lane.b32.xlu0 %v698, 118
        %v726 = vpop.permute.xlu0 %725
        %727 = vrot.lane.b32.xlu0 %v699, 118
        %v728 = vpop.permute.xlu0 %727
        %729 = vrot.lane.b32.xlu0 %v700, 118
        %v730 = vpop.permute.xlu0 %729
        %v731 = vrot.slane %v726, 1
        %v732 = vrot.slane %v728, 1
        %v733 = vrot.slane %v730, 1
        %v734 = vsel %vm286, %v732, %v733
        %v735 = vsel %vm286, %v731, %v732
        %v736 = vsel %vm266, %v726, %v735
        %v737 = vsel %vm266, %v728, %v734
        %738 = vrot.lane.b32.xlu0 %v736, 127
        %v739 = vpop.permute.xlu0 %738
        %740 = vrot.lane.b32.xlu0 %v737, 127
        %v741 = vpop.permute.xlu0 %740
        %v742 = vrot.slane %v739, 1
        %v743 = vrot.slane %v741, 1
        %v744 = vsel %vm286, %v742, %v743
        %v745 = vsel %vm265, %v739, %v744
        %s746 = sld [smem:[#allocation2 + $0x1a]]
        %v747 = vstv %s746
        %v748 = vmul.f32 %v736, %v747
        %v749 = vadd.f32 %v716, %v748
        %s750 = sld [smem:[#allocation2 + $0x1b]]
        %v751 = vstv %s750
        %v752 = vmul.f32 %v745, %v751
        %v753 = vadd.f32 %v749, %v752
        %s754 = sld [smem:[#allocation2 + $0x9a]]
        %v755 = vstv %s754
        %v756 = vmul.f32 %v736, %v755
        %v757 = vadd.f32 %v724, %v756
        %s758 = sld [smem:[#allocation2 + $0x9b]]
        %v759 = vstv %s758
        %v760 = vmul.f32 %v745, %v759
        %v761 = vadd.f32 %v757, %v760
        %762 = vrot.lane.b32.xlu0 %v698, 28
        %v763 = vpop.permute.xlu0 %762
        %764 = vrot.lane.b32.xlu0 %v699, 28
        %v765 = vpop.permute.xlu0 %764
        %766 = vrot.lane.b32.xlu0 %v700, 28
        %v767 = vpop.permute.xlu0 %766
        %v768 = vrot.slane %v763, 1
        %v769 = vrot.slane %v765, 1
        %v770 = vrot.slane %v767, 1
        %v771 = vsel %vm286, %v769, %v770
        %v772 = vsel %vm286, %v768, %v769
        %v773 = vsel %vm267, %v763, %v772
        %v774 = vsel %vm267, %v765, %v771
        %775 = vrot.lane.b32.xlu0 %v773, 127
        %v776 = vpop.permute.xlu0 %775
        %777 = vrot.lane.b32.xlu0 %v774, 127
        %v778 = vpop.permute.xlu0 %777
        %v779 = vrot.slane %v776, 1
        %v780 = vrot.slane %v778, 1
        %v781 = vsel %vm286, %v779, %v780
        %v782 = vsel %vm265, %v776, %v781
        %s783 = sld [smem:[#allocation2 + $0x1c]]
        %v784 = vstv %s783
        %v785 = vmul.f32 %v773, %v784
        %v786 = vadd.f32 %v753, %v785
        %s787 = sld [smem:[#allocation2 + $0x1d]]
        %v788 = vstv %s787
        %v789 = vmul.f32 %v782, %v788
        %v790 = vadd.f32 %v786, %v789
        %s791 = sld [smem:[#allocation2 + $0x9c]]
        %v792 = vstv %s791
        %v793 = vmul.f32 %v773, %v792
        %v794 = vadd.f32 %v761, %v793
        %s795 = sld [smem:[#allocation2 + $0x9d]]
        %v796 = vstv %s795
        %v797 = vmul.f32 %v782, %v796
        %v798 = vadd.f32 %v794, %v797
        %799 = vrot.lane.b32.xlu0 %v698, 18
        %v800 = vpop.permute.xlu0 %799
        %801 = vrot.lane.b32.xlu0 %v699, 18
        %v802 = vpop.permute.xlu0 %801
        %803 = vrot.lane.b32.xlu0 %v700, 18
        %v804 = vpop.permute.xlu0 %803
        %v805 = vrot.slane %v800, 1
        %v806 = vrot.slane %v802, 1
        %v807 = vrot.slane %v804, 1
        %v808 = vsel %vm286, %v806, %v807
        %v809 = vsel %vm286, %v805, %v806
        %v810 = vsel %vm268, %v800, %v809
        %v811 = vsel %vm268, %v802, %v808
        %812 = vrot.lane.b32.xlu0 %v810, 127
        %v813 = vpop.permute.xlu0 %812
        %814 = vrot.lane.b32.xlu0 %v811, 127
        %v815 = vpop.permute.xlu0 %814
        %v816 = vrot.slane %v813, 1
        %v817 = vrot.slane %v815, 1
        %v818 = vsel %vm286, %v816, %v817
        %v819 = vsel %vm265, %v813, %v818
        %s820 = sld [smem:[#allocation2 + $0x1e]]
        %v821 = vstv %s820
        %v822 = vmul.f32 %v810, %v821
        %v823 = vadd.f32 %v790, %v822
        %s824 = sld [smem:[#allocation2 + $0x1f]]
        %v825 = vstv %s824
        %v826 = vmul.f32 %v819, %v825
        %v827 = vadd.f32 %v823, %v826
        %s828 = sld [smem:[#allocation2 + $0x9e]]
        %v829 = vstv %s828
        %v830 = vmul.f32 %v810, %v829
        %v831 = vadd.f32 %v798, %v830
        %s832 = sld [smem:[#allocation2 + $0x9f]]
        %v833 = vstv %s832
        %v834 = vmul.f32 %v819, %v833
        %v835 = vadd.f32 %v831, %v834
        %v836 = vld [vmem:[%s1] sm:$0xff]
        %s837 = sld [smem:[#allocation4]]
        %v838 = vstv %s837
        %v839 = vadd.f32 %v827, %v838
        %v840 = vmul.f32 %v839, %v836
        %s841 = sld [smem:[#allocation4 + $0x1]]
        %v842 = vstv %s841
        %v843 = vadd.f32 %v835, %v842
        %v844 = vmul.f32 %v843, %v836
        %845 = vst [vmem:[%s258] sm:$0xff] %v840
        %s846 = scalar_lea.vmem %s258, %s416
        %847 = vst [vmem:[%s846] sm:$0xff] %v844
        %v848 = vrot.slane %v840, 4
        %v849 = vadd.f32 %v840, %v848
        %v850 = vrot.slane %v849, 2
        %v851 = vadd.f32 %v849, %v850
        %v852 = vrot.slane %v851, 1
        %v853 = vadd.f32 %v851, %v852
        %v854 = vmul.f32 %v840, %v840
        %v855 = vrot.slane %v854, 4
        %v856 = vadd.f32 %v854, %v855
        %v857 = vrot.slane %v856, 2
        %v858 = vadd.f32 %v856, %v857
        %v859 = vrot.slane %v858, 1
        %v860 = vadd.f32 %v858, %v859
        %v861 = vrot.slane %v844, 4
        %v862 = vadd.f32 %v844, %v861
        %v863 = vrot.slane %v862, 2
        %v864 = vadd.f32 %v862, %v863
        %v865 = vrot.slane %v864, 1
        %v866 = vadd.f32 %v864, %v865
        %v867 = vmul.f32 %v844, %v844
        %v868 = vrot.slane %v867, 4
        %v869 = vadd.f32 %v867, %v868
        %v870 = vrot.slane %v869, 2
        %v871 = vadd.f32 %v869, %v870
        %v872 = vrot.slane %v871, 1
        %v873 = vadd.f32 %v871, %v872
        %vm874 = vcmask 1040384
        %v875 = vsel %vm874, %v853, %v860
        %vm876 = vcmask 1041408
        %v877 = vsel %vm876, %v875, %v866
        %vm878 = vcmask 1042432
        %v879 = vsel %vm878, %v877, %v873
        %vm880 = vcmask 1043456
        %v881 = vsel %vm880, %v879, 0.0
        %v882 = vld [vmem:[%s262] sm:$0xff]
        %v883 = vadd.f32 %v882, %v881
        %884 = vst [vmem:[%s262] sm:$0xff] %v883
        %p885 = scmp.lt.s32.totalorder %s19, 1
        %s886 = scalar_select %p885, %s19, 1
        %s887 = smul.addr %s886, 6
        %s888 = smul.addr %s887, 8
        %s889 = scalar_lea.vmem %s4, %s888
        %p890 = scmp.lt.s32.totalorder %s19, 1
        %s891 = scalar_select %p890, %s19, 1
        %s892 = smul.addr %s891, 8
        %s893 = scalar_lea.vmem %s5, %s892
        // Predicated region
        $region45: #{pgen_forward.2} parent=35 // pred_check
          %p894 = pneg %p126
        $region46: #{pgen_forward.2} parent=35 // pred_check_branch
          %896 = sbr.rel (%p894) target = $region48
        $region47: #{pgen_forward.2} parent=35 // pred_region
          _
        $region48: #{pgen_forward.2} parent=35 // pred_fallthru
          _
        // Predicated region
        $region49: #{pgen_forward.2} parent=35 // pred_check
          %p897 = pneg %p152
        $region50: #{pgen_forward.2} parent=35 // pred_check_branch
          %899 = sbr.rel (%p897) target = $region52
        $region51: #{pgen_forward.2} parent=35 // pred_region
          _
        $region52: #{pgen_forward.2} parent=35 // pred_fallthru
          _
      $region36: #{pgen_forward.2} parent=5 // pred_fallthru
        _
      %p900 = scmp.le.s32.totalorder 2, %s14
      // Predicated region
      $region53: #{pgen_forward.2} parent=5 // pred_check
        %p901 = pneg %p900
      $region54: #{pgen_forward.2} parent=5 // pred_check_branch
        %903 = sbr.rel (%p901) target = $region56
      $region55: #{pgen_forward.2} parent=5 // pred_region
        %s904 = ssub.s32 %s14, 2
        // Predicated region
        $region57: #{pgen_forward.2} parent=55 // pred_check
          %p905 = pneg %p132
        $region58: #{pgen_forward.2} parent=55 // pred_check_branch
          %907 = sbr.rel (%p905) target = $region60
        $region59: #{pgen_forward.2} parent=55 // pred_region
          %p908 = scmp.lt.s32.totalorder %s20, 1
          %s909 = scalar_select %p908, %s20, 1
          %s910 = smul.addr %s909, 6
          %s911 = smul.addr %s910, 8
          %s912 = scalar_lea.vmem %s4, %s911
        $region60: #{pgen_forward.2} parent=55 // pred_fallthru
          _
        // Predicated region
        $region61: #{pgen_forward.2} parent=55 // pred_check
          %p913 = pneg %p158
        $region62: #{pgen_forward.2} parent=55 // pred_check_branch
          %915 = sbr.rel (%p913) target = $region64
        $region63: #{pgen_forward.2} parent=55 // pred_region
          %p916 = scmp.lt.s32.totalorder %s20, 1
          %s917 = scalar_select %p916, %s20, 1
          %s918 = smul.addr %s917, 8
          %s919 = scalar_lea.vmem %s5, %s918
        $region64: #{pgen_forward.2} parent=55 // pred_fallthru
          _
      $region56: #{pgen_forward.2} parent=5 // pred_fallthru
        _
    $region6: #{pgen_forward.2} parent=1 // loop_footer
      %s18 = sadd.s32 1, %s14
    $region7: #{pgen_forward.2} parent=1 // loop_footer_branch
      %13 = sbr.rel target = $region3
    $region8: #{pgen_forward.2} parent=1 // loop_exit
      _
    %920 = vsyncpa [#allocation3], 1
    %s921 = scalar_lea.sflag [#allocation3], 1
    %922 = vsyncpa %s921, 1
    %923 = vsyncpa [#allocation5], 1

// kernel: pgen_forward.3
$region0: #{pgen_forward.3}
  #allocation0 [shape = 'u32[]', space=smem, size = 0x4, offset = 0x4, fixed_abs, tag = 'smem constant byte address 0x4 - core index']
  #allocation1 [shape = 'u32[144,128]{1,0:T(1,128)}', space=vmem, size = 0x12000, scoped, tag = 'internal scratch']
  #allocation2 [shape = 'f32[2,24,128]{2,1,0:T(8,128)}', space=vmem, size = 0x6000, scoped, tag = 'scratch operand']
  #allocation3 [shape = 'f32[1]{0:T(128)S(6)}', space=smem, size = 0x200, scoped, tag = 'scoped memory for pgen_forward.3']
  %s0 = inlined_call_operand.vmem [shape: f32[2,2,24,128], index: 0, kind: input, shape index: {}]
  %s1 = inlined_call_operand.vmem [shape: f32[2], index: 1, kind: input, shape index: {}]
  %s2 = inlined_call_operand.vmem [shape: f32[2], index: 2, kind: input, shape index: {}]
  %s3 = inlined_call_operand.vmem [shape: f32[16], index: 3, kind: input, shape index: {}]
  %s4 = inlined_call_operand.<no memory space> [shape: f32[1], index: 4, kind: input, shape index: {}]
  %s5 = inlined_call_operand.vmem [shape: f32[2,24,128], index: 5, kind: output, shape index: {}]
  %s6 = sld [smem:[#allocation0]]
  $region65: #{pgen_forward.3} parent=0
    _
  %s8 = ssub.s32 1, %s6
  %s9 = scalar_select 0, %s8, %s6
  %10 = sst [smem:[#allocation3]] %s4
  $region1: #{pgen_forward.3} parent=0
    #allocation4 [shape = 'u8[512]{0}', space=smem, size = 0x200, scoped, tag = 'input window, operand 1, single buffered']
    #allocation5 [shape = 's32[2]{0}', space=sflag, size = 0x8, scoped, tag = 'scoped memory for pgen_forward.3']
    #allocation6 [shape = 'u8[512]{0}', space=smem, size = 0x200, scoped, tag = 'input window, operand 2, single buffered']
    #allocation7 [shape = 's32[1]{0}', space=sflag, size = 0x4, scoped, tag = 'scoped memory for pgen_forward.3']
    #allocation8 [shape = 'u8[512]{0}', space=smem, size = 0x200, scoped, tag = 'input window, operand 3, single buffered']
    %11 = vsyncpa [#allocation5], 0
    %12 = vsyncpa [#allocation7], 0
    loop: start=0, step=1, limit=4
    $region2: #{pgen_forward.3} parent=1 // loop_pre_header
      _
    $region3: #{pgen_forward.3} parent=1 // loop_header
      %s14 = sphi 0, %s18
      %p15 = scmp.ge.s32.totalorder %s14, 4
      %s24 = sphi 0, %s26
      %s27 = sphi 0, %s24
      %s28 = sphi 0, %s27
      %s44 = sphi 0, %s28
      %s48 = sphi 0, %s48
      %s50 = sphi 0, %s48
      %s51 = sphi 0, %s50
      %s65 = sphi 0, %s51
      %s69 = sphi 0, %s69
      %s71 = sphi 0, %s69
      %s72 = sphi 0, %s71
      %s86 = sphi 0, %s72
      %s90 = sphi 0, %s90
      %s92 = sphi 0, %s90
      %s93 = sphi 0, %s92
      %s107 = sphi 0, %s93
      %s111 = sphi 0, %s111
      %s113 = sphi 0, %s111
      %s114 = sphi 0, %s113
      %s128 = sphi 0, %s114
      %s134 = sphi 0, %s136
      %s137 = sphi 0, %s134
      %s138 = sphi 0, %s137
      %s154 = sphi 0, %s138
    $region4: #{pgen_forward.3} parent=1 // loop_header_branch
      %17 = sbr.rel (%p15) target = $region8
    $region5: #{pgen_forward.3} parent=1 // loop_body
      %s19 = ssub.s32 %s14, 1
      %s20 = ssub.s32 %s14, 2
      %s21 = sadd.s32 %s14, 1
      %s22 = ssub.s32 %s14, %s21
      %p23 = scmp.eq.s32.totalorder %s22, 0
      %s25 = sadd.s32 %s24, 1
      %s26 = scalar_select %p23, %s24, %s25
      %p29 = pneg %p23
      %p30 = scmp.eq.s32.totalorder %s14, 1
      %p31 = por %p29, %p30
      %p32 = scmp.ne.s32.totalorder %s24, %s27
      %p33 = scmp.eq.s32.totalorder %s14, 0
      %p34 = por %p32, %p33
      %p35 = scmp.ne.s32.totalorder %s24, %s27
      %p36 = scmp.eq.s32.totalorder %s19, 1
      %p37 = por %p35, %p36
      %p38 = scmp.ne.s32.totalorder %s27, %s28
      %p39 = scmp.eq.s32.totalorder %s19, 0
      %p40 = por %p38, %p39
      %p41 = scmp.ne.s32.totalorder %s27, %s28
      %p42 = scmp.eq.s32.totalorder %s20, 1
      %p43 = por %p41, %p42
      %p45 = scmp.ne.s32.totalorder %s28, %s44
      %p46 = scmp.eq.s32.totalorder %s20, 0
      %p47 = por %p45, %p46
      %s49 = sadd.s32 %s48, 1
      %p52 = scmp.eq.s32.totalorder %s14, 1
      %p53 = scmp.ne.s32.totalorder %s48, %s50
      %p54 = scmp.eq.s32.totalorder %s14, 0
      %p55 = por %p53, %p54
      %p56 = scmp.ne.s32.totalorder %s48, %s50
      %p57 = scmp.eq.s32.totalorder %s19, 1
      %p58 = por %p56, %p57
      %p59 = scmp.ne.s32.totalorder %s50, %s51
      %p60 = scmp.eq.s32.totalorder %s19, 0
      %p61 = por %p59, %p60
      %p62 = scmp.ne.s32.totalorder %s50, %s51
      %p63 = scmp.eq.s32.totalorder %s20, 1
      %p64 = por %p62, %p63
      %p66 = scmp.ne.s32.totalorder %s51, %s65
      %p67 = scmp.eq.s32.totalorder %s20, 0
      %p68 = por %p66, %p67
      %s70 = sadd.s32 %s69, 1
      %p73 = scmp.eq.s32.totalorder %s14, 1
      %p74 = scmp.ne.s32.totalorder %s69, %s71
      %p75 = scmp.eq.s32.totalorder %s14, 0
      %p76 = por %p74, %p75
      %p77 = scmp.ne.s32.totalorder %s69, %s71
      %p78 = scmp.eq.s32.totalorder %s19, 1
      %p79 = por %p77, %p78
      %p80 = scmp.ne.s32.totalorder %s71, %s72
      %p81 = scmp.eq.s32.totalorder %s19, 0
      %p82 = por %p80, %p81
      %p83 = scmp.ne.s32.totalorder %s71, %s72
      %p84 = scmp.eq.s32.totalorder %s20, 1
      %p85 = por %p83, %p84
      %p87 = scmp.ne.s32.totalorder %s72, %s86
      %p88 = scmp.eq.s32.totalorder %s20, 0
      %p89 = por %p87, %p88
      %s91 = sadd.s32 %s90, 1
      %p94 = scmp.eq.s32.totalorder %s14, 1
      %p95 = scmp.ne.s32.totalorder %s90, %s92
      %p96 = scmp.eq.s32.totalorder %s14, 0
      %p97 = por %p95, %p96
      %p98 = scmp.ne.s32.totalorder %s90, %s92
      %p99 = scmp.eq.s32.totalorder %s19, 1
      %p100 = por %p98, %p99
      %p101 = scmp.ne.s32.totalorder %s92, %s93
      %p102 = scmp.eq.s32.totalorder %s19, 0
      %p103 = por %p101, %p102
      %p104 = scmp.ne.s32.totalorder %s92, %s93
      %p105 = scmp.eq.s32.totalorder %s20, 1
      %p106 = por %p104, %p105
      %p108 = scmp.ne.s32.totalorder %s93, %s107
      %p109 = scmp.eq.s32.totalorder %s20, 0
      %p110 = por %p108, %p109
      %s112 = sadd.s32 %s111, 1
      %p115 = scmp.eq.s32.totalorder %s14, 1
      %p116 = scmp.ne.s32.totalorder %s111, %s113
      %p117 = scmp.eq.s32.totalorder %s14, 0
      %p118 = por %p116, %p117
      %p119 = scmp.ne.s32.totalorder %s111, %s113
      %p120 = scmp.eq.s32.totalorder %s19, 1
      %p121 = por %p119, %p120
      %p122 = scmp.ne.s32.totalorder %s113, %s114
      %p123 = scmp.eq.s32.totalorder %s19, 0
      %p124 = por %p122, %p123
      %p125 = scmp.ne.s32.totalorder %s113, %s114
      %p126 = scmp.eq.s32.totalorder %s20, 1
      %p127 = por %p125, %p126
      %p129 = scmp.ne.s32.totalorder %s114, %s128
      %p130 = scmp.eq.s32.totalorder %s20, 0
      %p131 = por %p129, %p130
      %s132 = ssub.s32 %s14, %s21
      %p133 = scmp.eq.s32.totalorder %s132, 0
      %s135 = sadd.s32 %s134, 1
      %s136 = scalar_select %p133, %s134, %s135
      %p139 = pneg %p133
      %p140 = scmp.eq.s32.totalorder %s14, 1
      %p141 = por %p139, %p140
      %p142 = scmp.ne.s32.totalorder %s134, %s137
      %p143 = scmp.eq.s32.totalorder %s14, 0
      %p144 = por %p142, %p143
      %p145 = scmp.ne.s32.totalorder %s134, %s137
      %p146 = scmp.eq.s32.totalorder %s19, 1
      %p147 = por %p145, %p146
      %p148 = scmp.ne.s32.totalorder %s137, %s138
      %p149 = scmp.eq.s32.totalorder %s19, 0
      %p150 = por %p148, %p149
      %p151 = scmp.ne.s32.totalorder %s137, %s138
      %p152 = scmp.eq.s32.totalorder %s20, 1
      %p153 = por %p151, %p152
      %p155 = scmp.ne.s32.totalorder %s138, %s154
      %p156 = scmp.eq.s32.totalorder %s20, 0
      %p157 = por %p155, %p156
      %p158 = scmp.le.s32.totalorder 1, %s14
      %p159 = scmp.lt.s32.totalorder %s14, 3
      %p160 = pnand %p158, %p159
      %p161 = pneg %p160
      // Predicated region
      $region9: #{pgen_forward.3} parent=5 // pred_check
        _
      $region10: #{pgen_forward.3} parent=5 // pred_check_branch
        %163 = sbr.rel (%p160) target = $region12
      $region11: #{pgen_forward.3} parent=5 // pred_region
        %s164 = ssub.s32 %s14, 1
        // Predicated region
        $region13: #{pgen_forward.3} parent=11 // pred_check
          %p165 = pneg %p61
        $region14: #{pgen_forward.3} parent=11 // pred_check_branch
          %167 = sbr.rel (%p165) target = $region16
        $region15: #{pgen_forward.3} parent=11 // pred_region
          %s169 = ssub.s32 16, 16
          %170 = vsyncadd [#allocation5], %s169
          %s172 = sshll.u32 %s1, 4
          %s173 = int_to_ptr.vmem [resolvable:$true] %s172
          %175 = dma.vmem_to_smem %s173, 16, [#allocation4], [#allocation5]
        $region16: #{pgen_forward.3} parent=11 // pred_fallthru
          _
        // Predicated region
        $region17: #{pgen_forward.3} parent=11 // pred_check
          %p176 = pneg %p82
        $region18: #{pgen_forward.3} parent=11 // pred_check_branch
          %178 = sbr.rel (%p176) target = $region20
        $region19: #{pgen_forward.3} parent=11 // pred_region
          %s180 = ssub.s32 16, 16
          %181 = vsyncadd [#allocation7], %s180
          %s183 = sshll.u32 %s2, 4
          %s184 = int_to_ptr.vmem [resolvable:$true] %s183
          %186 = dma.vmem_to_smem %s184, 16, [#allocation6], [#allocation7]
        $region20: #{pgen_forward.3} parent=11 // pred_fallthru
          _
        // Predicated region
        $region21: #{pgen_forward.3} parent=11 // pred_check
          %p187 = pneg %p103
        $region22: #{pgen_forward.3} parent=11 // pred_check_branch
          %189 = sbr.rel (%p187) target = $region24
        $region23: #{pgen_forward.3} parent=11 // pred_region
          %s191 = ssub.s32 16, 16
          %192 = vsyncadd [#allocation7], %s191
          %s194 = sshll.u32 %s3, 4
          %s195 = int_to_ptr.vmem [resolvable:$true] %s194
          %197 = dma.vmem_to_smem %s195, 16, [#allocation8], [#allocation7]
        $region24: #{pgen_forward.3} parent=11 // pred_fallthru
          _
        // Predicated region
        $region25: #{pgen_forward.3} parent=11 // pred_check
          %p198 = pneg %p124
        $region26: #{pgen_forward.3} parent=11 // pred_check_branch
          %200 = sbr.rel (%p198) target = $region28
        $region27: #{pgen_forward.3} parent=11 // pred_region
          _
        $region28: #{pgen_forward.3} parent=11 // pred_fallthru
          _
      $region12: #{pgen_forward.3} parent=5 // pred_fallthru
        _
      %p201 = scmp.lt.s32.totalorder %s14, 2
      // Predicated region
      $region29: #{pgen_forward.3} parent=5 // pred_check
        %p202 = pneg %p201
      $region30: #{pgen_forward.3} parent=5 // pred_check_branch
        %204 = sbr.rel (%p202) target = $region32
      $region31: #{pgen_forward.3} parent=5 // pred_region
        // Predicated region
        $region33: #{pgen_forward.3} parent=31 // pred_check
          %p205 = pneg %p34
        $region34: #{pgen_forward.3} parent=31 // pred_check_branch
          %207 = sbr.rel (%p205) target = $region36
        $region35: #{pgen_forward.3} parent=31 // pred_region
          %p208 = scmp.lt.s32.totalorder %s14, 1
          %s209 = scalar_select %p208, %s14, 1
          %s210 = smul.addr %s209, 6
          %s211 = smul.addr %s210, 8
          %s212 = scalar_lea.vmem %s0, %s211
        $region36: #{pgen_forward.3} parent=31 // pred_fallthru
          _
      $region32: #{pgen_forward.3} parent=5 // pred_fallthru
        _
      %p213 = scmp.le.s32.totalorder 1, %s14
      %p214 = scmp.lt.s32.totalorder %s14, 3
      %p215 = pnand %p213, %p214
      %p216 = pneg %p215
      // Predicated region
      $region37: #{pgen_forward.3} parent=5 // pred_check
        _
      $region38: #{pgen_forward.3} parent=5 // pred_check_branch
        %218 = sbr.rel (%p215) target = $region40
      $region39: #{pgen_forward.3} parent=5 // pred_region
        %s219 = ssub.s32 %s14, 1
        // Predicated region
        $region41: #{pgen_forward.3} parent=39 // pred_check
          %p220 = pneg %p61
        $region42: #{pgen_forward.3} parent=39 // pred_check_branch
          %222 = sbr.rel (%p220) target = $region44
        $region43: #{pgen_forward.3} parent=39 // pred_region
          %223 = dma.done [#allocation5], 16
        $region44: #{pgen_forward.3} parent=39 // pred_fallthru
          _
        // Predicated region
        $region45: #{pgen_forward.3} parent=39 // pred_check
          %p224 = pneg %p82
        $region46: #{pgen_forward.3} parent=39 // pred_check_branch
          %226 = sbr.rel (%p224) target = $region48
        $region47: #{pgen_forward.3} parent=39 // pred_region
          %227 = dma.done [#allocation7], 16
        $region48: #{pgen_forward.3} parent=39 // pred_fallthru
          _
        // Predicated region
        $region49: #{pgen_forward.3} parent=39 // pred_check
          %p228 = pneg %p103
        $region50: #{pgen_forward.3} parent=39 // pred_check_branch
          %230 = sbr.rel (%p228) target = $region52
        $region51: #{pgen_forward.3} parent=39 // pred_region
          %231 = dma.done [#allocation7], 16
        $region52: #{pgen_forward.3} parent=39 // pred_fallthru
          _
        %232 = sfence
        %p233 = scmp.lt.s32.totalorder %s19, 1
        %s234 = scalar_select %p233, %s19, 1
        %s235 = smul.addr %s234, 6
        %s236 = smul.addr %s235, 8
        %s237 = scalar_lea.vmem %s0, %s236
        %p238 = pneg %p40
        %p239 = pneg %p37
        %p240 = pneg %p61
        %p241 = pneg %p58
        %p242 = pneg %p82
        %p243 = pneg %p79
        %p244 = pneg %p103
        %p245 = pneg %p100
        %p246 = pneg %p124
        %p247 = pneg %p121
        %p248 = pneg %p150
        %p249 = pneg %p147
        %p250 = scmp.lt.s32.totalorder %s19, 1
        %s251 = scalar_select %p250, %s19, 1
        %s252 = smul.addr %s251, 3
        %s253 = smul.addr %s252, 8
        %s254 = scalar_lea.vmem %s5, %s253
        %p255 = scmp.lt.s32.totalorder %s19, 1
        %s256 = scalar_select %p255, %s19, 1
        %s257 = smul.addr %s256, 6
        %s258 = smul.addr %s257, 8
        %s259 = scalar_lea.vmem %s0, %s258
        %p260 = scmp.lt.s32.totalorder %s19, 1
        %s261 = scalar_select %p260, %s19, 1
        %s262 = smul.addr %s261, 3
        %s263 = smul.addr %s262, 8
        %s264 = scalar_lea.vmem %s5, %s263
        %v265 = vlaneseq
        %v266 = vand.u32 %v265, 127
        %vm267 = vcmp.lt.s32.totalorder %v266, 127
        %vm268 = vcmp.lt.s32.totalorder %v266, 118
        %vm269 = vcmp.lt.s32.totalorder %v266, 28
        %vm270 = vcmp.lt.s32.totalorder %v266, 18
        %271 = vst [vmem:[#allocation2 + $0x8] sm:$0xff] 0.0
        %272 = vst [vmem:[#allocation2 + $0x10] sm:$0xff] 0.0
        %s273 = scalar_lea.vmem [#allocation2], 24
        %274 = vst [vmem:[%s273 + $0x8] sm:$0xff] 0.0
        %275 = vst [vmem:[%s273 + $0x10] sm:$0xff] 0.0
        %276 = vst [vmem:[%s264 + $0x8] sm:$0xff] 0.0
        %277 = vst [vmem:[%s264 + $0x10] sm:$0xff] 0.0
        %v278 = vld [vmem:[%s259] sm:$0xff]
        %s279 = sld [smem:[#allocation4]]
        %v280 = vstv %s279
        %v281 = vmul.f32 %v278, %v280
        %s282 = sld [smem:[#allocation6]]
        %v283 = vstv %s282
        %v284 = vadd.f32 %v281, %v283
        %vm285 = vcmp.gt.f32.partialorder %v284, 0.0
        %v286 = vmul.f32 %v284, 1.442695
        %v287 = vpow.pop %v286
        %v288 = vsub.f32 %v287, 1.0
        %v289 = vsel %vm285, %v284, %v288
        %290 = vst [vmem:[#allocation2] sm:$0xff] %v289
        %s291 = sadd.s32 0, 24
        %s292 = scalar_lea.vmem %s259, %s291
        %v293 = vld [vmem:[%s292] sm:$0xff]
        %s294 = sld [smem:[#allocation4 + $0x1]]
        %v295 = vstv %s294
        %v296 = vmul.f32 %v293, %v295
        %s297 = sld [smem:[#allocation6 + $0x1]]
        %v298 = vstv %s297
        %v299 = vadd.f32 %v296, %v298
        %vm300 = vcmp.gt.f32.partialorder %v299, 0.0
        %v301 = vmul.f32 %v299, 1.442695
        %v302 = vpow.pop %v301
        %v303 = vsub.f32 %v302, 1.0
        %v304 = vsel %vm300, %v299, %v303
        %s305 = scalar_lea.vmem [#allocation2], %s291
        %306 = vst [vmem:[%s305] sm:$0xff] %v304
        %s307 = sld [smem:[#allocation3]]
        %v308 = vstv %s307
        %v309 = vadd.f32 %v308, 0.0
        %v310 = vld [vmem:[#allocation2] sm:$0xff]
        %v311 = vld [vmem:[#allocation2 + $0x8] sm:$0xff]
        %v312 = vld [vmem:[#allocation2 + $0x10] sm:$0xff]
        %313 = vrot.lane.b32.xlu0 %v310, 127
        %v314 = vpop.permute.xlu0 %313
        %315 = vrot.lane.b32.xlu0 %v311, 127
        %v316 = vpop.permute.xlu0 %315
        %v317 = vrot.slane %v314, 1
        %v318 = vrot.slane %v316, 1
        %v319 = vlaneseq
        %v320 = vshrl.u32 %v319, 7
        %vm321 = vcmp.lt.s32.totalorder %v320, 7
        %v322 = vsel %vm321, %v317, %v318
        %v323 = vsel %vm267, %v314, %v322
        %s324 = sld [smem:[#allocation8]]
        %v325 = vstv %s324
        %v326 = vmul.f32 %v310, %v325
        %v327 = vadd.f32 %v309, %v326
        %s328 = sld [smem:[#allocation8 + $0x1]]
        %v329 = vstv %s328
        %v330 = vmul.f32 %v323, %v329
        %v331 = vadd.f32 %v327, %v330
        %332 = vrot.lane.b32.xlu0 %v310, 118
        %v333 = vpop.permute.xlu0 %332
        %334 = vrot.lane.b32.xlu0 %v311, 118
        %v335 = vpop.permute.xlu0 %334
        %336 = vrot.lane.b32.xlu0 %v312, 118
        %v337 = vpop.permute.xlu0 %336
        %v338 = vrot.slane %v333, 1
        %v339 = vrot.slane %v335, 1
        %v340 = vrot.slane %v337, 1
        %v341 = vsel %vm321, %v339, %v340
        %v342 = vsel %vm321, %v338, %v339
        %v343 = vsel %vm268, %v333, %v342
        %v344 = vsel %vm268, %v335, %v341
        %345 = vrot.lane.b32.xlu0 %v343, 127
        %v346 = vpop.permute.xlu0 %345
        %347 = vrot.lane.b32.xlu0 %v344, 127
        %v348 = vpop.permute.xlu0 %347
        %v349 = vrot.slane %v346, 1
        %v350 = vrot.slane %v348, 1
        %v351 = vsel %vm321, %v349, %v350
        %v352 = vsel %vm267, %v346, %v351
        %s353 = sld [smem:[#allocation8 + $0x2]]
        %v354 = vstv %s353
        %v355 = vmul.f32 %v343, %v354
        %v356 = vadd.f32 %v331, %v355
        %s357 = sld [smem:[#allocation8 + $0x3]]
        %v358 = vstv %s357
        %v359 = vmul.f32 %v352, %v358
        %v360 = vadd.f32 %v356, %v359
        %361 = vrot.lane.b32.xlu0 %v310, 28
        %v362 = vpop.permute.xlu0 %361
        %363 = vrot.lane.b32.xlu0 %v311, 28
        %v364 = vpop.permute.xlu0 %363
        %365 = vrot.lane.b32.xlu0 %v312, 28
        %v366 = vpop.permute.xlu0 %365
        %v367 = vrot.slane %v362, 1
        %v368 = vrot.slane %v364, 1
        %v369 = vrot.slane %v366, 1
        %v370 = vsel %vm321, %v368, %v369
        %v371 = vsel %vm321, %v367, %v368
        %v372 = vsel %vm269, %v362, %v371
        %v373 = vsel %vm269, %v364, %v370
        %374 = vrot.lane.b32.xlu0 %v372, 127
        %v375 = vpop.permute.xlu0 %374
        %376 = vrot.lane.b32.xlu0 %v373, 127
        %v377 = vpop.permute.xlu0 %376
        %v378 = vrot.slane %v375, 1
        %v379 = vrot.slane %v377, 1
        %v380 = vsel %vm321, %v378, %v379
        %v381 = vsel %vm267, %v375, %v380
        %s382 = sld [smem:[#allocation8 + $0x4]]
        %v383 = vstv %s382
        %v384 = vmul.f32 %v372, %v383
        %v385 = vadd.f32 %v360, %v384
        %s386 = sld [smem:[#allocation8 + $0x5]]
        %v387 = vstv %s386
        %v388 = vmul.f32 %v381, %v387
        %v389 = vadd.f32 %v385, %v388
        %390 = vrot.lane.b32.xlu0 %v310, 18
        %v391 = vpop.permute.xlu0 %390
        %392 = vrot.lane.b32.xlu0 %v311, 18
        %v393 = vpop.permute.xlu0 %392
        %394 = vrot.lane.b32.xlu0 %v312, 18
        %v395 = vpop.permute.xlu0 %394
        %v396 = vrot.slane %v391, 1
        %v397 = vrot.slane %v393, 1
        %v398 = vrot.slane %v395, 1
        %v399 = vsel %vm321, %v397, %v398
        %v400 = vsel %vm321, %v396, %v397
        %v401 = vsel %vm270, %v391, %v400
        %v402 = vsel %vm270, %v393, %v399
        %403 = vrot.lane.b32.xlu0 %v401, 127
        %v404 = vpop.permute.xlu0 %403
        %405 = vrot.lane.b32.xlu0 %v402, 127
        %v406 = vpop.permute.xlu0 %405
        %v407 = vrot.slane %v404, 1
        %v408 = vrot.slane %v406, 1
        %v409 = vsel %vm321, %v407, %v408
        %v410 = vsel %vm267, %v404, %v409
        %s411 = sld [smem:[#allocation8 + $0x6]]
        %v412 = vstv %s411
        %v413 = vmul.f32 %v401, %v412
        %v414 = vadd.f32 %v389, %v413
        %s415 = sld [smem:[#allocation8 + $0x7]]
        %v416 = vstv %s415
        %v417 = vmul.f32 %v410, %v416
        %v418 = vadd.f32 %v414, %v417
        %v419 = vld [vmem:[%s305] sm:$0xff]
        %v420 = vld [vmem:[%s305 + $0x8] sm:$0xff]
        %v421 = vld [vmem:[%s305 + $0x10] sm:$0xff]
        %422 = vrot.lane.b32.xlu0 %v419, 127
        %v423 = vpop.permute.xlu0 %422
        %424 = vrot.lane.b32.xlu0 %v420, 127
        %v425 = vpop.permute.xlu0 %424
        %v426 = vrot.slane %v423, 1
        %v427 = vrot.slane %v425, 1
        %v428 = vsel %vm321, %v426, %v427
        %v429 = vsel %vm267, %v423, %v428
        %s430 = sld [smem:[#allocation8 + $0x8]]
        %v431 = vstv %s430
        %v432 = vmul.f32 %v419, %v431
        %v433 = vadd.f32 %v418, %v432
        %s434 = sld [smem:[#allocation8 + $0x9]]
        %v435 = vstv %s434
        %v436 = vmul.f32 %v429, %v435
        %v437 = vadd.f32 %v433, %v436
        %438 = vrot.lane.b32.xlu0 %v419, 118
        %v439 = vpop.permute.xlu0 %438
        %440 = vrot.lane.b32.xlu0 %v420, 118
        %v441 = vpop.permute.xlu0 %440
        %442 = vrot.lane.b32.xlu0 %v421, 118
        %v443 = vpop.permute.xlu0 %442
        %v444 = vrot.slane %v439, 1
        %v445 = vrot.slane %v441, 1
        %v446 = vrot.slane %v443, 1
        %v447 = vsel %vm321, %v445, %v446
        %v448 = vsel %vm321, %v444, %v445
        %v449 = vsel %vm268, %v439, %v448
        %v450 = vsel %vm268, %v441, %v447
        %451 = vrot.lane.b32.xlu0 %v449, 127
        %v452 = vpop.permute.xlu0 %451
        %453 = vrot.lane.b32.xlu0 %v450, 127
        %v454 = vpop.permute.xlu0 %453
        %v455 = vrot.slane %v452, 1
        %v456 = vrot.slane %v454, 1
        %v457 = vsel %vm321, %v455, %v456
        %v458 = vsel %vm267, %v452, %v457
        %s459 = sld [smem:[#allocation8 + $0xa]]
        %v460 = vstv %s459
        %v461 = vmul.f32 %v449, %v460
        %v462 = vadd.f32 %v437, %v461
        %s463 = sld [smem:[#allocation8 + $0xb]]
        %v464 = vstv %s463
        %v465 = vmul.f32 %v458, %v464
        %v466 = vadd.f32 %v462, %v465
        %467 = vrot.lane.b32.xlu0 %v419, 28
        %v468 = vpop.permute.xlu0 %467
        %469 = vrot.lane.b32.xlu0 %v420, 28
        %v470 = vpop.permute.xlu0 %469
        %471 = vrot.lane.b32.xlu0 %v421, 28
        %v472 = vpop.permute.xlu0 %471
        %v473 = vrot.slane %v468, 1
        %v474 = vrot.slane %v470, 1
        %v475 = vrot.slane %v472, 1
        %v476 = vsel %vm321, %v474, %v475
        %v477 = vsel %vm321, %v473, %v474
        %v478 = vsel %vm269, %v468, %v477
        %v479 = vsel %vm269, %v470, %v476
        %480 = vrot.lane.b32.xlu0 %v478, 127
        %v481 = vpop.permute.xlu0 %480
        %482 = vrot.lane.b32.xlu0 %v479, 127
        %v483 = vpop.permute.xlu0 %482
        %v484 = vrot.slane %v481, 1
        %v485 = vrot.slane %v483, 1
        %v486 = vsel %vm321, %v484, %v485
        %v487 = vsel %vm267, %v481, %v486
        %s488 = sld [smem:[#allocation8 + $0xc]]
        %v489 = vstv %s488
        %v490 = vmul.f32 %v478, %v489
        %v491 = vadd.f32 %v466, %v490
        %s492 = sld [smem:[#allocation8 + $0xd]]
        %v493 = vstv %s492
        %v494 = vmul.f32 %v487, %v493
        %v495 = vadd.f32 %v491, %v494
        %496 = vrot.lane.b32.xlu0 %v419, 18
        %v497 = vpop.permute.xlu0 %496
        %498 = vrot.lane.b32.xlu0 %v420, 18
        %v499 = vpop.permute.xlu0 %498
        %500 = vrot.lane.b32.xlu0 %v421, 18
        %v501 = vpop.permute.xlu0 %500
        %v502 = vrot.slane %v497, 1
        %v503 = vrot.slane %v499, 1
        %v504 = vrot.slane %v501, 1
        %v505 = vsel %vm321, %v503, %v504
        %v506 = vsel %vm321, %v502, %v503
        %v507 = vsel %vm270, %v497, %v506
        %v508 = vsel %vm270, %v499, %v505
        %509 = vrot.lane.b32.xlu0 %v507, 127
        %v510 = vpop.permute.xlu0 %509
        %511 = vrot.lane.b32.xlu0 %v508, 127
        %v512 = vpop.permute.xlu0 %511
        %v513 = vrot.slane %v510, 1
        %v514 = vrot.slane %v512, 1
        %v515 = vsel %vm321, %v513, %v514
        %v516 = vsel %vm267, %v510, %v515
        %s517 = sld [smem:[#allocation8 + $0xe]]
        %v518 = vstv %s517
        %v519 = vmul.f32 %v507, %v518
        %v520 = vadd.f32 %v495, %v519
        %s521 = sld [smem:[#allocation8 + $0xf]]
        %v522 = vstv %s521
        %v523 = vmul.f32 %v516, %v522
        %v524 = vadd.f32 %v520, %v523
        %v525 = vmul.f32 %v524, 0.5
        %v526 = vtanh.pop %v525
        %v527 = vmul.f32 %v526, 0.5
        %v528 = vadd.f32 %v527, 0.5
        %529 = vst [vmem:[%s264] sm:$0xff] %v528
        %p530 = scmp.lt.s32.totalorder %s19, 1
        %s531 = scalar_select %p530, %s19, 1
        %s532 = smul.addr %s531, 3
        %s533 = smul.addr %s532, 8
        %s534 = scalar_lea.vmem %s5, %s533
        // Predicated region
        $region53: #{pgen_forward.3} parent=39 // pred_check
          %p535 = pneg %p147
        $region54: #{pgen_forward.3} parent=39 // pred_check_branch
          %537 = sbr.rel (%p535) target = $region56
        $region55: #{pgen_forward.3} parent=39 // pred_region
          _
        $region56: #{pgen_forward.3} parent=39 // pred_fallthru
          _
      $region40: #{pgen_forward.3} parent=5 // pred_fallthru
        _
      %p538 = scmp.le.s32.totalorder 2, %s14
      // Predicated region
      $region57: #{pgen_forward.3} parent=5 // pred_check
        %p539 = pneg %p538
      $region58: #{pgen_forward.3} parent=5 // pred_check_branch
        %541 = sbr.rel (%p539) target = $region60
      $region59: #{pgen_forward.3} parent=5 // pred_region
        %s542 = ssub.s32 %s14, 2
        // Predicated region
        $region61: #{pgen_forward.3} parent=59 // pred_check
          %p543 = pneg %p153
        $region62: #{pgen_forward.3} parent=59 // pred_check_branch
          %545 = sbr.rel (%p543) target = $region64
        $region63: #{pgen_forward.3} parent=59 // pred_region
          %p546 = scmp.lt.s32.totalorder %s20, 1
          %s547 = scalar_select %p546, %s20, 1
          %s548 = smul.addr %s547, 3
          %s549 = smul.addr %s548, 8
          %s550 = scalar_lea.vmem %s5, %s549
        $region64: #{pgen_forward.3} parent=59 // pred_fallthru
          _
      $region60: #{pgen_forward.3} parent=5 // pred_fallthru
        _
    $region6: #{pgen_forward.3} parent=1 // loop_footer
      %s18 = sadd.s32 1, %s14
    $region7: #{pgen_forward.3} parent=1 // loop_footer_branch
      %13 = sbr.rel target = $region3
    $region8: #{pgen_forward.3} parent=1 // loop_exit
      _
    %551 = vsyncpa [#allocation5], 1
    %s552 = scalar_lea.sflag [#allocation5], 1
    %553 = vsyncpa %s552, 1
    %554 = vsyncpa [#allocation7], 1

</llo_original>
